<compile_context>
chip_gen: v5e
topology: v5e:2x2
jax: 0.10.0
libtpu: 0.0.40
codegen_flags: <defaults>
</compile_context>

<pallas_src>
import functools

import jax
import jax.numpy as jnp
from jax.experimental import pallas as pl
from jax.experimental.pallas import tpu as pltpu


def _round_up(x, m):
    return ((x + m - 1) // m) * m


def _mlp_head_kernel(h_ref, w1_ref, b1_ref, w2_ref, b2_ref, o_ref):
    """Fused fc1 -> leaky_relu(0.1) -> fc2 -> leaky_relu(0.1) on one node tile.

    h_ref  : (tile_n, Din_p) bf16      node-embedding tile (streamed)
    w1_ref : (Din_p, H_p)    bf16      fc1 weight (resident across the grid)
    b1_ref : (1, H_p)        f32
    w2_ref : (H_p, T_p)      bf16      fc2 weight (resident)
    b2_ref : (1, T_p)        f32
    o_ref  : (tile_n, T_p)   f32       lane-dense (T_p = multiple of 128)
    """
    h = h_ref[...]
    # fc1: bf16 inputs, f32 MXU accumulation.
    z1 = jnp.dot(h, w1_ref[...], preferred_element_type=jnp.float32)
    z1 = z1 + b1_ref[...]
    a1 = jnp.where(z1 > 0, z1, 0.1 * z1)                 # leaky_relu, slope 0.1 (f32)
    # fc2: cast activation to bf16 for the MXU, keep f32 accumulation.
    z2 = jnp.dot(a1.astype(w2_ref.dtype), w2_ref[...],
                 preferred_element_type=jnp.float32)
    z2 = z2 + b2_ref[...]
    o_ref[...] = jnp.where(z2 > 0, z2, 0.1 * z2).astype(o_ref.dtype)


def gnn_head_forward(h_node, w1, b1, w2, b2, *, tile_n=512):
    """predict = leaky_relu(fc2(leaky_relu(fc1(h_node), 0.1)), 0.1) in one Pallas call.

    h_node : [N, Din]   (Din = (num_layer + 1) * emb_dim for JK='concat')
    w1     : [Din, 512] (fc1 weight, already transposed to x @ W layout)
    b1     : [1, 512]
    w2     : [512, T]   (fc2 weight, transposed)
    b2     : [1, T]
    """
    N, Din = h_node.shape
    H = w1.shape[1]
    T = w2.shape[1]

    # ---- lane (128) padding on the feature axes --------------------------
    Din_p = _round_up(Din, 128)
    H_p = _round_up(H, 128)          # 512 for this module: no-op
    T_p = _round_up(T, 128)          # num_tasks -> 128 for unmasked stores

    # ---- node-axis tiling: big, 256-aligned tile; ragged N zero-padded ----
    # Cap the tile so small graphs are not padded to a huge tile; keep it a
    # multiple of 256 (full MXU M on v6e/v7x, 128-aligned for v5e).
    tile_n = max(256, min(int(tile_n), _round_up(N, 256)))
    N_p = _round_up(N, tile_n)
    grid = (N_p // tile_n,)

    bf16 = jnp.bfloat16
    f32 = jnp.float32

    # Zero padding keeps the math exact: padded Din columns multiply zero W1
    # rows, padded T columns are zero weight + zero bias (sliced away below),
    # padded node rows are garbage-but-discarded.
    h_p = jnp.zeros((N_p, Din_p), bf16).at[:N, :Din].set(h_node.astype(bf16))
    w1_p = jnp.zeros((Din_p, H_p), bf16).at[:Din, :H].set(w1.astype(bf16))
    b1_p = jnp.zeros((1, H_p), f32).at[:, :H].set(b1.astype(f32))
    w2_p = jnp.zeros((H_p, T_p), bf16).at[:H, :T].set(w2.astype(bf16))
    b2_p = jnp.zeros((1, T_p), f32).at[:, :T].set(b2.astype(f32))

    cost = pl.CostEstimate(
        flops=int(2 * N_p * (Din_p * H_p + H_p * T_p)),
        transcendentals=0,
        bytes_accessed=int(
            N_p * Din_p * 2            # h_node (bf16)
            + Din_p * H_p * 2          # w1 (bf16)
            + H_p * T_p * 2            # w2 (bf16)
            + (H_p + T_p) * 4          # biases (f32)
            + N_p * T_p * 4            # output (f32)
        ),
    )

    out = pl.pallas_call(
        _mlp_head_kernel,
        out_shape=jax.ShapeDtypeStruct((N_p, T_p), f32),
        grid_spec=pltpu.PrefetchScalarGridSpec(
            num_scalar_prefetch=0,
            grid=grid,
            in_specs=[
                pl.BlockSpec((tile_n, Din_p), lambda i: (i, 0)),  # node tile (streamed)
                pl.BlockSpec((Din_p, H_p), lambda i: (0, 0)),     # fc1 weight (resident)
                pl.BlockSpec((1, H_p), lambda i: (0, 0)),         # fc1 bias
                pl.BlockSpec((H_p, T_p), lambda i: (0, 0)),       # fc2 weight (resident)
                pl.BlockSpec((1, T_p), lambda i: (0, 0)),         # fc2 bias
            ],
            out_specs=pl.BlockSpec((tile_n, T_p), lambda i: (i, 0)),
        ),
        compiler_params=pltpu.CompilerParams(
            dimension_semantics=("parallel",),
            vmem_limit_bytes=32 * 1024 * 1024,   # safe on v5e/v6e/v7x; kernel needs ~3 MiB
        ),
        cost_estimate=cost,
    )(h_p, w1_p, b1_p, w2_p, b2_p)

    # Lane/row padding is stripped OUTSIDE the kernel (cheap XLA slice).
    return out[:N, :T]


def _linear_init(key, fan_in, fan_out):
    """Deterministic init matching nn.Linear's uniform(-1/sqrt(fan_in), 1/sqrt(fan_in))."""
    kw, kb = jax.random.split(key)
    bound = 1.0 / jnp.sqrt(jnp.float32(fan_in))
    w = jax.random.uniform(kw, (fan_in, fan_out), jnp.float32, -bound, bound)
    b = jax.random.uniform(kb, (1, fan_out), jnp.float32, -bound, bound)
    return w, b


def reference_forward_f32(h_node, w1, b1, w2, b2):
    """Pure-JAX f32 reference of the same head (module semantics)."""
    a1 = jax.nn.leaky_relu(h_node @ w1 + b1, negative_slope=0.1)
    return jax.nn.leaky_relu(a1 @ w2 + b2, negative_slope=0.1)


def reference_forward_bf16(h_node, w1, b1, w2, b2):
    """Pure-JAX reference with the same bf16-input / f32-accumulate recipe as the kernel."""
    bf16 = jnp.bfloat16
    z1 = jnp.dot(h_node.astype(bf16), w1.astype(bf16),
                 preferred_element_type=jnp.float32) + b1
    a1 = jnp.where(z1 > 0, z1, 0.1 * z1)
    z2 = jnp.dot(a1.astype(bf16), w2.astype(bf16),
                 preferred_element_type=jnp.float32) + b2
    return jnp.where(z2 > 0, z2, 0.1 * z2)


if __name__ == "__main__":
    # Small shapes consistent with the module: num_layer=5, emb_dim=64, JK='concat'.
    num_layer = 5
    emb_dim = 64
    num_tasks = 8
    num_nodes = 600                    # deliberately ragged (not a tile multiple)
    d_in = (num_layer + 1) * emb_dim   # 384
    hidden = 512                       # fc1 output size fixed by the module

    key = jax.random.PRNGKey(0)
    k_h, k_fc1, k_fc2 = jax.random.split(key, 3)

    # Stand-in for gnn_node(batched_data) output (see TODO(synk) above).
    h_node = jax.random.normal(k_h, (num_nodes, d_in), jnp.float32)

    w1, b1 = _linear_init(k_fc1, d_in, hidden)
    w2, b2 = _linear_init(k_fc2, hidden, num_tasks)

    fwd = jax.jit(functools.partial(gnn_head_forward, tile_n=512))
    predict = jax.block_until_ready(fwd(h_node, w1, b1, w2, b2))

    assert predict.shape == (num_nodes, num_tasks)

    # Exact-recipe check (bf16 inputs, f32 accumulation): should match tightly.
    ref_bf16 = reference_forward_bf16(h_node, w1, b1, w2, b2)
    assert jnp.allclose(predict, ref_bf16, atol=1e-2, rtol=1e-2), "mismatch vs bf16 reference"

    # Module-semantics check against the full-f32 reference (bf16 rounding tolerance).
    ref_f32 = reference_forward_f32(h_node, w1, b1, w2, b2)
    assert jnp.allclose(predict, ref_f32, atol=5e-2, rtol=5e-2), "mismatch vs f32 reference"

    print("KERNEL_OK")
</pallas_src>

<mosaic_0001>
module attributes {stable_mosaic.version = 11 : i64} {
  func.func @_mlp_head_kernel(%arg0: i32, %arg1: memref<512x384xbf16, #tpu.memory_space<vmem>>, %arg2: memref<384x512xbf16, #tpu.memory_space<vmem>>, %arg3: memref<1x512xf32, #tpu.memory_space<vmem>>, %arg4: memref<512x128xbf16, #tpu.memory_space<vmem>>, %arg5: memref<1x128xf32, #tpu.memory_space<vmem>>, %arg6: memref<512x128xf32, #tpu.memory_space<vmem>>) attributes {dimension_semantics = [#tpu.dimension_semantics<parallel>], iteration_bounds = array<i64: 2>, scalar_prefetch = 0 : i64, scratch_operands = 0 : i64, tpu.core_type = #tpu.core_type<tc>, window_params = [{transform_indices = @transform_0, window_bounds = array<i64: 512, 384>}, {pipeline_mode = #tpu.pipeline_mode<synchronous>, transform_indices = @transform_1, window_bounds = array<i64: 384, 512>}, {pipeline_mode = #tpu.pipeline_mode<synchronous>, transform_indices = @transform_2, window_bounds = array<i64: 1, 512>}, {pipeline_mode = #tpu.pipeline_mode<synchronous>, transform_indices = @transform_3, window_bounds = array<i64: 512, 128>}, {pipeline_mode = #tpu.pipeline_mode<synchronous>, transform_indices = @transform_4, window_bounds = array<i64: 1, 128>}, {transform_indices = @transform_5, window_bounds = array<i64: 512, 128>}]} {
    %c0 = arith.constant 0 : index
    %c0_0 = arith.constant 0 : index
    %0 = vector.load %arg1[%c0, %c0_0] : memref<512x384xbf16, #tpu.memory_space<vmem>>, vector<512x384xbf16>
    %c0_1 = arith.constant 0 : index
    %c0_2 = arith.constant 0 : index
    %1 = vector.load %arg2[%c0_1, %c0_2] : memref<384x512xbf16, #tpu.memory_space<vmem>>, vector<384x512xbf16>
    %cst = arith.constant dense<0.000000e+00> : vector<512x512xf32>
    %2 = tpu.matmul %0, %1, %cst {dimension_numbers = #tpu.dot_dimension_numbers<[1], [0], [0], [1], [0, 0, 1, 1], [], []>} : vector<512x384xbf16>, vector<384x512xbf16>, vector<512x512xf32> -> vector<512x512xf32>
    %c0_3 = arith.constant 0 : index
    %c0_4 = arith.constant 0 : index
    %3 = vector.load %arg3[%c0_3, %c0_4] : memref<1x512xf32, #tpu.memory_space<vmem>>, vector<1x512xf32>
    %4 = vector.broadcast %3 : vector<1x512xf32> to vector<512x512xf32>
    %5 = arith.addf %2, %4 : vector<512x512xf32>
    %cst_5 = arith.constant 0.000000e+00 : f32
    %6 = vector.broadcast %cst_5 : f32 to vector<512x512xf32>
    %7 = arith.cmpf ogt, %5, %6 : vector<512x512xf32>
    %cst_6 = arith.constant 1.000000e-01 : f32
    %8 = vector.broadcast %cst_6 : f32 to vector<512x512xf32>
    %9 = arith.mulf %8, %5 : vector<512x512xf32>
    %10 = arith.select %7, %5, %9 : vector<512x512xi1>, vector<512x512xf32>
    %11 = arith.truncf %10 : vector<512x512xf32> to vector<512x512xbf16>
    %c0_7 = arith.constant 0 : index
    %c0_8 = arith.constant 0 : index
    %12 = vector.load %arg4[%c0_7, %c0_8] : memref<512x128xbf16, #tpu.memory_space<vmem>>, vector<512x128xbf16>
    %cst_9 = arith.constant dense<0.000000e+00> : vector<512x128xf32>
    %13 = tpu.matmul %11, %12, %cst_9 {dimension_numbers = #tpu.dot_dimension_numbers<[1], [0], [0], [1], [0, 0, 1, 1], [], []>} : vector<512x512xbf16>, vector<512x128xbf16>, vector<512x128xf32> -> vector<512x128xf32>
    %c0_10 = arith.constant 0 : index
    %c0_11 = arith.constant 0 : index
    %14 = vector.load %arg5[%c0_10, %c0_11] : memref<1x128xf32, #tpu.memory_space<vmem>>, vector<1x128xf32>
    %15 = vector.broadcast %14 : vector<1x128xf32> to vector<512x128xf32>
    %16 = arith.addf %13, %15 : vector<512x128xf32>
    %cst_12 = arith.constant 0.000000e+00 : f32
    %17 = vector.broadcast %cst_12 : f32 to vector<512x128xf32>
    %18 = arith.cmpf ogt, %16, %17 : vector<512x128xf32>
    %cst_13 = arith.constant 1.000000e-01 : f32
    %19 = vector.broadcast %cst_13 : f32 to vector<512x128xf32>
    %20 = arith.mulf %19, %16 : vector<512x128xf32>
    %21 = arith.select %18, %16, %20 : vector<512x128xi1>, vector<512x128xf32>
    %c0_14 = arith.constant 0 : index
    %c0_15 = arith.constant 0 : index
    %22 = vector.load %arg6[%c0_14, %c0_15] : memref<512x128xf32, #tpu.memory_space<vmem>>, vector<512x128xf32>
    tpu.vector_store %arg6[%c0_14, %c0_15], %21 {strides = array<i32>} : memref<512x128xf32, #tpu.memory_space<vmem>>, vector<512x128xf32>,
    return
  }
  func.func @transform_0(%arg0: i32) -> (i32, i32) {
    %c0_i32 = arith.constant 0 : i32
    %c0_i32_0 = arith.constant 0 : i32
    return %arg0, %c0_i32 : i32, i32
  }
  func.func @transform_1(%arg0: i32) -> (i32, i32) {
    %c0_i32 = arith.constant 0 : i32
    %c0_i32_0 = arith.constant 0 : i32
    %c0_i32_1 = arith.constant 0 : i32
    return %c0_i32, %c0_i32_0 : i32, i32
  }
  func.func @transform_2(%arg0: i32) -> (i32, i32) {
    %c0_i32 = arith.constant 0 : i32
    %c0_i32_0 = arith.constant 0 : i32
    %c0_i32_1 = arith.constant 0 : i32
    return %c0_i32, %c0_i32_0 : i32, i32
  }
  func.func @transform_3(%arg0: i32) -> (i32, i32) {
    %c0_i32 = arith.constant 0 : i32
    %c0_i32_0 = arith.constant 0 : i32
    %c0_i32_1 = arith.constant 0 : i32
    return %c0_i32, %c0_i32_0 : i32, i32
  }
  func.func @transform_4(%arg0: i32) -> (i32, i32) {
    %c0_i32 = arith.constant 0 : i32
    %c0_i32_0 = arith.constant 0 : i32
    %c0_i32_1 = arith.constant 0 : i32
    return %c0_i32, %c0_i32_0 : i32, i32
  }
  func.func @transform_5(%arg0: i32) -> (i32, i32) {
    %c0_i32 = arith.constant 0 : i32
    %c0_i32_0 = arith.constant 0 : i32
    return %arg0, %c0_i32 : i32, i32
  }
}

</mosaic_0001>

<llo_original>
// kernel: gnn_head_forward.1
$region0: #{gnn_head_forward.1}
  #allocation0 [shape = 'u32[]', space=smem, size = 0x4, offset = 0x4, fixed_abs, tag = 'smem constant byte address 0x4 - core index']
  #allocation1 [shape = 'u32[72,128]{1,0:T(1,128)}', space=vmem, size = 0x9000, scoped, tag = 'internal scratch']
  %s0 = inlined_call_operand.vmem [shape: bf16[1024,384], index: 0, kind: input, shape index: {}]
  %s1 = inlined_call_operand.vmem [shape: bf16[384,512], index: 1, kind: input, shape index: {}]
  %s2 = inlined_call_operand.vmem [shape: f32[1,512], index: 2, kind: input, shape index: {}]
  %s3 = inlined_call_operand.vmem [shape: bf16[512,128], index: 3, kind: input, shape index: {}]
  %s4 = inlined_call_operand.vmem [shape: f32[1,128], index: 4, kind: input, shape index: {}]
  %s5 = inlined_call_operand.vmem [shape: f32[1024,128], index: 5, kind: output, shape index: {}]
  %s6 = sld [smem:[#allocation0]]
  $region53: #{gnn_head_forward.1} parent=0
    _
  %s8 = ssub.s32 1, %s6
  %s9 = scalar_select 0, %s8, %s6
  loop: start=0, step=1, limit=4
  $region2: #{gnn_head_forward.1} parent=0 // loop_pre_header
    _
  $region3: #{gnn_head_forward.1} parent=0 // loop_header
    %s11 = sphi 0, %s15
    %p12 = scmp.ge.s32.totalorder %s11, 4
    %s21 = sphi 0, %s23
    %s24 = sphi 0, %s21
    %s25 = sphi 0, %s24
    %s41 = sphi 0, %s25
    %s45 = sphi 0, %s45
    %s47 = sphi 0, %s45
    %s48 = sphi 0, %s47
    %s62 = sphi 0, %s48
    %s66 = sphi 0, %s66
    %s68 = sphi 0, %s66
    %s69 = sphi 0, %s68
    %s83 = sphi 0, %s69
    %s87 = sphi 0, %s87
    %s89 = sphi 0, %s87
    %s90 = sphi 0, %s89
    %s104 = sphi 0, %s90
    %s108 = sphi 0, %s108
    %s110 = sphi 0, %s108
    %s111 = sphi 0, %s110
    %s125 = sphi 0, %s111
    %s131 = sphi 0, %s133
    %s134 = sphi 0, %s131
    %s135 = sphi 0, %s134
    %s151 = sphi 0, %s135
  $region4: #{gnn_head_forward.1} parent=0 // loop_header_branch
    %14 = sbr.rel (%p12) target = $region8
  $region5: #{gnn_head_forward.1} parent=0 // loop_body
    %s16 = ssub.s32 %s11, 1
    %s17 = ssub.s32 %s11, 2
    %s18 = sadd.s32 %s11, 1
    %s19 = ssub.s32 %s11, %s18
    %p20 = scmp.eq.s32.totalorder %s19, 0
    %s22 = sadd.s32 %s21, 1
    %s23 = scalar_select %p20, %s21, %s22
    %p26 = pneg %p20
    %p27 = scmp.eq.s32.totalorder %s11, 1
    %p28 = por %p26, %p27
    %p29 = scmp.ne.s32.totalorder %s21, %s24
    %p30 = scmp.eq.s32.totalorder %s11, 0
    %p31 = por %p29, %p30
    %p32 = scmp.ne.s32.totalorder %s21, %s24
    %p33 = scmp.eq.s32.totalorder %s16, 1
    %p34 = por %p32, %p33
    %p35 = scmp.ne.s32.totalorder %s24, %s25
    %p36 = scmp.eq.s32.totalorder %s16, 0
    %p37 = por %p35, %p36
    %p38 = scmp.ne.s32.totalorder %s24, %s25
    %p39 = scmp.eq.s32.totalorder %s17, 1
    %p40 = por %p38, %p39
    %p42 = scmp.ne.s32.totalorder %s25, %s41
    %p43 = scmp.eq.s32.totalorder %s17, 0
    %p44 = por %p42, %p43
    %s46 = sadd.s32 %s45, 1
    %p49 = scmp.eq.s32.totalorder %s11, 1
    %p50 = scmp.ne.s32.totalorder %s45, %s47
    %p51 = scmp.eq.s32.totalorder %s11, 0
    %p52 = por %p50, %p51
    %p53 = scmp.ne.s32.totalorder %s45, %s47
    %p54 = scmp.eq.s32.totalorder %s16, 1
    %p55 = por %p53, %p54
    %p56 = scmp.ne.s32.totalorder %s47, %s48
    %p57 = scmp.eq.s32.totalorder %s16, 0
    %p58 = por %p56, %p57
    %p59 = scmp.ne.s32.totalorder %s47, %s48
    %p60 = scmp.eq.s32.totalorder %s17, 1
    %p61 = por %p59, %p60
    %p63 = scmp.ne.s32.totalorder %s48, %s62
    %p64 = scmp.eq.s32.totalorder %s17, 0
    %p65 = por %p63, %p64
    %s67 = sadd.s32 %s66, 1
    %p70 = scmp.eq.s32.totalorder %s11, 1
    %p71 = scmp.ne.s32.totalorder %s66, %s68
    %p72 = scmp.eq.s32.totalorder %s11, 0
    %p73 = por %p71, %p72
    %p74 = scmp.ne.s32.totalorder %s66, %s68
    %p75 = scmp.eq.s32.totalorder %s16, 1
    %p76 = por %p74, %p75
    %p77 = scmp.ne.s32.totalorder %s68, %s69
    %p78 = scmp.eq.s32.totalorder %s16, 0
    %p79 = por %p77, %p78
    %p80 = scmp.ne.s32.totalorder %s68, %s69
    %p81 = scmp.eq.s32.totalorder %s17, 1
    %p82 = por %p80, %p81
    %p84 = scmp.ne.s32.totalorder %s69, %s83
    %p85 = scmp.eq.s32.totalorder %s17, 0
    %p86 = por %p84, %p85
    %s88 = sadd.s32 %s87, 1
    %p91 = scmp.eq.s32.totalorder %s11, 1
    %p92 = scmp.ne.s32.totalorder %s87, %s89
    %p93 = scmp.eq.s32.totalorder %s11, 0
    %p94 = por %p92, %p93
    %p95 = scmp.ne.s32.totalorder %s87, %s89
    %p96 = scmp.eq.s32.totalorder %s16, 1
    %p97 = por %p95, %p96
    %p98 = scmp.ne.s32.totalorder %s89, %s90
    %p99 = scmp.eq.s32.totalorder %s16, 0
    %p100 = por %p98, %p99
    %p101 = scmp.ne.s32.totalorder %s89, %s90
    %p102 = scmp.eq.s32.totalorder %s17, 1
    %p103 = por %p101, %p102
    %p105 = scmp.ne.s32.totalorder %s90, %s104
    %p106 = scmp.eq.s32.totalorder %s17, 0
    %p107 = por %p105, %p106
    %s109 = sadd.s32 %s108, 1
    %p112 = scmp.eq.s32.totalorder %s11, 1
    %p113 = scmp.ne.s32.totalorder %s108, %s110
    %p114 = scmp.eq.s32.totalorder %s11, 0
    %p115 = por %p113, %p114
    %p116 = scmp.ne.s32.totalorder %s108, %s110
    %p117 = scmp.eq.s32.totalorder %s16, 1
    %p118 = por %p116, %p117
    %p119 = scmp.ne.s32.totalorder %s110, %s111
    %p120 = scmp.eq.s32.totalorder %s16, 0
    %p121 = por %p119, %p120
    %p122 = scmp.ne.s32.totalorder %s110, %s111
    %p123 = scmp.eq.s32.totalorder %s17, 1
    %p124 = por %p122, %p123
    %p126 = scmp.ne.s32.totalorder %s111, %s125
    %p127 = scmp.eq.s32.totalorder %s17, 0
    %p128 = por %p126, %p127
    %s129 = ssub.s32 %s11, %s18
    %p130 = scmp.eq.s32.totalorder %s129, 0
    %s132 = sadd.s32 %s131, 1
    %s133 = scalar_select %p130, %s131, %s132
    %p136 = pneg %p130
    %p137 = scmp.eq.s32.totalorder %s11, 1
    %p138 = por %p136, %p137
    %p139 = scmp.ne.s32.totalorder %s131, %s134
    %p140 = scmp.eq.s32.totalorder %s11, 0
    %p141 = por %p139, %p140
    %p142 = scmp.ne.s32.totalorder %s131, %s134
    %p143 = scmp.eq.s32.totalorder %s16, 1
    %p144 = por %p142, %p143
    %p145 = scmp.ne.s32.totalorder %s134, %s135
    %p146 = scmp.eq.s32.totalorder %s16, 0
    %p147 = por %p145, %p146
    %p148 = scmp.ne.s32.totalorder %s134, %s135
    %p149 = scmp.eq.s32.totalorder %s17, 1
    %p150 = por %p148, %p149
    %p152 = scmp.ne.s32.totalorder %s135, %s151
    %p153 = scmp.eq.s32.totalorder %s17, 0
    %p154 = por %p152, %p153
    %p155 = scmp.le.s32.totalorder 1, %s11
    %p156 = scmp.lt.s32.totalorder %s11, 3
    %p157 = pnand %p155, %p156
    %p158 = pneg %p157
    // Predicated region
    $region9: #{gnn_head_forward.1} parent=5 // pred_check
      _
    $region10: #{gnn_head_forward.1} parent=5 // pred_check_branch
      %160 = sbr.rel (%p157) target = $region12
    $region11: #{gnn_head_forward.1} parent=5 // pred_region
      %s161 = ssub.s32 %s11, 1
      // Predicated region
      $region13: #{gnn_head_forward.1} parent=11 // pred_check
        %p162 = pneg %p58
      $region14: #{gnn_head_forward.1} parent=11 // pred_check_branch
        %164 = sbr.rel (%p162) target = $region16
      $region15: #{gnn_head_forward.1} parent=11 // pred_region
        _
      $region16: #{gnn_head_forward.1} parent=11 // pred_fallthru
        _
      // Predicated region
      $region17: #{gnn_head_forward.1} parent=11 // pred_check
        %p165 = pneg %p79
      $region18: #{gnn_head_forward.1} parent=11 // pred_check_branch
        %167 = sbr.rel (%p165) target = $region20
      $region19: #{gnn_head_forward.1} parent=11 // pred_region
        _
      $region20: #{gnn_head_forward.1} parent=11 // pred_fallthru
        _
      // Predicated region
      $region21: #{gnn_head_forward.1} parent=11 // pred_check
        %p168 = pneg %p100
      $region22: #{gnn_head_forward.1} parent=11 // pred_check_branch
        %170 = sbr.rel (%p168) target = $region24
      $region23: #{gnn_head_forward.1} parent=11 // pred_region
        _
      $region24: #{gnn_head_forward.1} parent=11 // pred_fallthru
        _
      // Predicated region
      $region25: #{gnn_head_forward.1} parent=11 // pred_check
        %p171 = pneg %p121
      $region26: #{gnn_head_forward.1} parent=11 // pred_check_branch
        %173 = sbr.rel (%p171) target = $region28
      $region27: #{gnn_head_forward.1} parent=11 // pred_region
        _
      $region28: #{gnn_head_forward.1} parent=11 // pred_fallthru
        _
    $region12: #{gnn_head_forward.1} parent=5 // pred_fallthru
      _
    %p174 = scmp.lt.s32.totalorder %s11, 2
    // Predicated region
    $region29: #{gnn_head_forward.1} parent=5 // pred_check
      %p175 = pneg %p174
    $region30: #{gnn_head_forward.1} parent=5 // pred_check_branch
      %177 = sbr.rel (%p175) target = $region32
    $region31: #{gnn_head_forward.1} parent=5 // pred_region
      // Predicated region
      $region33: #{gnn_head_forward.1} parent=31 // pred_check
        %p178 = pneg %p31
      $region34: #{gnn_head_forward.1} parent=31 // pred_check_branch
        %180 = sbr.rel (%p178) target = $region36
      $region35: #{gnn_head_forward.1} parent=31 // pred_region
        %s181 = smul.u32 64, %s11
        %p182 = scmp.lt.s32.totalorder %s181, 127
        %s183 = scalar_select %p182, %s181, 127
        %s184 = smul.addr %s183, 3
        %s185 = smul.addr %s184, 4
        %s186 = scalar_lea.vmem %s0, %s185
        %s187 = smul.u32 64, %s11
      $region36: #{gnn_head_forward.1} parent=31 // pred_fallthru
        _
    $region32: #{gnn_head_forward.1} parent=5 // pred_fallthru
      _
    %p188 = scmp.le.s32.totalorder 1, %s11
    %p189 = scmp.lt.s32.totalorder %s11, 3
    %p190 = pnand %p188, %p189
    %p191 = pneg %p190
    // Predicated region
    $region37: #{gnn_head_forward.1} parent=5 // pred_check
      _
    $region38: #{gnn_head_forward.1} parent=5 // pred_check_branch
      %193 = sbr.rel (%p190) target = $region40
    $region39: #{gnn_head_forward.1} parent=5 // pred_region
      %s194 = ssub.s32 %s11, 1
      %s195 = smul.u32 64, %s16
      %p196 = scmp.lt.s32.totalorder %s195, 127
      %s197 = scalar_select %p196, %s195, 127
      %s198 = smul.addr %s197, 3
      %s199 = smul.addr %s198, 4
      %s200 = scalar_lea.vmem %s0, %s199
      %p201 = pneg %p37
      %p202 = pneg %p34
      %p203 = pneg %p58
      %p204 = pneg %p55
      %p205 = pneg %p79
      %p206 = pneg %p76
      %p207 = pneg %p100
      %p208 = pneg %p97
      %p209 = pneg %p121
      %p210 = pneg %p118
      %p211 = pneg %p147
      %p212 = pneg %p144
      %s213 = smul.u32 64, %s16
      %p214 = scmp.lt.s32.totalorder %s213, 127
      %s215 = scalar_select %p214, %s213, 127
      %s216 = smul.addr %s215, 8
      %s217 = scalar_lea.vmem %s5, %s216
      %s218 = smul.u32 64, %s16
      %p219 = scmp.lt.s32.totalorder %s218, 127
      %s220 = scalar_select %p219, %s218, 127
      %s221 = smul.addr %s220, 3
      %s222 = smul.addr %s221, 4
      %s223 = scalar_lea.vmem %s0, %s222
      %s224 = smul.u32 64, %s16
      %s225 = smul.u32 64, %s16
      %p226 = scmp.lt.s32.totalorder %s225, 127
      %s227 = scalar_select %p226, %s225, 127
      %s228 = smul.addr %s227, 8
      %s229 = scalar_lea.vmem %s5, %s228
      %s230 = smul.u32 64, %s16
      %v231 = vld [vmem:[%s223] sm:$0xff]
      %v232 = vld [vmem:[%s223 + $0x8] sm:$0xf]
      %v233 = vld [vmem:[%s223 + $0xc] sm:$0xff]
      %v234 = vld [vmem:[%s223 + $0x14] sm:$0xf]
      %v235 = vld [vmem:[%s223 + $0x18] sm:$0xff]
      %v236 = vld [vmem:[%s223 + $0x20] sm:$0xf]
      %v237 = vld [vmem:[%s223 + $0x24] sm:$0xff]
      %v238 = vld [vmem:[%s223 + $0x2c] sm:$0xf]
      %v239 = vld [vmem:[%s223 + $0x30] sm:$0xff]
      %v240 = vld [vmem:[%s223 + $0x38] sm:$0xf]
      %v241 = vld [vmem:[%s223 + $0x3c] sm:$0xff]
      %v242 = vld [vmem:[%s223 + $0x44] sm:$0xf]
      %v243 = vld [vmem:[%s223 + $0x48] sm:$0xff]
      %v244 = vld [vmem:[%s223 + $0x50] sm:$0xf]
      %v245 = vld [vmem:[%s223 + $0x54] sm:$0xff]
      %v246 = vld [vmem:[%s223 + $0x5c] sm:$0xf]
      %v247 = vld [vmem:[%s223 + $0x60] sm:$0xff]
      %v248 = vld [vmem:[%s223 + $0x68] sm:$0xf]
      %v249 = vld [vmem:[%s223 + $0x6c] sm:$0xff]
      %v250 = vld [vmem:[%s223 + $0x74] sm:$0xf]
      %v251 = vld [vmem:[%s223 + $0x78] sm:$0xff]
      %v252 = vld [vmem:[%s223 + $0x80] sm:$0xf]
      %v253 = vld [vmem:[%s223 + $0x84] sm:$0xff]
      %v254 = vld [vmem:[%s223 + $0x8c] sm:$0xf]
      %v255 = vld [vmem:[%s223 + $0x90] sm:$0xff]
      %v256 = vld [vmem:[%s223 + $0x98] sm:$0xf]
      %v257 = vld [vmem:[%s223 + $0x9c] sm:$0xff]
      %v258 = vld [vmem:[%s223 + $0xa4] sm:$0xf]
      %v259 = vld [vmem:[%s223 + $0xa8] sm:$0xff]
      %v260 = vld [vmem:[%s223 + $0xb0] sm:$0xf]
      %v261 = vld [vmem:[%s223 + $0xb4] sm:$0xff]
      %v262 = vld [vmem:[%s223 + $0xbc] sm:$0xf]
      %v263 = vld [vmem:[%s223 + $0xc0] sm:$0xff]
      %v264 = vld [vmem:[%s223 + $0xc8] sm:$0xf]
      %v265 = vld [vmem:[%s223 + $0xcc] sm:$0xff]
      %v266 = vld [vmem:[%s223 + $0xd4] sm:$0xf]
      %v267 = vld [vmem:[%s223 + $0xd8] sm:$0xff]
      %v268 = vld [vmem:[%s223 + $0xe0] sm:$0xf]
      %v269 = vld [vmem:[%s223 + $0xe4] sm:$0xff]
      %v270 = vld [vmem:[%s223 + $0xec] sm:$0xf]
      %v271 = vld [vmem:[%s223 + $0xf0] sm:$0xff]
      %v272 = vld [vmem:[%s223 + $0xf8] sm:$0xf]
      %v273 = vld [vmem:[%s223 + $0xfc] sm:$0xff]
      %v274 = vld [vmem:[%s223 + $0x104] sm:$0xf]
      %v275 = vld [vmem:[%s223 + $0x108] sm:$0xff]
      %v276 = vld [vmem:[%s223 + $0x110] sm:$0xf]
      %v277 = vld [vmem:[%s223 + $0x114] sm:$0xff]
      %v278 = vld [vmem:[%s223 + $0x11c] sm:$0xf]
      %v279 = vld [vmem:[%s223 + $0x120] sm:$0xff]
      %v280 = vld [vmem:[%s223 + $0x128] sm:$0xf]
      %v281 = vld [vmem:[%s223 + $0x12c] sm:$0xff]
      %v282 = vld [vmem:[%s223 + $0x134] sm:$0xf]
      %v283 = vld [vmem:[%s223 + $0x138] sm:$0xff]
      %v284 = vld [vmem:[%s223 + $0x140] sm:$0xf]
      %v285 = vld [vmem:[%s223 + $0x144] sm:$0xff]
      %v286 = vld [vmem:[%s223 + $0x14c] sm:$0xf]
      %v287 = vld [vmem:[%s223 + $0x150] sm:$0xff]
      %v288 = vld [vmem:[%s223 + $0x158] sm:$0xf]
      %v289 = vld [vmem:[%s223 + $0x15c] sm:$0xff]
      %v290 = vld [vmem:[%s223 + $0x164] sm:$0xf]
      %v291 = vld [vmem:[%s223 + $0x168] sm:$0xff]
      %v292 = vld [vmem:[%s223 + $0x170] sm:$0xf]
      %v293 = vld [vmem:[%s223 + $0x174] sm:$0xff]
      %v294 = vld [vmem:[%s223 + $0x17c] sm:$0xf]
      %v295 = vld [vmem:[%s223 + $0x180] sm:$0xff]
      %v296 = vld [vmem:[%s223 + $0x188] sm:$0xf]
      %v297 = vld [vmem:[%s223 + $0x18c] sm:$0xff]
      %v298 = vld [vmem:[%s223 + $0x194] sm:$0xf]
      %v299 = vld [vmem:[%s223 + $0x198] sm:$0xff]
      %v300 = vld [vmem:[%s223 + $0x1a0] sm:$0xf]
      %v301 = vld [vmem:[%s223 + $0x1a4] sm:$0xff]
      %v302 = vld [vmem:[%s223 + $0x1ac] sm:$0xf]
      %v303 = vld [vmem:[%s223 + $0x1b0] sm:$0xff]
      %v304 = vld [vmem:[%s223 + $0x1b8] sm:$0xf]
      %v305 = vld [vmem:[%s223 + $0x1bc] sm:$0xff]
      %v306 = vld [vmem:[%s223 + $0x1c4] sm:$0xf]
      %v307 = vld [vmem:[%s223 + $0x1c8] sm:$0xff]
      %v308 = vld [vmem:[%s223 + $0x1d0] sm:$0xf]
      %v309 = vld [vmem:[%s223 + $0x1d4] sm:$0xff]
      %v310 = vld [vmem:[%s223 + $0x1dc] sm:$0xf]
      %v311 = vld [vmem:[%s223 + $0x1e0] sm:$0xff]
      %v312 = vld [vmem:[%s223 + $0x1e8] sm:$0xf]
      %v313 = vld [vmem:[%s223 + $0x1ec] sm:$0xff]
      %v314 = vld [vmem:[%s223 + $0x1f4] sm:$0xf]
      %v315 = vld [vmem:[%s223 + $0x1f8] sm:$0xff]
      %v316 = vld [vmem:[%s223 + $0x200] sm:$0xf]
      %v317 = vld [vmem:[%s223 + $0x204] sm:$0xff]
      %v318 = vld [vmem:[%s223 + $0x20c] sm:$0xf]
      %v319 = vld [vmem:[%s223 + $0x210] sm:$0xff]
      %v320 = vld [vmem:[%s223 + $0x218] sm:$0xf]
      %v321 = vld [vmem:[%s223 + $0x21c] sm:$0xff]
      %v322 = vld [vmem:[%s223 + $0x224] sm:$0xf]
      %v323 = vld [vmem:[%s223 + $0x228] sm:$0xff]
      %v324 = vld [vmem:[%s223 + $0x230] sm:$0xf]
      %v325 = vld [vmem:[%s223 + $0x234] sm:$0xff]
      %v326 = vld [vmem:[%s223 + $0x23c] sm:$0xf]
      %v327 = vld [vmem:[%s223 + $0x240] sm:$0xff]
      %v328 = vld [vmem:[%s223 + $0x248] sm:$0xf]
      %v329 = vld [vmem:[%s223 + $0x24c] sm:$0xff]
      %v330 = vld [vmem:[%s223 + $0x254] sm:$0xf]
      %v331 = vld [vmem:[%s223 + $0x258] sm:$0xff]
      %v332 = vld [vmem:[%s223 + $0x260] sm:$0xf]
      %v333 = vld [vmem:[%s223 + $0x264] sm:$0xff]
      %v334 = vld [vmem:[%s223 + $0x26c] sm:$0xf]
      %v335 = vld [vmem:[%s223 + $0x270] sm:$0xff]
      %v336 = vld [vmem:[%s223 + $0x278] sm:$0xf]
      %v337 = vld [vmem:[%s223 + $0x27c] sm:$0xff]
      %v338 = vld [vmem:[%s223 + $0x284] sm:$0xf]
      %v339 = vld [vmem:[%s223 + $0x288] sm:$0xff]
      %v340 = vld [vmem:[%s223 + $0x290] sm:$0xf]
      %v341 = vld [vmem:[%s223 + $0x294] sm:$0xff]
      %v342 = vld [vmem:[%s223 + $0x29c] sm:$0xf]
      %v343 = vld [vmem:[%s223 + $0x2a0] sm:$0xff]
      %v344 = vld [vmem:[%s223 + $0x2a8] sm:$0xf]
      %v345 = vld [vmem:[%s223 + $0x2ac] sm:$0xff]
      %v346 = vld [vmem:[%s223 + $0x2b4] sm:$0xf]
      %v347 = vld [vmem:[%s223 + $0x2b8] sm:$0xff]
      %v348 = vld [vmem:[%s223 + $0x2c0] sm:$0xf]
      %v349 = vld [vmem:[%s223 + $0x2c4] sm:$0xff]
      %v350 = vld [vmem:[%s223 + $0x2cc] sm:$0xf]
      %v351 = vld [vmem:[%s223 + $0x2d0] sm:$0xff]
      %v352 = vld [vmem:[%s223 + $0x2d8] sm:$0xf]
      %v353 = vld [vmem:[%s223 + $0x2dc] sm:$0xff]
      %v354 = vld [vmem:[%s223 + $0x2e4] sm:$0xf]
      %v355 = vld [vmem:[%s223 + $0x2e8] sm:$0xff]
      %v356 = vld [vmem:[%s223 + $0x2f0] sm:$0xf]
      %v357 = vld [vmem:[%s223 + $0x2f4] sm:$0xff]
      %v358 = vld [vmem:[%s223 + $0x2fc] sm:$0xf]
      %v359 = vld [vmem:[%s1] sm:$0xff]
      %v360 = vld [vmem:[%s1 + $0x8] sm:$0xff]
      %v361 = vld [vmem:[%s1 + $0x10] sm:$0xff]
      %v362 = vld [vmem:[%s1 + $0x18] sm:$0xff]
      %v363 = vld [vmem:[%s1 + $0x20] sm:$0xff]
      %v364 = vld [vmem:[%s1 + $0x28] sm:$0xff]
      %v365 = vld [vmem:[%s1 + $0x30] sm:$0xff]
      %v366 = vld [vmem:[%s1 + $0x38] sm:$0xff]
      %v367 = vld [vmem:[%s1 + $0x40] sm:$0xff]
      %v368 = vld [vmem:[%s1 + $0x48] sm:$0xff]
      %v369 = vld [vmem:[%s1 + $0x50] sm:$0xff]
      %v370 = vld [vmem:[%s1 + $0x58] sm:$0xff]
      %v371 = vld [vmem:[%s1 + $0x60] sm:$0xff]
      %v372 = vld [vmem:[%s1 + $0x68] sm:$0xff]
      %v373 = vld [vmem:[%s1 + $0x70] sm:$0xff]
      %v374 = vld [vmem:[%s1 + $0x78] sm:$0xff]
      %v375 = vld [vmem:[%s1 + $0x80] sm:$0xff]
      %v376 = vld [vmem:[%s1 + $0x88] sm:$0xff]
      %v377 = vld [vmem:[%s1 + $0x90] sm:$0xff]
      %v378 = vld [vmem:[%s1 + $0x98] sm:$0xff]
      %v379 = vld [vmem:[%s1 + $0xa0] sm:$0xff]
      %v380 = vld [vmem:[%s1 + $0xa8] sm:$0xff]
      %v381 = vld [vmem:[%s1 + $0xb0] sm:$0xff]
      %v382 = vld [vmem:[%s1 + $0xb8] sm:$0xff]
      %v383 = vld [vmem:[%s1 + $0xc0] sm:$0xff]
      %v384 = vld [vmem:[%s1 + $0xc8] sm:$0xff]
      %v385 = vld [vmem:[%s1 + $0xd0] sm:$0xff]
      %v386 = vld [vmem:[%s1 + $0xd8] sm:$0xff]
      %v387 = vld [vmem:[%s1 + $0xe0] sm:$0xff]
      %v388 = vld [vmem:[%s1 + $0xe8] sm:$0xff]
      %v389 = vld [vmem:[%s1 + $0xf0] sm:$0xff]
      %v390 = vld [vmem:[%s1 + $0xf8] sm:$0xff]
      %v391 = vld [vmem:[%s1 + $0x100] sm:$0xff]
      %v392 = vld [vmem:[%s1 + $0x108] sm:$0xff]
      %v393 = vld [vmem:[%s1 + $0x110] sm:$0xff]
      %v394 = vld [vmem:[%s1 + $0x118] sm:$0xff]
      %v395 = vld [vmem:[%s1 + $0x120] sm:$0xff]
      %v396 = vld [vmem:[%s1 + $0x128] sm:$0xff]
      %v397 = vld [vmem:[%s1 + $0x130] sm:$0xff]
      %v398 = vld [vmem:[%s1 + $0x138] sm:$0xff]
      %v399 = vld [vmem:[%s1 + $0x140] sm:$0xff]
      %v400 = vld [vmem:[%s1 + $0x148] sm:$0xff]
      %v401 = vld [vmem:[%s1 + $0x150] sm:$0xff]
      %v402 = vld [vmem:[%s1 + $0x158] sm:$0xff]
      %v403 = vld [vmem:[%s1 + $0x160] sm:$0xff]
      %v404 = vld [vmem:[%s1 + $0x168] sm:$0xff]
      %v405 = vld [vmem:[%s1 + $0x170] sm:$0xff]
      %v406 = vld [vmem:[%s1 + $0x178] sm:$0xff]
      %v407 = vld [vmem:[%s1 + $0x180] sm:$0xff]
      %v408 = vld [vmem:[%s1 + $0x188] sm:$0xff]
      %v409 = vld [vmem:[%s1 + $0x190] sm:$0xff]
      %v410 = vld [vmem:[%s1 + $0x198] sm:$0xff]
      %v411 = vld [vmem:[%s1 + $0x1a0] sm:$0xff]
      %v412 = vld [vmem:[%s1 + $0x1a8] sm:$0xff]
      %v413 = vld [vmem:[%s1 + $0x1b0] sm:$0xff]
      %v414 = vld [vmem:[%s1 + $0x1b8] sm:$0xff]
      %v415 = vld [vmem:[%s1 + $0x1c0] sm:$0xff]
      %v416 = vld [vmem:[%s1 + $0x1c8] sm:$0xff]
      %v417 = vld [vmem:[%s1 + $0x1d0] sm:$0xff]
      %v418 = vld [vmem:[%s1 + $0x1d8] sm:$0xff]
      %v419 = vld [vmem:[%s1 + $0x1e0] sm:$0xff]
      %v420 = vld [vmem:[%s1 + $0x1e8] sm:$0xff]
      %v421 = vld [vmem:[%s1 + $0x1f0] sm:$0xff]
      %v422 = vld [vmem:[%s1 + $0x1f8] sm:$0xff]
      %v423 = vld [vmem:[%s1 + $0x200] sm:$0xff]
      %v424 = vld [vmem:[%s1 + $0x208] sm:$0xff]
      %v425 = vld [vmem:[%s1 + $0x210] sm:$0xff]
      %v426 = vld [vmem:[%s1 + $0x218] sm:$0xff]
      %v427 = vld [vmem:[%s1 + $0x220] sm:$0xff]
      %v428 = vld [vmem:[%s1 + $0x228] sm:$0xff]
      %v429 = vld [vmem:[%s1 + $0x230] sm:$0xff]
      %v430 = vld [vmem:[%s1 + $0x238] sm:$0xff]
      %v431 = vld [vmem:[%s1 + $0x240] sm:$0xff]
      %v432 = vld [vmem:[%s1 + $0x248] sm:$0xff]
      %v433 = vld [vmem:[%s1 + $0x250] sm:$0xff]
      %v434 = vld [vmem:[%s1 + $0x258] sm:$0xff]
      %v435 = vld [vmem:[%s1 + $0x260] sm:$0xff]
      %v436 = vld [vmem:[%s1 + $0x268] sm:$0xff]
      %v437 = vld [vmem:[%s1 + $0x270] sm:$0xff]
      %v438 = vld [vmem:[%s1 + $0x278] sm:$0xff]
      %v439 = vld [vmem:[%s1 + $0x280] sm:$0xff]
      %v440 = vld [vmem:[%s1 + $0x288] sm:$0xff]
      %v441 = vld [vmem:[%s1 + $0x290] sm:$0xff]
      %v442 = vld [vmem:[%s1 + $0x298] sm:$0xff]
      %v443 = vld [vmem:[%s1 + $0x2a0] sm:$0xff]
      %v444 = vld [vmem:[%s1 + $0x2a8] sm:$0xff]
      %v445 = vld [vmem:[%s1 + $0x2b0] sm:$0xff]
      %v446 = vld [vmem:[%s1 + $0x2b8] sm:$0xff]
      %v447 = vld [vmem:[%s1 + $0x2c0] sm:$0xff]
      %v448 = vld [vmem:[%s1 + $0x2c8] sm:$0xff]
      %v449 = vld [vmem:[%s1 + $0x2d0] sm:$0xff]
      %v450 = vld [vmem:[%s1 + $0x2d8] sm:$0xff]
      %v451 = vld [vmem:[%s1 + $0x2e0] sm:$0xff]
      %v452 = vld [vmem:[%s1 + $0x2e8] sm:$0xff]
      %v453 = vld [vmem:[%s1 + $0x2f0] sm:$0xff]
      %v454 = vld [vmem:[%s1 + $0x2f8] sm:$0xff]
      %v455 = vld [vmem:[%s2] sm:$0xf]
      %v457 = vperm.slane %v455, 0
      %v458 = vperm.slane %v455, 1
      %v459 = vperm.slane %v455, 2
      %v460 = vperm.slane %v455, 3
      %v593 = vunpack.c.l.b16 %v231
      %v594 = vunpack.c.h.b16 %v231
      %v595 = vunpack.c.l.b16 %v232
      %v596 = vunpack.c.l.b16 %v233
      %v597 = vunpack.c.h.b16 %v233
      %v598 = vunpack.c.l.b16 %v234
      %v599 = vunpack.c.l.b16 %v235
      %v600 = vunpack.c.h.b16 %v235
      %v601 = vunpack.c.l.b16 %v236
      %v602 = vunpack.c.l.b16 %v237
      %v603 = vunpack.c.h.b16 %v237
      %v604 = vunpack.c.l.b16 %v238
      %v605 = vunpack.c.l.b16 %v239
      %v606 = vunpack.c.h.b16 %v239
      %v607 = vunpack.c.l.b16 %v240
      %v608 = vunpack.c.l.b16 %v241
      %v609 = vunpack.c.h.b16 %v241
      %v610 = vunpack.c.l.b16 %v242
      %v611 = vunpack.c.l.b16 %v243
      %v612 = vunpack.c.h.b16 %v243
      %v613 = vunpack.c.l.b16 %v244
      %v614 = vunpack.c.l.b16 %v245
      %v615 = vunpack.c.h.b16 %v245
      %v616 = vunpack.c.l.b16 %v246
      %v617 = vunpack.c.l.b16 %v247
      %v618 = vunpack.c.h.b16 %v247
      %v619 = vunpack.c.l.b16 %v248
      %v620 = vunpack.c.l.b16 %v249
      %v621 = vunpack.c.h.b16 %v249
      %v622 = vunpack.c.l.b16 %v250
      %v623 = vunpack.c.l.b16 %v251
      %v624 = vunpack.c.h.b16 %v251
      %v625 = vunpack.c.l.b16 %v252
      %v626 = vunpack.c.l.b16 %v253
      %v627 = vunpack.c.h.b16 %v253
      %v628 = vunpack.c.l.b16 %v254
      %v629 = vunpack.c.l.b16 %v255
      %v630 = vunpack.c.h.b16 %v255
      %v631 = vunpack.c.l.b16 %v256
      %v632 = vunpack.c.l.b16 %v257
      %v633 = vunpack.c.h.b16 %v257
      %v634 = vunpack.c.l.b16 %v258
      %v635 = vunpack.c.l.b16 %v259
      %v636 = vunpack.c.h.b16 %v259
      %v637 = vunpack.c.l.b16 %v260
      %v638 = vunpack.c.l.b16 %v261
      %v639 = vunpack.c.h.b16 %v261
      %v640 = vunpack.c.l.b16 %v262
      %v641 = vunpack.c.l.b16 %v263
      %v642 = vunpack.c.h.b16 %v263
      %v643 = vunpack.c.l.b16 %v264
      %v644 = vunpack.c.l.b16 %v265
      %v645 = vunpack.c.h.b16 %v265
      %v646 = vunpack.c.l.b16 %v266
      %v647 = vunpack.c.l.b16 %v267
      %v648 = vunpack.c.h.b16 %v267
      %v649 = vunpack.c.l.b16 %v268
      %v650 = vunpack.c.l.b16 %v269
      %v651 = vunpack.c.h.b16 %v269
      %v652 = vunpack.c.l.b16 %v270
      %v653 = vunpack.c.l.b16 %v271
      %v654 = vunpack.c.h.b16 %v271
      %v655 = vunpack.c.l.b16 %v272
      %v656 = vunpack.c.l.b16 %v273
      %v657 = vunpack.c.h.b16 %v273
      %v658 = vunpack.c.l.b16 %v274
      %v659 = vunpack.c.l.b16 %v275
      %v660 = vunpack.c.h.b16 %v275
      %v661 = vunpack.c.l.b16 %v276
      %v662 = vunpack.c.l.b16 %v277
      %v663 = vunpack.c.h.b16 %v277
      %v664 = vunpack.c.l.b16 %v278
      %v665 = vunpack.c.l.b16 %v279
      %v666 = vunpack.c.h.b16 %v279
      %v667 = vunpack.c.l.b16 %v280
      %v668 = vunpack.c.l.b16 %v281
      %v669 = vunpack.c.h.b16 %v281
      %v670 = vunpack.c.l.b16 %v282
      %v671 = vunpack.c.l.b16 %v283
      %v672 = vunpack.c.h.b16 %v283
      %v673 = vunpack.c.l.b16 %v284
      %v674 = vunpack.c.l.b16 %v285
      %v675 = vunpack.c.h.b16 %v285
      %v676 = vunpack.c.l.b16 %v286
      %v677 = vunpack.c.l.b16 %v287
      %v678 = vunpack.c.h.b16 %v287
      %v679 = vunpack.c.l.b16 %v288
      %v680 = vunpack.c.l.b16 %v289
      %v681 = vunpack.c.h.b16 %v289
      %v682 = vunpack.c.l.b16 %v290
      %v683 = vunpack.c.l.b16 %v291
      %v684 = vunpack.c.h.b16 %v291
      %v685 = vunpack.c.l.b16 %v292
      %v686 = vunpack.c.l.b16 %v293
      %v687 = vunpack.c.h.b16 %v293
      %v688 = vunpack.c.l.b16 %v294
      %v689 = vunpack.c.l.b16 %v295
      %v690 = vunpack.c.h.b16 %v295
      %v691 = vunpack.c.l.b16 %v296
      %v692 = vunpack.c.l.b16 %v297
      %v693 = vunpack.c.h.b16 %v297
      %v694 = vunpack.c.l.b16 %v298
      %v695 = vunpack.c.l.b16 %v299
      %v696 = vunpack.c.h.b16 %v299
      %v697 = vunpack.c.l.b16 %v300
      %v698 = vunpack.c.l.b16 %v301
      %v699 = vunpack.c.h.b16 %v301
      %v700 = vunpack.c.l.b16 %v302
      %v701 = vunpack.c.l.b16 %v303
      %v702 = vunpack.c.h.b16 %v303
      %v703 = vunpack.c.l.b16 %v304
      %v704 = vunpack.c.l.b16 %v305
      %v705 = vunpack.c.h.b16 %v305
      %v706 = vunpack.c.l.b16 %v306
      %v707 = vunpack.c.l.b16 %v307
      %v708 = vunpack.c.h.b16 %v307
      %v709 = vunpack.c.l.b16 %v308
      %v710 = vunpack.c.l.b16 %v309
      %v711 = vunpack.c.h.b16 %v309
      %v712 = vunpack.c.l.b16 %v310
      %v713 = vunpack.c.l.b16 %v311
      %v714 = vunpack.c.h.b16 %v311
      %v715 = vunpack.c.l.b16 %v312
      %v716 = vunpack.c.l.b16 %v313
      %v717 = vunpack.c.h.b16 %v313
      %v718 = vunpack.c.l.b16 %v314
      %v719 = vunpack.c.l.b16 %v315
      %v720 = vunpack.c.h.b16 %v315
      %v721 = vunpack.c.l.b16 %v316
      %v722 = vunpack.c.l.b16 %v317
      %v723 = vunpack.c.h.b16 %v317
      %v724 = vunpack.c.l.b16 %v318
      %v725 = vunpack.c.l.b16 %v319
      %v726 = vunpack.c.h.b16 %v319
      %v727 = vunpack.c.l.b16 %v320
      %v728 = vunpack.c.l.b16 %v321
      %v729 = vunpack.c.h.b16 %v321
      %v730 = vunpack.c.l.b16 %v322
      %v731 = vunpack.c.l.b16 %v323
      %v732 = vunpack.c.h.b16 %v323
      %v733 = vunpack.c.l.b16 %v324
      %v734 = vunpack.c.l.b16 %v325
      %v735 = vunpack.c.h.b16 %v325
      %v736 = vunpack.c.l.b16 %v326
      %v737 = vunpack.c.l.b16 %v327
      %v738 = vunpack.c.h.b16 %v327
      %v739 = vunpack.c.l.b16 %v328
      %v740 = vunpack.c.l.b16 %v329
      %v741 = vunpack.c.h.b16 %v329
      %v742 = vunpack.c.l.b16 %v330
      %v743 = vunpack.c.l.b16 %v331
      %v744 = vunpack.c.h.b16 %v331
      %v745 = vunpack.c.l.b16 %v332
      %v746 = vunpack.c.l.b16 %v333
      %v747 = vunpack.c.h.b16 %v333
      %v748 = vunpack.c.l.b16 %v334
      %v749 = vunpack.c.l.b16 %v335
      %v750 = vunpack.c.h.b16 %v335
      %v751 = vunpack.c.l.b16 %v336
      %v752 = vunpack.c.l.b16 %v337
      %v753 = vunpack.c.h.b16 %v337
      %v754 = vunpack.c.l.b16 %v338
      %v755 = vunpack.c.l.b16 %v339
      %v756 = vunpack.c.h.b16 %v339
      %v757 = vunpack.c.l.b16 %v340
      %v758 = vunpack.c.l.b16 %v341
      %v759 = vunpack.c.h.b16 %v341
      %v760 = vunpack.c.l.b16 %v342
      %v761 = vunpack.c.l.b16 %v343
      %v762 = vunpack.c.h.b16 %v343
      %v763 = vunpack.c.l.b16 %v344
      %v764 = vunpack.c.l.b16 %v345
      %v765 = vunpack.c.h.b16 %v345
      %v766 = vunpack.c.l.b16 %v346
      %v767 = vunpack.c.l.b16 %v347
      %v768 = vunpack.c.h.b16 %v347
      %v769 = vunpack.c.l.b16 %v348
      %v770 = vunpack.c.l.b16 %v349
      %v771 = vunpack.c.h.b16 %v349
      %v772 = vunpack.c.l.b16 %v350
      %v773 = vunpack.c.l.b16 %v351
      %v774 = vunpack.c.h.b16 %v351
      %v775 = vunpack.c.l.b16 %v352
      %v776 = vunpack.c.l.b16 %v353
      %v777 = vunpack.c.h.b16 %v353
      %v778 = vunpack.c.l.b16 %v354
      %v779 = vunpack.c.l.b16 %v355
      %v780 = vunpack.c.h.b16 %v355
      %v781 = vunpack.c.l.b16 %v356
      %v782 = vunpack.c.l.b16 %v357
      %v783 = vunpack.c.h.b16 %v357
      %v784 = vunpack.c.l.b16 %v358
      %v785 = vpack.c.b16 %v596, %v593
      %v786 = vpack.c.b16 %v597, %v594
      %v787 = vpack.c.b16 %v598, %v595
      %v788 = vpack.c.b16 %v602, %v599
      %v789 = vpack.c.b16 %v603, %v600
      %v790 = vpack.c.b16 %v604, %v601
      %v791 = vpack.c.b16 %v608, %v605
      %v792 = vpack.c.b16 %v609, %v606
      %v793 = vpack.c.b16 %v610, %v607
      %v794 = vpack.c.b16 %v614, %v611
      %v795 = vpack.c.b16 %v615, %v612
      %v796 = vpack.c.b16 %v616, %v613
      %v797 = vpack.c.b16 %v620, %v617
      %v798 = vpack.c.b16 %v621, %v618
      %v799 = vpack.c.b16 %v622, %v619
      %v800 = vpack.c.b16 %v626, %v623
      %v801 = vpack.c.b16 %v627, %v624
      %v802 = vpack.c.b16 %v628, %v625
      %v803 = vpack.c.b16 %v632, %v629
      %v804 = vpack.c.b16 %v633, %v630
      %v805 = vpack.c.b16 %v634, %v631
      %v806 = vpack.c.b16 %v638, %v635
      %v807 = vpack.c.b16 %v639, %v636
      %v808 = vpack.c.b16 %v640, %v637
      %v809 = vpack.c.b16 %v644, %v641
      %v810 = vpack.c.b16 %v645, %v642
      %v811 = vpack.c.b16 %v646, %v643
      %v812 = vpack.c.b16 %v650, %v647
      %v813 = vpack.c.b16 %v651, %v648
      %v814 = vpack.c.b16 %v652, %v649
      %v815 = vpack.c.b16 %v656, %v653
      %v816 = vpack.c.b16 %v657, %v654
      %v817 = vpack.c.b16 %v658, %v655
      %v818 = vpack.c.b16 %v662, %v659
      %v819 = vpack.c.b16 %v663, %v660
      %v820 = vpack.c.b16 %v664, %v661
      %v821 = vpack.c.b16 %v668, %v665
      %v822 = vpack.c.b16 %v669, %v666
      %v823 = vpack.c.b16 %v670, %v667
      %v824 = vpack.c.b16 %v674, %v671
      %v825 = vpack.c.b16 %v675, %v672
      %v826 = vpack.c.b16 %v676, %v673
      %v827 = vpack.c.b16 %v680, %v677
      %v828 = vpack.c.b16 %v681, %v678
      %v829 = vpack.c.b16 %v682, %v679
      %v830 = vpack.c.b16 %v686, %v683
      %v831 = vpack.c.b16 %v687, %v684
      %v832 = vpack.c.b16 %v688, %v685
      %v833 = vpack.c.b16 %v692, %v689
      %v834 = vpack.c.b16 %v693, %v690
      %v835 = vpack.c.b16 %v694, %v691
      %v836 = vpack.c.b16 %v698, %v695
      %v837 = vpack.c.b16 %v699, %v696
      %v838 = vpack.c.b16 %v700, %v697
      %v839 = vpack.c.b16 %v704, %v701
      %v840 = vpack.c.b16 %v705, %v702
      %v841 = vpack.c.b16 %v706, %v703
      %v842 = vpack.c.b16 %v710, %v707
      %v843 = vpack.c.b16 %v711, %v708
      %v844 = vpack.c.b16 %v712, %v709
      %v845 = vpack.c.b16 %v716, %v713
      %v846 = vpack.c.b16 %v717, %v714
      %v847 = vpack.c.b16 %v718, %v715
      %v848 = vpack.c.b16 %v722, %v719
      %v849 = vpack.c.b16 %v723, %v720
      %v850 = vpack.c.b16 %v724, %v721
      %v851 = vpack.c.b16 %v728, %v725
      %v852 = vpack.c.b16 %v729, %v726
      %v853 = vpack.c.b16 %v730, %v727
      %v854 = vpack.c.b16 %v734, %v731
      %v855 = vpack.c.b16 %v735, %v732
      %v856 = vpack.c.b16 %v736, %v733
      %v857 = vpack.c.b16 %v740, %v737
      %v858 = vpack.c.b16 %v741, %v738
      %v859 = vpack.c.b16 %v742, %v739
      %v860 = vpack.c.b16 %v746, %v743
      %v861 = vpack.c.b16 %v747, %v744
      %v862 = vpack.c.b16 %v748, %v745
      %v863 = vpack.c.b16 %v752, %v749
      %v864 = vpack.c.b16 %v753, %v750
      %v865 = vpack.c.b16 %v754, %v751
      %v866 = vpack.c.b16 %v758, %v755
      %v867 = vpack.c.b16 %v759, %v756
      %v868 = vpack.c.b16 %v760, %v757
      %v869 = vpack.c.b16 %v764, %v761
      %v870 = vpack.c.b16 %v765, %v762
      %v871 = vpack.c.b16 %v766, %v763
      %v872 = vpack.c.b16 %v770, %v767
      %v873 = vpack.c.b16 %v771, %v768
      %v874 = vpack.c.b16 %v772, %v769
      %v875 = vpack.c.b16 %v776, %v773
      %v876 = vpack.c.b16 %v777, %v774
      %v877 = vpack.c.b16 %v778, %v775
      %v878 = vpack.c.b16 %v782, %v779
      %v879 = vpack.c.b16 %v783, %v780
      %v880 = vpack.c.b16 %v784, %v781
      %v1073 = vunpack.c.l.b16 %v359
      %v1074 = vunpack.c.h.b16 %v359
      %v1075 = vunpack.c.l.b16 %v360
      %v1076 = vunpack.c.h.b16 %v360
      %v1077 = vunpack.c.l.b16 %v361
      %v1078 = vunpack.c.h.b16 %v361
      %v1079 = vunpack.c.l.b16 %v362
      %v1080 = vunpack.c.h.b16 %v362
      %v1081 = vunpack.c.l.b16 %v363
      %v1082 = vunpack.c.h.b16 %v363
      %v1083 = vunpack.c.l.b16 %v364
      %v1084 = vunpack.c.h.b16 %v364
      %v1085 = vunpack.c.l.b16 %v365
      %v1086 = vunpack.c.h.b16 %v365
      %v1087 = vunpack.c.l.b16 %v366
      %v1088 = vunpack.c.h.b16 %v366
      %v1089 = vunpack.c.l.b16 %v367
      %v1090 = vunpack.c.h.b16 %v367
      %v1091 = vunpack.c.l.b16 %v368
      %v1092 = vunpack.c.h.b16 %v368
      %v1093 = vunpack.c.l.b16 %v369
      %v1094 = vunpack.c.h.b16 %v369
      %v1095 = vunpack.c.l.b16 %v370
      %v1096 = vunpack.c.h.b16 %v370
      %v1097 = vunpack.c.l.b16 %v371
      %v1098 = vunpack.c.h.b16 %v371
      %v1099 = vunpack.c.l.b16 %v372
      %v1100 = vunpack.c.h.b16 %v372
      %v1101 = vunpack.c.l.b16 %v373
      %v1102 = vunpack.c.h.b16 %v373
      %v1103 = vunpack.c.l.b16 %v374
      %v1104 = vunpack.c.h.b16 %v374
      %v1105 = vunpack.c.l.b16 %v375
      %v1106 = vunpack.c.h.b16 %v375
      %v1107 = vunpack.c.l.b16 %v376
      %v1108 = vunpack.c.h.b16 %v376
      %v1109 = vunpack.c.l.b16 %v377
      %v1110 = vunpack.c.h.b16 %v377
      %v1111 = vunpack.c.l.b16 %v378
      %v1112 = vunpack.c.h.b16 %v378
      %v1113 = vunpack.c.l.b16 %v379
      %v1114 = vunpack.c.h.b16 %v379
      %v1115 = vunpack.c.l.b16 %v380
      %v1116 = vunpack.c.h.b16 %v380
      %v1117 = vunpack.c.l.b16 %v381
      %v1118 = vunpack.c.h.b16 %v381
      %v1119 = vunpack.c.l.b16 %v382
      %v1120 = vunpack.c.h.b16 %v382
      %v1121 = vunpack.c.l.b16 %v383
      %v1122 = vunpack.c.h.b16 %v383
      %v1123 = vunpack.c.l.b16 %v384
      %v1124 = vunpack.c.h.b16 %v384
      %v1125 = vunpack.c.l.b16 %v385
      %v1126 = vunpack.c.h.b16 %v385
      %v1127 = vunpack.c.l.b16 %v386
      %v1128 = vunpack.c.h.b16 %v386
      %v1129 = vunpack.c.l.b16 %v387
      %v1130 = vunpack.c.h.b16 %v387
      %v1131 = vunpack.c.l.b16 %v388
      %v1132 = vunpack.c.h.b16 %v388
      %v1133 = vunpack.c.l.b16 %v389
      %v1134 = vunpack.c.h.b16 %v389
      %v1135 = vunpack.c.l.b16 %v390
      %v1136 = vunpack.c.h.b16 %v390
      %v1137 = vunpack.c.l.b16 %v391
      %v1138 = vunpack.c.h.b16 %v391
      %v1139 = vunpack.c.l.b16 %v392
      %v1140 = vunpack.c.h.b16 %v392
      %v1141 = vunpack.c.l.b16 %v393
      %v1142 = vunpack.c.h.b16 %v393
      %v1143 = vunpack.c.l.b16 %v394
      %v1144 = vunpack.c.h.b16 %v394
      %v1145 = vunpack.c.l.b16 %v395
      %v1146 = vunpack.c.h.b16 %v395
      %v1147 = vunpack.c.l.b16 %v396
      %v1148 = vunpack.c.h.b16 %v396
      %v1149 = vunpack.c.l.b16 %v397
      %v1150 = vunpack.c.h.b16 %v397
      %v1151 = vunpack.c.l.b16 %v398
      %v1152 = vunpack.c.h.b16 %v398
      %v1153 = vunpack.c.l.b16 %v399
      %v1154 = vunpack.c.h.b16 %v399
      %v1155 = vunpack.c.l.b16 %v400
      %v1156 = vunpack.c.h.b16 %v400
      %v1157 = vunpack.c.l.b16 %v401
      %v1158 = vunpack.c.h.b16 %v401
      %v1159 = vunpack.c.l.b16 %v402
      %v1160 = vunpack.c.h.b16 %v402
      %v1161 = vunpack.c.l.b16 %v403
      %v1162 = vunpack.c.h.b16 %v403
      %v1163 = vunpack.c.l.b16 %v404
      %v1164 = vunpack.c.h.b16 %v404
      %v1165 = vunpack.c.l.b16 %v405
      %v1166 = vunpack.c.h.b16 %v405
      %v1167 = vunpack.c.l.b16 %v406
      %v1168 = vunpack.c.h.b16 %v406
      %v1169 = vunpack.c.l.b16 %v407
      %v1170 = vunpack.c.h.b16 %v407
      %v1171 = vunpack.c.l.b16 %v408
      %v1172 = vunpack.c.h.b16 %v408
      %v1173 = vunpack.c.l.b16 %v409
      %v1174 = vunpack.c.h.b16 %v409
      %v1175 = vunpack.c.l.b16 %v410
      %v1176 = vunpack.c.h.b16 %v410
      %v1177 = vunpack.c.l.b16 %v411
      %v1178 = vunpack.c.h.b16 %v411
      %v1179 = vunpack.c.l.b16 %v412
      %v1180 = vunpack.c.h.b16 %v412
      %v1181 = vunpack.c.l.b16 %v413
      %v1182 = vunpack.c.h.b16 %v413
      %v1183 = vunpack.c.l.b16 %v414
      %v1184 = vunpack.c.h.b16 %v414
      %v1185 = vunpack.c.l.b16 %v415
      %v1186 = vunpack.c.h.b16 %v415
      %v1187 = vunpack.c.l.b16 %v416
      %v1188 = vunpack.c.h.b16 %v416
      %v1189 = vunpack.c.l.b16 %v417
      %v1190 = vunpack.c.h.b16 %v417
      %v1191 = vunpack.c.l.b16 %v418
      %v1192 = vunpack.c.h.b16 %v418
      %v1193 = vunpack.c.l.b16 %v419
      %v1194 = vunpack.c.h.b16 %v419
      %v1195 = vunpack.c.l.b16 %v420
      %v1196 = vunpack.c.h.b16 %v420
      %v1197 = vunpack.c.l.b16 %v421
      %v1198 = vunpack.c.h.b16 %v421
      %v1199 = vunpack.c.l.b16 %v422
      %v1200 = vunpack.c.h.b16 %v422
      %v1201 = vunpack.c.l.b16 %v423
      %v1202 = vunpack.c.h.b16 %v423
      %v1203 = vunpack.c.l.b16 %v424
      %v1204 = vunpack.c.h.b16 %v424
      %v1205 = vunpack.c.l.b16 %v425
      %v1206 = vunpack.c.h.b16 %v425
      %v1207 = vunpack.c.l.b16 %v426
      %v1208 = vunpack.c.h.b16 %v426
      %v1209 = vunpack.c.l.b16 %v427
      %v1210 = vunpack.c.h.b16 %v427
      %v1211 = vunpack.c.l.b16 %v428
      %v1212 = vunpack.c.h.b16 %v428
      %v1213 = vunpack.c.l.b16 %v429
      %v1214 = vunpack.c.h.b16 %v429
      %v1215 = vunpack.c.l.b16 %v430
      %v1216 = vunpack.c.h.b16 %v430
      %v1217 = vunpack.c.l.b16 %v431
      %v1218 = vunpack.c.h.b16 %v431
      %v1219 = vunpack.c.l.b16 %v432
      %v1220 = vunpack.c.h.b16 %v432
      %v1221 = vunpack.c.l.b16 %v433
      %v1222 = vunpack.c.h.b16 %v433
      %v1223 = vunpack.c.l.b16 %v434
      %v1224 = vunpack.c.h.b16 %v434
      %v1225 = vunpack.c.l.b16 %v435
      %v1226 = vunpack.c.h.b16 %v435
      %v1227 = vunpack.c.l.b16 %v436
      %v1228 = vunpack.c.h.b16 %v436
      %v1229 = vunpack.c.l.b16 %v437
      %v1230 = vunpack.c.h.b16 %v437
      %v1231 = vunpack.c.l.b16 %v438
      %v1232 = vunpack.c.h.b16 %v438
      %v1233 = vunpack.c.l.b16 %v439
      %v1234 = vunpack.c.h.b16 %v439
      %v1235 = vunpack.c.l.b16 %v440
      %v1236 = vunpack.c.h.b16 %v440
      %v1237 = vunpack.c.l.b16 %v441
      %v1238 = vunpack.c.h.b16 %v441
      %v1239 = vunpack.c.l.b16 %v442
      %v1240 = vunpack.c.h.b16 %v442
      %v1241 = vunpack.c.l.b16 %v443
      %v1242 = vunpack.c.h.b16 %v443
      %v1243 = vunpack.c.l.b16 %v444
      %v1244 = vunpack.c.h.b16 %v444
      %v1245 = vunpack.c.l.b16 %v445
      %v1246 = vunpack.c.h.b16 %v445
      %v1247 = vunpack.c.l.b16 %v446
      %v1248 = vunpack.c.h.b16 %v446
      %v1249 = vunpack.c.l.b16 %v447
      %v1250 = vunpack.c.h.b16 %v447
      %v1251 = vunpack.c.l.b16 %v448
      %v1252 = vunpack.c.h.b16 %v448
      %v1253 = vunpack.c.l.b16 %v449
      %v1254 = vunpack.c.h.b16 %v449
      %v1255 = vunpack.c.l.b16 %v450
      %v1256 = vunpack.c.h.b16 %v450
      %v1257 = vunpack.c.l.b16 %v451
      %v1258 = vunpack.c.h.b16 %v451
      %v1259 = vunpack.c.l.b16 %v452
      %v1260 = vunpack.c.h.b16 %v452
      %v1261 = vunpack.c.l.b16 %v453
      %v1262 = vunpack.c.h.b16 %v453
      %v1263 = vunpack.c.l.b16 %v454
      %v1264 = vunpack.c.h.b16 %v454
      %v1265 = vpack.c.b16 %v1077, %v1073
      %v1266 = vpack.c.b16 %v1078, %v1074
      %v1267 = vpack.c.b16 %v1079, %v1075
      %v1268 = vpack.c.b16 %v1080, %v1076
      %v1269 = vpack.c.b16 %v1085, %v1081
      %v1270 = vpack.c.b16 %v1086, %v1082
      %v1271 = vpack.c.b16 %v1087, %v1083
      %v1272 = vpack.c.b16 %v1088, %v1084
      %v1273 = vpack.c.b16 %v1093, %v1089
      %v1274 = vpack.c.b16 %v1094, %v1090
      %v1275 = vpack.c.b16 %v1095, %v1091
      %v1276 = vpack.c.b16 %v1096, %v1092
      %v1277 = vpack.c.b16 %v1101, %v1097
      %v1278 = vpack.c.b16 %v1102, %v1098
      %v1279 = vpack.c.b16 %v1103, %v1099
      %v1280 = vpack.c.b16 %v1104, %v1100
      %v1281 = vpack.c.b16 %v1109, %v1105
      %v1282 = vpack.c.b16 %v1110, %v1106
      %v1283 = vpack.c.b16 %v1111, %v1107
      %v1284 = vpack.c.b16 %v1112, %v1108
      %v1285 = vpack.c.b16 %v1117, %v1113
      %v1286 = vpack.c.b16 %v1118, %v1114
      %v1287 = vpack.c.b16 %v1119, %v1115
      %v1288 = vpack.c.b16 %v1120, %v1116
      %v1289 = vpack.c.b16 %v1125, %v1121
      %v1290 = vpack.c.b16 %v1126, %v1122
      %v1291 = vpack.c.b16 %v1127, %v1123
      %v1292 = vpack.c.b16 %v1128, %v1124
      %v1293 = vpack.c.b16 %v1133, %v1129
      %v1294 = vpack.c.b16 %v1134, %v1130
      %v1295 = vpack.c.b16 %v1135, %v1131
      %v1296 = vpack.c.b16 %v1136, %v1132
      %v1297 = vpack.c.b16 %v1141, %v1137
      %v1298 = vpack.c.b16 %v1142, %v1138
      %v1299 = vpack.c.b16 %v1143, %v1139
      %v1300 = vpack.c.b16 %v1144, %v1140
      %v1301 = vpack.c.b16 %v1149, %v1145
      %v1302 = vpack.c.b16 %v1150, %v1146
      %v1303 = vpack.c.b16 %v1151, %v1147
      %v1304 = vpack.c.b16 %v1152, %v1148
      %v1305 = vpack.c.b16 %v1157, %v1153
      %v1306 = vpack.c.b16 %v1158, %v1154
      %v1307 = vpack.c.b16 %v1159, %v1155
      %v1308 = vpack.c.b16 %v1160, %v1156
      %v1309 = vpack.c.b16 %v1165, %v1161
      %v1310 = vpack.c.b16 %v1166, %v1162
      %v1311 = vpack.c.b16 %v1167, %v1163
      %v1312 = vpack.c.b16 %v1168, %v1164
      %v1313 = vpack.c.b16 %v1173, %v1169
      %v1314 = vpack.c.b16 %v1174, %v1170
      %v1315 = vpack.c.b16 %v1175, %v1171
      %v1316 = vpack.c.b16 %v1176, %v1172
      %v1317 = vpack.c.b16 %v1181, %v1177
      %v1318 = vpack.c.b16 %v1182, %v1178
      %v1319 = vpack.c.b16 %v1183, %v1179
      %v1320 = vpack.c.b16 %v1184, %v1180
      %v1321 = vpack.c.b16 %v1189, %v1185
      %v1322 = vpack.c.b16 %v1190, %v1186
      %v1323 = vpack.c.b16 %v1191, %v1187
      %v1324 = vpack.c.b16 %v1192, %v1188
      %v1325 = vpack.c.b16 %v1197, %v1193
      %v1326 = vpack.c.b16 %v1198, %v1194
      %v1327 = vpack.c.b16 %v1199, %v1195
      %v1328 = vpack.c.b16 %v1200, %v1196
      %v1329 = vpack.c.b16 %v1205, %v1201
      %v1330 = vpack.c.b16 %v1206, %v1202
      %v1331 = vpack.c.b16 %v1207, %v1203
      %v1332 = vpack.c.b16 %v1208, %v1204
      %v1333 = vpack.c.b16 %v1213, %v1209
      %v1334 = vpack.c.b16 %v1214, %v1210
      %v1335 = vpack.c.b16 %v1215, %v1211
      %v1336 = vpack.c.b16 %v1216, %v1212
      %v1337 = vpack.c.b16 %v1221, %v1217
      %v1338 = vpack.c.b16 %v1222, %v1218
      %v1339 = vpack.c.b16 %v1223, %v1219
      %v1340 = vpack.c.b16 %v1224, %v1220
      %v1341 = vpack.c.b16 %v1229, %v1225
      %v1342 = vpack.c.b16 %v1230, %v1226
      %v1343 = vpack.c.b16 %v1231, %v1227
      %v1344 = vpack.c.b16 %v1232, %v1228
      %v1345 = vpack.c.b16 %v1237, %v1233
      %v1346 = vpack.c.b16 %v1238, %v1234
      %v1347 = vpack.c.b16 %v1239, %v1235
      %v1348 = vpack.c.b16 %v1240, %v1236
      %v1349 = vpack.c.b16 %v1245, %v1241
      %v1350 = vpack.c.b16 %v1246, %v1242
      %v1351 = vpack.c.b16 %v1247, %v1243
      %v1352 = vpack.c.b16 %v1248, %v1244
      %v1353 = vpack.c.b16 %v1253, %v1249
      %v1354 = vpack.c.b16 %v1254, %v1250
      %v1355 = vpack.c.b16 %v1255, %v1251
      %v1356 = vpack.c.b16 %v1256, %v1252
      %v1357 = vpack.c.b16 %v1261, %v1257
      %v1358 = vpack.c.b16 %v1262, %v1258
      %v1359 = vpack.c.b16 %v1263, %v1259
      %v1360 = vpack.c.b16 %v1264, %v1260
      %1457 = vmatpush.bf16.msra.mxu0 %v1293
      %1458 = vmatpush.bf16.msra.mxu0 %v1289
      %1459 = vmatpush.bf16.msra.mxu0 %v1285
      %1460 = vmatpush.bf16.msra.mxu0 %v1281
      %1461 = vmatpush.bf16.msra.mxu0 %v1277
      %1462 = vmatpush.bf16.msra.mxu0 %v1273
      %1463 = vmatpush.bf16.msra.mxu0 %v1269
      %1464 = vmatpush.bf16.msra.mxu0 %v1265
      %1465 = vmatmul.bf16.gmra.mxu0 %v785
      %v1466 = vpop.f32.mrf.mxu0
      %v1467 = vadd.f32 %v457, %v1466
      %v1468 = vpop.f32.mrf.mxu0
      %v1469 = vadd.f32 %v457, %v1468
      %1470 = vmatmul.bf16.gmra.mxu0 %v788
      %v1471 = vpop.f32.mrf.mxu0
      %v1472 = vadd.f32 %v457, %v1471
      %v1473 = vpop.f32.mrf.mxu0
      %v1474 = vadd.f32 %v457, %v1473
      %1475 = vmatmul.bf16.gmra.mxu0 %v791
      %v1476 = vpop.f32.mrf.mxu0
      %v1477 = vadd.f32 %v457, %v1476
      %v1478 = vpop.f32.mrf.mxu0
      %v1479 = vadd.f32 %v457, %v1478
      %1480 = vmatmul.bf16.gmra.mxu0 %v794
      %v1481 = vpop.f32.mrf.mxu0
      %v1482 = vadd.f32 %v457, %v1481
      %v1483 = vpop.f32.mrf.mxu0
      %v1484 = vadd.f32 %v457, %v1483
      %1485 = vmatmul.bf16.gmra.mxu0 %v797
      %v1486 = vpop.f32.mrf.mxu0
      %v1487 = vadd.f32 %v457, %v1486
      %v1488 = vpop.f32.mrf.mxu0
      %v1489 = vadd.f32 %v457, %v1488
      %1490 = vmatmul.bf16.gmra.mxu0 %v800
      %v1491 = vpop.f32.mrf.mxu0
      %v1492 = vadd.f32 %v457, %v1491
      %v1493 = vpop.f32.mrf.mxu0
      %v1494 = vadd.f32 %v457, %v1493
      %1495 = vmatmul.bf16.gmra.mxu0 %v803
      %v1496 = vpop.f32.mrf.mxu0
      %v1497 = vadd.f32 %v457, %v1496
      %v1498 = vpop.f32.mrf.mxu0
      %v1499 = vadd.f32 %v457, %v1498
      %1500 = vmatmul.bf16.gmra.mxu0 %v806
      %v1501 = vpop.f32.mrf.mxu0
      %v1502 = vadd.f32 %v457, %v1501
      %v1503 = vpop.f32.mrf.mxu0
      %v1504 = vadd.f32 %v457, %v1503
      %1505 = vmatmul.bf16.gmra.mxu0 %v809
      %v1506 = vpop.f32.mrf.mxu0
      %v1507 = vadd.f32 %v457, %v1506
      %v1508 = vpop.f32.mrf.mxu0
      %v1509 = vadd.f32 %v457, %v1508
      %1510 = vmatmul.bf16.gmra.mxu0 %v812
      %v1511 = vpop.f32.mrf.mxu0
      %v1512 = vadd.f32 %v457, %v1511
      %v1513 = vpop.f32.mrf.mxu0
      %v1514 = vadd.f32 %v457, %v1513
      %1515 = vmatmul.bf16.gmra.mxu0 %v815
      %v1516 = vpop.f32.mrf.mxu0
      %v1517 = vadd.f32 %v457, %v1516
      %v1518 = vpop.f32.mrf.mxu0
      %v1519 = vadd.f32 %v457, %v1518
      %1520 = vmatmul.bf16.gmra.mxu0 %v818
      %v1521 = vpop.f32.mrf.mxu0
      %v1522 = vadd.f32 %v457, %v1521
      %v1523 = vpop.f32.mrf.mxu0
      %v1524 = vadd.f32 %v457, %v1523
      %1525 = vmatmul.bf16.gmra.mxu0 %v821
      %v1526 = vpop.f32.mrf.mxu0
      %v1527 = vadd.f32 %v457, %v1526
      %v1528 = vpop.f32.mrf.mxu0
      %v1529 = vadd.f32 %v457, %v1528
      %1530 = vmatmul.bf16.gmra.mxu0 %v824
      %v1531 = vpop.f32.mrf.mxu0
      %v1532 = vadd.f32 %v457, %v1531
      %v1533 = vpop.f32.mrf.mxu0
      %v1534 = vadd.f32 %v457, %v1533
      %1535 = vmatmul.bf16.gmra.mxu0 %v827
      %v1536 = vpop.f32.mrf.mxu0
      %v1537 = vadd.f32 %v457, %v1536
      %v1538 = vpop.f32.mrf.mxu0
      %v1539 = vadd.f32 %v457, %v1538
      %1540 = vmatmul.bf16.gmra.mxu0 %v830
      %v1541 = vpop.f32.mrf.mxu0
      %v1542 = vadd.f32 %v457, %v1541
      %v1543 = vpop.f32.mrf.mxu0
      %v1544 = vadd.f32 %v457, %v1543
      %1545 = vmatmul.bf16.gmra.mxu0 %v833
      %v1546 = vpop.f32.mrf.mxu0
      %v1547 = vadd.f32 %v457, %v1546
      %v1548 = vpop.f32.mrf.mxu0
      %v1549 = vadd.f32 %v457, %v1548
      %1550 = vmatmul.bf16.gmra.mxu0 %v836
      %v1551 = vpop.f32.mrf.mxu0
      %v1552 = vadd.f32 %v457, %v1551
      %v1553 = vpop.f32.mrf.mxu0
      %v1554 = vadd.f32 %v457, %v1553
      %1555 = vmatmul.bf16.gmra.mxu0 %v839
      %v1556 = vpop.f32.mrf.mxu0
      %v1557 = vadd.f32 %v457, %v1556
      %v1558 = vpop.f32.mrf.mxu0
      %v1559 = vadd.f32 %v457, %v1558
      %1560 = vmatmul.bf16.gmra.mxu0 %v842
      %v1561 = vpop.f32.mrf.mxu0
      %v1562 = vadd.f32 %v457, %v1561
      %v1563 = vpop.f32.mrf.mxu0
      %v1564 = vadd.f32 %v457, %v1563
      %1565 = vmatmul.bf16.gmra.mxu0 %v845
      %v1566 = vpop.f32.mrf.mxu0
      %v1567 = vadd.f32 %v457, %v1566
      %v1568 = vpop.f32.mrf.mxu0
      %v1569 = vadd.f32 %v457, %v1568
      %1570 = vmatmul.bf16.gmra.mxu0 %v848
      %v1571 = vpop.f32.mrf.mxu0
      %v1572 = vadd.f32 %v457, %v1571
      %v1573 = vpop.f32.mrf.mxu0
      %v1574 = vadd.f32 %v457, %v1573
      %1575 = vmatmul.bf16.gmra.mxu0 %v851
      %v1576 = vpop.f32.mrf.mxu0
      %v1577 = vadd.f32 %v457, %v1576
      %v1578 = vpop.f32.mrf.mxu0
      %v1579 = vadd.f32 %v457, %v1578
      %1580 = vmatmul.bf16.gmra.mxu0 %v854
      %v1581 = vpop.f32.mrf.mxu0
      %v1582 = vadd.f32 %v457, %v1581
      %v1583 = vpop.f32.mrf.mxu0
      %v1584 = vadd.f32 %v457, %v1583
      %1585 = vmatmul.bf16.gmra.mxu0 %v857
      %v1586 = vpop.f32.mrf.mxu0
      %v1587 = vadd.f32 %v457, %v1586
      %v1588 = vpop.f32.mrf.mxu0
      %v1589 = vadd.f32 %v457, %v1588
      %1590 = vmatmul.bf16.gmra.mxu0 %v860
      %v1591 = vpop.f32.mrf.mxu0
      %v1592 = vadd.f32 %v457, %v1591
      %v1593 = vpop.f32.mrf.mxu0
      %v1594 = vadd.f32 %v457, %v1593
      %1595 = vmatmul.bf16.gmra.mxu0 %v863
      %v1596 = vpop.f32.mrf.mxu0
      %v1597 = vadd.f32 %v457, %v1596
      %v1598 = vpop.f32.mrf.mxu0
      %v1599 = vadd.f32 %v457, %v1598
      %1600 = vmatmul.bf16.gmra.mxu0 %v866
      %v1601 = vpop.f32.mrf.mxu0
      %v1602 = vadd.f32 %v457, %v1601
      %v1603 = vpop.f32.mrf.mxu0
      %v1604 = vadd.f32 %v457, %v1603
      %1605 = vmatmul.bf16.gmra.mxu0 %v869
      %v1606 = vpop.f32.mrf.mxu0
      %v1607 = vadd.f32 %v457, %v1606
      %v1608 = vpop.f32.mrf.mxu0
      %v1609 = vadd.f32 %v457, %v1608
      %1610 = vmatmul.bf16.gmra.mxu0 %v872
      %v1611 = vpop.f32.mrf.mxu0
      %v1612 = vadd.f32 %v457, %v1611
      %v1613 = vpop.f32.mrf.mxu0
      %v1614 = vadd.f32 %v457, %v1613
      %1615 = vmatmul.bf16.gmra.mxu0 %v875
      %v1616 = vpop.f32.mrf.mxu0
      %v1617 = vadd.f32 %v457, %v1616
      %v1618 = vpop.f32.mrf.mxu0
      %v1619 = vadd.f32 %v457, %v1618
      %1620 = vmatmul.bf16.gmra.mxu0 %v878
      %v1621 = vpop.f32.mrf.mxu0
      %v1622 = vadd.f32 %v457, %v1621
      %v1623 = vpop.f32.mrf.mxu0
      %v1624 = vadd.f32 %v457, %v1623
      %1625 = vdwg.mxu0
      %1626 = vmatpush.bf16.msra.mxu0 %v1325
      %1627 = vmatpush.bf16.msra.mxu0 %v1321
      %1628 = vmatpush.bf16.msra.mxu0 %v1317
      %1629 = vmatpush.bf16.msra.mxu0 %v1313
      %1630 = vmatpush.bf16.msra.mxu0 %v1309
      %1631 = vmatpush.bf16.msra.mxu0 %v1305
      %1632 = vmatpush.bf16.msra.mxu0 %v1301
      %1633 = vmatpush.bf16.msra.mxu0 %v1297
      %1634 = vmatmul.bf16.gmra.mxu0 %v786
      %v1635 = vpop.f32.mrf.mxu0
      %v1636 = vadd.f32 %v1467, %v1635
      %v1637 = vpop.f32.mrf.mxu0
      %v1638 = vadd.f32 %v1469, %v1637
      %1639 = vmatmul.bf16.gmra.mxu0 %v789
      %v1640 = vpop.f32.mrf.mxu0
      %v1641 = vadd.f32 %v1472, %v1640
      %v1642 = vpop.f32.mrf.mxu0
      %v1643 = vadd.f32 %v1474, %v1642
      %1644 = vmatmul.bf16.gmra.mxu0 %v792
      %v1645 = vpop.f32.mrf.mxu0
      %v1646 = vadd.f32 %v1477, %v1645
      %v1647 = vpop.f32.mrf.mxu0
      %v1648 = vadd.f32 %v1479, %v1647
      %1649 = vmatmul.bf16.gmra.mxu0 %v795
      %v1650 = vpop.f32.mrf.mxu0
      %v1651 = vadd.f32 %v1482, %v1650
      %v1652 = vpop.f32.mrf.mxu0
      %v1653 = vadd.f32 %v1484, %v1652
      %1654 = vmatmul.bf16.gmra.mxu0 %v798
      %v1655 = vpop.f32.mrf.mxu0
      %v1656 = vadd.f32 %v1487, %v1655
      %v1657 = vpop.f32.mrf.mxu0
      %v1658 = vadd.f32 %v1489, %v1657
      %1659 = vmatmul.bf16.gmra.mxu0 %v801
      %v1660 = vpop.f32.mrf.mxu0
      %v1661 = vadd.f32 %v1492, %v1660
      %v1662 = vpop.f32.mrf.mxu0
      %v1663 = vadd.f32 %v1494, %v1662
      %1664 = vmatmul.bf16.gmra.mxu0 %v804
      %v1665 = vpop.f32.mrf.mxu0
      %v1666 = vadd.f32 %v1497, %v1665
      %v1667 = vpop.f32.mrf.mxu0
      %v1668 = vadd.f32 %v1499, %v1667
      %1669 = vmatmul.bf16.gmra.mxu0 %v807
      %v1670 = vpop.f32.mrf.mxu0
      %v1671 = vadd.f32 %v1502, %v1670
      %v1672 = vpop.f32.mrf.mxu0
      %v1673 = vadd.f32 %v1504, %v1672
      %1674 = vmatmul.bf16.gmra.mxu0 %v810
      %v1675 = vpop.f32.mrf.mxu0
      %v1676 = vadd.f32 %v1507, %v1675
      %v1677 = vpop.f32.mrf.mxu0
      %v1678 = vadd.f32 %v1509, %v1677
      %1679 = vmatmul.bf16.gmra.mxu0 %v813
      %v1680 = vpop.f32.mrf.mxu0
      %v1681 = vadd.f32 %v1512, %v1680
      %v1682 = vpop.f32.mrf.mxu0
      %v1683 = vadd.f32 %v1514, %v1682
      %1684 = vmatmul.bf16.gmra.mxu0 %v816
      %v1685 = vpop.f32.mrf.mxu0
      %v1686 = vadd.f32 %v1517, %v1685
      %v1687 = vpop.f32.mrf.mxu0
      %v1688 = vadd.f32 %v1519, %v1687
      %1689 = vmatmul.bf16.gmra.mxu0 %v819
      %v1690 = vpop.f32.mrf.mxu0
      %v1691 = vadd.f32 %v1522, %v1690
      %v1692 = vpop.f32.mrf.mxu0
      %v1693 = vadd.f32 %v1524, %v1692
      %1694 = vmatmul.bf16.gmra.mxu0 %v822
      %v1695 = vpop.f32.mrf.mxu0
      %v1696 = vadd.f32 %v1527, %v1695
      %v1697 = vpop.f32.mrf.mxu0
      %v1698 = vadd.f32 %v1529, %v1697
      %1699 = vmatmul.bf16.gmra.mxu0 %v825
      %v1700 = vpop.f32.mrf.mxu0
      %v1701 = vadd.f32 %v1532, %v1700
      %v1702 = vpop.f32.mrf.mxu0
      %v1703 = vadd.f32 %v1534, %v1702
      %1704 = vmatmul.bf16.gmra.mxu0 %v828
      %v1705 = vpop.f32.mrf.mxu0
      %v1706 = vadd.f32 %v1537, %v1705
      %v1707 = vpop.f32.mrf.mxu0
      %v1708 = vadd.f32 %v1539, %v1707
      %1709 = vmatmul.bf16.gmra.mxu0 %v831
      %v1710 = vpop.f32.mrf.mxu0
      %v1711 = vadd.f32 %v1542, %v1710
      %v1712 = vpop.f32.mrf.mxu0
      %v1713 = vadd.f32 %v1544, %v1712
      %1714 = vmatmul.bf16.gmra.mxu0 %v834
      %v1715 = vpop.f32.mrf.mxu0
      %v1716 = vadd.f32 %v1547, %v1715
      %v1717 = vpop.f32.mrf.mxu0
      %v1718 = vadd.f32 %v1549, %v1717
      %1719 = vmatmul.bf16.gmra.mxu0 %v837
      %v1720 = vpop.f32.mrf.mxu0
      %v1721 = vadd.f32 %v1552, %v1720
      %v1722 = vpop.f32.mrf.mxu0
      %v1723 = vadd.f32 %v1554, %v1722
      %1724 = vmatmul.bf16.gmra.mxu0 %v840
      %v1725 = vpop.f32.mrf.mxu0
      %v1726 = vadd.f32 %v1557, %v1725
      %v1727 = vpop.f32.mrf.mxu0
      %v1728 = vadd.f32 %v1559, %v1727
      %1729 = vmatmul.bf16.gmra.mxu0 %v843
      %v1730 = vpop.f32.mrf.mxu0
      %v1731 = vadd.f32 %v1562, %v1730
      %v1732 = vpop.f32.mrf.mxu0
      %v1733 = vadd.f32 %v1564, %v1732
      %1734 = vmatmul.bf16.gmra.mxu0 %v846
      %v1735 = vpop.f32.mrf.mxu0
      %v1736 = vadd.f32 %v1567, %v1735
      %v1737 = vpop.f32.mrf.mxu0
      %v1738 = vadd.f32 %v1569, %v1737
      %1739 = vmatmul.bf16.gmra.mxu0 %v849
      %v1740 = vpop.f32.mrf.mxu0
      %v1741 = vadd.f32 %v1572, %v1740
      %v1742 = vpop.f32.mrf.mxu0
      %v1743 = vadd.f32 %v1574, %v1742
      %1744 = vmatmul.bf16.gmra.mxu0 %v852
      %v1745 = vpop.f32.mrf.mxu0
      %v1746 = vadd.f32 %v1577, %v1745
      %v1747 = vpop.f32.mrf.mxu0
      %v1748 = vadd.f32 %v1579, %v1747
      %1749 = vmatmul.bf16.gmra.mxu0 %v855
      %v1750 = vpop.f32.mrf.mxu0
      %v1751 = vadd.f32 %v1582, %v1750
      %v1752 = vpop.f32.mrf.mxu0
      %v1753 = vadd.f32 %v1584, %v1752
      %1754 = vmatmul.bf16.gmra.mxu0 %v858
      %v1755 = vpop.f32.mrf.mxu0
      %v1756 = vadd.f32 %v1587, %v1755
      %v1757 = vpop.f32.mrf.mxu0
      %v1758 = vadd.f32 %v1589, %v1757
      %1759 = vmatmul.bf16.gmra.mxu0 %v861
      %v1760 = vpop.f32.mrf.mxu0
      %v1761 = vadd.f32 %v1592, %v1760
      %v1762 = vpop.f32.mrf.mxu0
      %v1763 = vadd.f32 %v1594, %v1762
      %1764 = vmatmul.bf16.gmra.mxu0 %v864
      %v1765 = vpop.f32.mrf.mxu0
      %v1766 = vadd.f32 %v1597, %v1765
      %v1767 = vpop.f32.mrf.mxu0
      %v1768 = vadd.f32 %v1599, %v1767
      %1769 = vmatmul.bf16.gmra.mxu0 %v867
      %v1770 = vpop.f32.mrf.mxu0
      %v1771 = vadd.f32 %v1602, %v1770
      %v1772 = vpop.f32.mrf.mxu0
      %v1773 = vadd.f32 %v1604, %v1772
      %1774 = vmatmul.bf16.gmra.mxu0 %v870
      %v1775 = vpop.f32.mrf.mxu0
      %v1776 = vadd.f32 %v1607, %v1775
      %v1777 = vpop.f32.mrf.mxu0
      %v1778 = vadd.f32 %v1609, %v1777
      %1779 = vmatmul.bf16.gmra.mxu0 %v873
      %v1780 = vpop.f32.mrf.mxu0
      %v1781 = vadd.f32 %v1612, %v1780
      %v1782 = vpop.f32.mrf.mxu0
      %v1783 = vadd.f32 %v1614, %v1782
      %1784 = vmatmul.bf16.gmra.mxu0 %v876
      %v1785 = vpop.f32.mrf.mxu0
      %v1786 = vadd.f32 %v1617, %v1785
      %v1787 = vpop.f32.mrf.mxu0
      %v1788 = vadd.f32 %v1619, %v1787
      %1789 = vmatmul.bf16.gmra.mxu0 %v879
      %v1790 = vpop.f32.mrf.mxu0
      %v1791 = vadd.f32 %v1622, %v1790
      %v1792 = vpop.f32.mrf.mxu0
      %v1793 = vadd.f32 %v1624, %v1792
      %1794 = vdwg.mxu0
      %1795 = vmatpush.bf16.msra.mxu0 %v1357
      %1796 = vmatpush.bf16.msra.mxu0 %v1353
      %1797 = vmatpush.bf16.msra.mxu0 %v1349
      %1798 = vmatpush.bf16.msra.mxu0 %v1345
      %1799 = vmatpush.bf16.msra.mxu0 %v1341
      %1800 = vmatpush.bf16.msra.mxu0 %v1337
      %1801 = vmatpush.bf16.msra.mxu0 %v1333
      %1802 = vmatpush.bf16.msra.mxu0 %v1329
      %1803 = vmatmul.bf16.gmra.mxu0 %v787
      %v1804 = vpop.f32.mrf.mxu0
      %v1805 = vadd.f32 %v1636, %v1804
      %v1806 = vpop.f32.mrf.mxu0
      %v1807 = vadd.f32 %v1638, %v1806
      %1808 = vmatmul.bf16.gmra.mxu0 %v790
      %v1809 = vpop.f32.mrf.mxu0
      %v1810 = vadd.f32 %v1641, %v1809
      %v1811 = vpop.f32.mrf.mxu0
      %v1812 = vadd.f32 %v1643, %v1811
      %1813 = vmatmul.bf16.gmra.mxu0 %v793
      %v1814 = vpop.f32.mrf.mxu0
      %v1815 = vadd.f32 %v1646, %v1814
      %v1816 = vpop.f32.mrf.mxu0
      %v1817 = vadd.f32 %v1648, %v1816
      %1818 = vmatmul.bf16.gmra.mxu0 %v796
      %v1819 = vpop.f32.mrf.mxu0
      %v1820 = vadd.f32 %v1651, %v1819
      %v1821 = vpop.f32.mrf.mxu0
      %v1822 = vadd.f32 %v1653, %v1821
      %1823 = vmatmul.bf16.gmra.mxu0 %v799
      %v1824 = vpop.f32.mrf.mxu0
      %v1825 = vadd.f32 %v1656, %v1824
      %v1826 = vpop.f32.mrf.mxu0
      %v1827 = vadd.f32 %v1658, %v1826
      %1828 = vmatmul.bf16.gmra.mxu0 %v802
      %v1829 = vpop.f32.mrf.mxu0
      %v1830 = vadd.f32 %v1661, %v1829
      %v1831 = vpop.f32.mrf.mxu0
      %v1832 = vadd.f32 %v1663, %v1831
      %1833 = vmatmul.bf16.gmra.mxu0 %v805
      %v1834 = vpop.f32.mrf.mxu0
      %v1835 = vadd.f32 %v1666, %v1834
      %v1836 = vpop.f32.mrf.mxu0
      %v1837 = vadd.f32 %v1668, %v1836
      %1838 = vmatmul.bf16.gmra.mxu0 %v808
      %v1839 = vpop.f32.mrf.mxu0
      %v1840 = vadd.f32 %v1671, %v1839
      %v1841 = vpop.f32.mrf.mxu0
      %v1842 = vadd.f32 %v1673, %v1841
      %1843 = vmatmul.bf16.gmra.mxu0 %v811
      %v1844 = vpop.f32.mrf.mxu0
      %v1845 = vadd.f32 %v1676, %v1844
      %v1846 = vpop.f32.mrf.mxu0
      %v1847 = vadd.f32 %v1678, %v1846
      %1848 = vmatmul.bf16.gmra.mxu0 %v814
      %v1849 = vpop.f32.mrf.mxu0
      %v1850 = vadd.f32 %v1681, %v1849
      %v1851 = vpop.f32.mrf.mxu0
      %v1852 = vadd.f32 %v1683, %v1851
      %1853 = vmatmul.bf16.gmra.mxu0 %v817
      %v1854 = vpop.f32.mrf.mxu0
      %v1855 = vadd.f32 %v1686, %v1854
      %v1856 = vpop.f32.mrf.mxu0
      %v1857 = vadd.f32 %v1688, %v1856
      %1858 = vmatmul.bf16.gmra.mxu0 %v820
      %v1859 = vpop.f32.mrf.mxu0
      %v1860 = vadd.f32 %v1691, %v1859
      %v1861 = vpop.f32.mrf.mxu0
      %v1862 = vadd.f32 %v1693, %v1861
      %1863 = vmatmul.bf16.gmra.mxu0 %v823
      %v1864 = vpop.f32.mrf.mxu0
      %v1865 = vadd.f32 %v1696, %v1864
      %v1866 = vpop.f32.mrf.mxu0
      %v1867 = vadd.f32 %v1698, %v1866
      %1868 = vmatmul.bf16.gmra.mxu0 %v826
      %v1869 = vpop.f32.mrf.mxu0
      %v1870 = vadd.f32 %v1701, %v1869
      %v1871 = vpop.f32.mrf.mxu0
      %v1872 = vadd.f32 %v1703, %v1871
      %1873 = vmatmul.bf16.gmra.mxu0 %v829
      %v1874 = vpop.f32.mrf.mxu0
      %v1875 = vadd.f32 %v1706, %v1874
      %v1876 = vpop.f32.mrf.mxu0
      %v1877 = vadd.f32 %v1708, %v1876
      %1878 = vmatmul.bf16.gmra.mxu0 %v832
      %v1879 = vpop.f32.mrf.mxu0
      %v1880 = vadd.f32 %v1711, %v1879
      %v1881 = vpop.f32.mrf.mxu0
      %v1882 = vadd.f32 %v1713, %v1881
      %1883 = vmatmul.bf16.gmra.mxu0 %v835
      %v1884 = vpop.f32.mrf.mxu0
      %v1885 = vadd.f32 %v1716, %v1884
      %v1886 = vpop.f32.mrf.mxu0
      %v1887 = vadd.f32 %v1718, %v1886
      %1888 = vmatmul.bf16.gmra.mxu0 %v838
      %v1889 = vpop.f32.mrf.mxu0
      %v1890 = vadd.f32 %v1721, %v1889
      %v1891 = vpop.f32.mrf.mxu0
      %v1892 = vadd.f32 %v1723, %v1891
      %1893 = vmatmul.bf16.gmra.mxu0 %v841
      %v1894 = vpop.f32.mrf.mxu0
      %v1895 = vadd.f32 %v1726, %v1894
      %v1896 = vpop.f32.mrf.mxu0
      %v1897 = vadd.f32 %v1728, %v1896
      %1898 = vmatmul.bf16.gmra.mxu0 %v844
      %v1899 = vpop.f32.mrf.mxu0
      %v1900 = vadd.f32 %v1731, %v1899
      %v1901 = vpop.f32.mrf.mxu0
      %v1902 = vadd.f32 %v1733, %v1901
      %1903 = vmatmul.bf16.gmra.mxu0 %v847
      %v1904 = vpop.f32.mrf.mxu0
      %v1905 = vadd.f32 %v1736, %v1904
      %v1906 = vpop.f32.mrf.mxu0
      %v1907 = vadd.f32 %v1738, %v1906
      %1908 = vmatmul.bf16.gmra.mxu0 %v850
      %v1909 = vpop.f32.mrf.mxu0
      %v1910 = vadd.f32 %v1741, %v1909
      %v1911 = vpop.f32.mrf.mxu0
      %v1912 = vadd.f32 %v1743, %v1911
      %1913 = vmatmul.bf16.gmra.mxu0 %v853
      %v1914 = vpop.f32.mrf.mxu0
      %v1915 = vadd.f32 %v1746, %v1914
      %v1916 = vpop.f32.mrf.mxu0
      %v1917 = vadd.f32 %v1748, %v1916
      %1918 = vmatmul.bf16.gmra.mxu0 %v856
      %v1919 = vpop.f32.mrf.mxu0
      %v1920 = vadd.f32 %v1751, %v1919
      %v1921 = vpop.f32.mrf.mxu0
      %v1922 = vadd.f32 %v1753, %v1921
      %1923 = vmatmul.bf16.gmra.mxu0 %v859
      %v1924 = vpop.f32.mrf.mxu0
      %v1925 = vadd.f32 %v1756, %v1924
      %v1926 = vpop.f32.mrf.mxu0
      %v1927 = vadd.f32 %v1758, %v1926
      %1928 = vmatmul.bf16.gmra.mxu0 %v862
      %v1929 = vpop.f32.mrf.mxu0
      %v1930 = vadd.f32 %v1761, %v1929
      %v1931 = vpop.f32.mrf.mxu0
      %v1932 = vadd.f32 %v1763, %v1931
      %1933 = vmatmul.bf16.gmra.mxu0 %v865
      %v1934 = vpop.f32.mrf.mxu0
      %v1935 = vadd.f32 %v1766, %v1934
      %v1936 = vpop.f32.mrf.mxu0
      %v1937 = vadd.f32 %v1768, %v1936
      %1938 = vmatmul.bf16.gmra.mxu0 %v868
      %v1939 = vpop.f32.mrf.mxu0
      %v1940 = vadd.f32 %v1771, %v1939
      %v1941 = vpop.f32.mrf.mxu0
      %v1942 = vadd.f32 %v1773, %v1941
      %1943 = vmatmul.bf16.gmra.mxu0 %v871
      %v1944 = vpop.f32.mrf.mxu0
      %v1945 = vadd.f32 %v1776, %v1944
      %v1946 = vpop.f32.mrf.mxu0
      %v1947 = vadd.f32 %v1778, %v1946
      %1948 = vmatmul.bf16.gmra.mxu0 %v874
      %v1949 = vpop.f32.mrf.mxu0
      %v1950 = vadd.f32 %v1781, %v1949
      %v1951 = vpop.f32.mrf.mxu0
      %v1952 = vadd.f32 %v1783, %v1951
      %1953 = vmatmul.bf16.gmra.mxu0 %v877
      %v1954 = vpop.f32.mrf.mxu0
      %v1955 = vadd.f32 %v1786, %v1954
      %v1956 = vpop.f32.mrf.mxu0
      %v1957 = vadd.f32 %v1788, %v1956
      %1958 = vmatmul.bf16.gmra.mxu0 %v880
      %v1959 = vpop.f32.mrf.mxu0
      %v1960 = vadd.f32 %v1791, %v1959
      %v1961 = vpop.f32.mrf.mxu0
      %v1962 = vadd.f32 %v1793, %v1961
      %1963 = vdwg.mxu0
      %1964 = vmatpush.bf16.msra.mxu0 %v1294
      %1965 = vmatpush.bf16.msra.mxu0 %v1290
      %1966 = vmatpush.bf16.msra.mxu0 %v1286
      %1967 = vmatpush.bf16.msra.mxu0 %v1282
      %1968 = vmatpush.bf16.msra.mxu0 %v1278
      %1969 = vmatpush.bf16.msra.mxu0 %v1274
      %1970 = vmatpush.bf16.msra.mxu0 %v1270
      %1971 = vmatpush.bf16.msra.mxu0 %v1266
      %1972 = vmatmul.bf16.gmra.mxu0 %v785
      %v1973 = vpop.f32.mrf.mxu0
      %v1974 = vadd.f32 %v458, %v1973
      %v1975 = vpop.f32.mrf.mxu0
      %v1976 = vadd.f32 %v458, %v1975
      %1977 = vmatmul.bf16.gmra.mxu0 %v788
      %v1978 = vpop.f32.mrf.mxu0
      %v1979 = vadd.f32 %v458, %v1978
      %v1980 = vpop.f32.mrf.mxu0
      %v1981 = vadd.f32 %v458, %v1980
      %1982 = vmatmul.bf16.gmra.mxu0 %v791
      %v1983 = vpop.f32.mrf.mxu0
      %v1984 = vadd.f32 %v458, %v1983
      %v1985 = vpop.f32.mrf.mxu0
      %v1986 = vadd.f32 %v458, %v1985
      %1987 = vmatmul.bf16.gmra.mxu0 %v794
      %v1988 = vpop.f32.mrf.mxu0
      %v1989 = vadd.f32 %v458, %v1988
      %v1990 = vpop.f32.mrf.mxu0
      %v1991 = vadd.f32 %v458, %v1990
      %1992 = vmatmul.bf16.gmra.mxu0 %v797
      %v1993 = vpop.f32.mrf.mxu0
      %v1994 = vadd.f32 %v458, %v1993
      %v1995 = vpop.f32.mrf.mxu0
      %v1996 = vadd.f32 %v458, %v1995
      %1997 = vmatmul.bf16.gmra.mxu0 %v800
      %v1998 = vpop.f32.mrf.mxu0
      %v1999 = vadd.f32 %v458, %v1998
      %v2000 = vpop.f32.mrf.mxu0
      %v2001 = vadd.f32 %v458, %v2000
      %2002 = vmatmul.bf16.gmra.mxu0 %v803
      %v2003 = vpop.f32.mrf.mxu0
      %v2004 = vadd.f32 %v458, %v2003
      %v2005 = vpop.f32.mrf.mxu0
      %v2006 = vadd.f32 %v458, %v2005
      %2007 = vmatmul.bf16.gmra.mxu0 %v806
      %v2008 = vpop.f32.mrf.mxu0
      %v2009 = vadd.f32 %v458, %v2008
      %v2010 = vpop.f32.mrf.mxu0
      %v2011 = vadd.f32 %v458, %v2010
      %2012 = vmatmul.bf16.gmra.mxu0 %v809
      %v2013 = vpop.f32.mrf.mxu0
      %v2014 = vadd.f32 %v458, %v2013
      %v2015 = vpop.f32.mrf.mxu0
      %v2016 = vadd.f32 %v458, %v2015
      %2017 = vmatmul.bf16.gmra.mxu0 %v812
      %v2018 = vpop.f32.mrf.mxu0
      %v2019 = vadd.f32 %v458, %v2018
      %v2020 = vpop.f32.mrf.mxu0
      %v2021 = vadd.f32 %v458, %v2020
      %2022 = vmatmul.bf16.gmra.mxu0 %v815
      %v2023 = vpop.f32.mrf.mxu0
      %v2024 = vadd.f32 %v458, %v2023
      %v2025 = vpop.f32.mrf.mxu0
      %v2026 = vadd.f32 %v458, %v2025
      %2027 = vmatmul.bf16.gmra.mxu0 %v818
      %v2028 = vpop.f32.mrf.mxu0
      %v2029 = vadd.f32 %v458, %v2028
      %v2030 = vpop.f32.mrf.mxu0
      %v2031 = vadd.f32 %v458, %v2030
      %2032 = vmatmul.bf16.gmra.mxu0 %v821
      %v2033 = vpop.f32.mrf.mxu0
      %v2034 = vadd.f32 %v458, %v2033
      %v2035 = vpop.f32.mrf.mxu0
      %v2036 = vadd.f32 %v458, %v2035
      %2037 = vmatmul.bf16.gmra.mxu0 %v824
      %v2038 = vpop.f32.mrf.mxu0
      %v2039 = vadd.f32 %v458, %v2038
      %v2040 = vpop.f32.mrf.mxu0
      %v2041 = vadd.f32 %v458, %v2040
      %2042 = vmatmul.bf16.gmra.mxu0 %v827
      %v2043 = vpop.f32.mrf.mxu0
      %v2044 = vadd.f32 %v458, %v2043
      %v2045 = vpop.f32.mrf.mxu0
      %v2046 = vadd.f32 %v458, %v2045
      %2047 = vmatmul.bf16.gmra.mxu0 %v830
      %v2048 = vpop.f32.mrf.mxu0
      %v2049 = vadd.f32 %v458, %v2048
      %v2050 = vpop.f32.mrf.mxu0
      %v2051 = vadd.f32 %v458, %v2050
      %2052 = vmatmul.bf16.gmra.mxu0 %v833
      %v2053 = vpop.f32.mrf.mxu0
      %v2054 = vadd.f32 %v458, %v2053
      %v2055 = vpop.f32.mrf.mxu0
      %v2056 = vadd.f32 %v458, %v2055
      %2057 = vmatmul.bf16.gmra.mxu0 %v836
      %v2058 = vpop.f32.mrf.mxu0
      %v2059 = vadd.f32 %v458, %v2058
      %v2060 = vpop.f32.mrf.mxu0
      %v2061 = vadd.f32 %v458, %v2060
      %2062 = vmatmul.bf16.gmra.mxu0 %v839
      %v2063 = vpop.f32.mrf.mxu0
      %v2064 = vadd.f32 %v458, %v2063
      %v2065 = vpop.f32.mrf.mxu0
      %v2066 = vadd.f32 %v458, %v2065
      %2067 = vmatmul.bf16.gmra.mxu0 %v842
      %v2068 = vpop.f32.mrf.mxu0
      %v2069 = vadd.f32 %v458, %v2068
      %v2070 = vpop.f32.mrf.mxu0
      %v2071 = vadd.f32 %v458, %v2070
      %2072 = vmatmul.bf16.gmra.mxu0 %v845
      %v2073 = vpop.f32.mrf.mxu0
      %v2074 = vadd.f32 %v458, %v2073
      %v2075 = vpop.f32.mrf.mxu0
      %v2076 = vadd.f32 %v458, %v2075
      %2077 = vmatmul.bf16.gmra.mxu0 %v848
      %v2078 = vpop.f32.mrf.mxu0
      %v2079 = vadd.f32 %v458, %v2078
      %v2080 = vpop.f32.mrf.mxu0
      %v2081 = vadd.f32 %v458, %v2080
      %2082 = vmatmul.bf16.gmra.mxu0 %v851
      %v2083 = vpop.f32.mrf.mxu0
      %v2084 = vadd.f32 %v458, %v2083
      %v2085 = vpop.f32.mrf.mxu0
      %v2086 = vadd.f32 %v458, %v2085
      %2087 = vmatmul.bf16.gmra.mxu0 %v854
      %v2088 = vpop.f32.mrf.mxu0
      %v2089 = vadd.f32 %v458, %v2088
      %v2090 = vpop.f32.mrf.mxu0
      %v2091 = vadd.f32 %v458, %v2090
      %2092 = vmatmul.bf16.gmra.mxu0 %v857
      %v2093 = vpop.f32.mrf.mxu0
      %v2094 = vadd.f32 %v458, %v2093
      %v2095 = vpop.f32.mrf.mxu0
      %v2096 = vadd.f32 %v458, %v2095
      %2097 = vmatmul.bf16.gmra.mxu0 %v860
      %v2098 = vpop.f32.mrf.mxu0
      %v2099 = vadd.f32 %v458, %v2098
      %v2100 = vpop.f32.mrf.mxu0
      %v2101 = vadd.f32 %v458, %v2100
      %2102 = vmatmul.bf16.gmra.mxu0 %v863
      %v2103 = vpop.f32.mrf.mxu0
      %v2104 = vadd.f32 %v458, %v2103
      %v2105 = vpop.f32.mrf.mxu0
      %v2106 = vadd.f32 %v458, %v2105
      %2107 = vmatmul.bf16.gmra.mxu0 %v866
      %v2108 = vpop.f32.mrf.mxu0
      %v2109 = vadd.f32 %v458, %v2108
      %v2110 = vpop.f32.mrf.mxu0
      %v2111 = vadd.f32 %v458, %v2110
      %2112 = vmatmul.bf16.gmra.mxu0 %v869
      %v2113 = vpop.f32.mrf.mxu0
      %v2114 = vadd.f32 %v458, %v2113
      %v2115 = vpop.f32.mrf.mxu0
      %v2116 = vadd.f32 %v458, %v2115
      %2117 = vmatmul.bf16.gmra.mxu0 %v872
      %v2118 = vpop.f32.mrf.mxu0
      %v2119 = vadd.f32 %v458, %v2118
      %v2120 = vpop.f32.mrf.mxu0
      %v2121 = vadd.f32 %v458, %v2120
      %2122 = vmatmul.bf16.gmra.mxu0 %v875
      %v2123 = vpop.f32.mrf.mxu0
      %v2124 = vadd.f32 %v458, %v2123
      %v2125 = vpop.f32.mrf.mxu0
      %v2126 = vadd.f32 %v458, %v2125
      %2127 = vmatmul.bf16.gmra.mxu0 %v878
      %v2128 = vpop.f32.mrf.mxu0
      %v2129 = vadd.f32 %v458, %v2128
      %v2130 = vpop.f32.mrf.mxu0
      %v2131 = vadd.f32 %v458, %v2130
      %2132 = vdwg.mxu0
      %2133 = vmatpush.bf16.msra.mxu0 %v1326
      %2134 = vmatpush.bf16.msra.mxu0 %v1322
      %2135 = vmatpush.bf16.msra.mxu0 %v1318
      %2136 = vmatpush.bf16.msra.mxu0 %v1314
      %2137 = vmatpush.bf16.msra.mxu0 %v1310
      %2138 = vmatpush.bf16.msra.mxu0 %v1306
      %2139 = vmatpush.bf16.msra.mxu0 %v1302
      %2140 = vmatpush.bf16.msra.mxu0 %v1298
      %2141 = vmatmul.bf16.gmra.mxu0 %v786
      %v2142 = vpop.f32.mrf.mxu0
      %v2143 = vadd.f32 %v1974, %v2142
      %v2144 = vpop.f32.mrf.mxu0
      %v2145 = vadd.f32 %v1976, %v2144
      %2146 = vmatmul.bf16.gmra.mxu0 %v789
      %v2147 = vpop.f32.mrf.mxu0
      %v2148 = vadd.f32 %v1979, %v2147
      %v2149 = vpop.f32.mrf.mxu0
      %v2150 = vadd.f32 %v1981, %v2149
      %2151 = vmatmul.bf16.gmra.mxu0 %v792
      %v2152 = vpop.f32.mrf.mxu0
      %v2153 = vadd.f32 %v1984, %v2152
      %v2154 = vpop.f32.mrf.mxu0
      %v2155 = vadd.f32 %v1986, %v2154
      %2156 = vmatmul.bf16.gmra.mxu0 %v795
      %v2157 = vpop.f32.mrf.mxu0
      %v2158 = vadd.f32 %v1989, %v2157
      %v2159 = vpop.f32.mrf.mxu0
      %v2160 = vadd.f32 %v1991, %v2159
      %2161 = vmatmul.bf16.gmra.mxu0 %v798
      %v2162 = vpop.f32.mrf.mxu0
      %v2163 = vadd.f32 %v1994, %v2162
      %v2164 = vpop.f32.mrf.mxu0
      %v2165 = vadd.f32 %v1996, %v2164
      %2166 = vmatmul.bf16.gmra.mxu0 %v801
      %v2167 = vpop.f32.mrf.mxu0
      %v2168 = vadd.f32 %v1999, %v2167
      %v2169 = vpop.f32.mrf.mxu0
      %v2170 = vadd.f32 %v2001, %v2169
      %2171 = vmatmul.bf16.gmra.mxu0 %v804
      %v2172 = vpop.f32.mrf.mxu0
      %v2173 = vadd.f32 %v2004, %v2172
      %v2174 = vpop.f32.mrf.mxu0
      %v2175 = vadd.f32 %v2006, %v2174
      %2176 = vmatmul.bf16.gmra.mxu0 %v807
      %v2177 = vpop.f32.mrf.mxu0
      %v2178 = vadd.f32 %v2009, %v2177
      %v2179 = vpop.f32.mrf.mxu0
      %v2180 = vadd.f32 %v2011, %v2179
      %2181 = vmatmul.bf16.gmra.mxu0 %v810
      %v2182 = vpop.f32.mrf.mxu0
      %v2183 = vadd.f32 %v2014, %v2182
      %v2184 = vpop.f32.mrf.mxu0
      %v2185 = vadd.f32 %v2016, %v2184
      %2186 = vmatmul.bf16.gmra.mxu0 %v813
      %v2187 = vpop.f32.mrf.mxu0
      %v2188 = vadd.f32 %v2019, %v2187
      %v2189 = vpop.f32.mrf.mxu0
      %v2190 = vadd.f32 %v2021, %v2189
      %2191 = vmatmul.bf16.gmra.mxu0 %v816
      %v2192 = vpop.f32.mrf.mxu0
      %v2193 = vadd.f32 %v2024, %v2192
      %v2194 = vpop.f32.mrf.mxu0
      %v2195 = vadd.f32 %v2026, %v2194
      %2196 = vmatmul.bf16.gmra.mxu0 %v819
      %v2197 = vpop.f32.mrf.mxu0
      %v2198 = vadd.f32 %v2029, %v2197
      %v2199 = vpop.f32.mrf.mxu0
      %v2200 = vadd.f32 %v2031, %v2199
      %2201 = vmatmul.bf16.gmra.mxu0 %v822
      %v2202 = vpop.f32.mrf.mxu0
      %v2203 = vadd.f32 %v2034, %v2202
      %v2204 = vpop.f32.mrf.mxu0
      %v2205 = vadd.f32 %v2036, %v2204
      %2206 = vmatmul.bf16.gmra.mxu0 %v825
      %v2207 = vpop.f32.mrf.mxu0
      %v2208 = vadd.f32 %v2039, %v2207
      %v2209 = vpop.f32.mrf.mxu0
      %v2210 = vadd.f32 %v2041, %v2209
      %2211 = vmatmul.bf16.gmra.mxu0 %v828
      %v2212 = vpop.f32.mrf.mxu0
      %v2213 = vadd.f32 %v2044, %v2212
      %v2214 = vpop.f32.mrf.mxu0
      %v2215 = vadd.f32 %v2046, %v2214
      %2216 = vmatmul.bf16.gmra.mxu0 %v831
      %v2217 = vpop.f32.mrf.mxu0
      %v2218 = vadd.f32 %v2049, %v2217
      %v2219 = vpop.f32.mrf.mxu0
      %v2220 = vadd.f32 %v2051, %v2219
      %2221 = vmatmul.bf16.gmra.mxu0 %v834
      %v2222 = vpop.f32.mrf.mxu0
      %v2223 = vadd.f32 %v2054, %v2222
      %v2224 = vpop.f32.mrf.mxu0
      %v2225 = vadd.f32 %v2056, %v2224
      %2226 = vmatmul.bf16.gmra.mxu0 %v837
      %v2227 = vpop.f32.mrf.mxu0
      %v2228 = vadd.f32 %v2059, %v2227
      %v2229 = vpop.f32.mrf.mxu0
      %v2230 = vadd.f32 %v2061, %v2229
      %2231 = vmatmul.bf16.gmra.mxu0 %v840
      %v2232 = vpop.f32.mrf.mxu0
      %v2233 = vadd.f32 %v2064, %v2232
      %v2234 = vpop.f32.mrf.mxu0
      %v2235 = vadd.f32 %v2066, %v2234
      %2236 = vmatmul.bf16.gmra.mxu0 %v843
      %v2237 = vpop.f32.mrf.mxu0
      %v2238 = vadd.f32 %v2069, %v2237
      %v2239 = vpop.f32.mrf.mxu0
      %v2240 = vadd.f32 %v2071, %v2239
      %2241 = vmatmul.bf16.gmra.mxu0 %v846
      %v2242 = vpop.f32.mrf.mxu0
      %v2243 = vadd.f32 %v2074, %v2242
      %v2244 = vpop.f32.mrf.mxu0
      %v2245 = vadd.f32 %v2076, %v2244
      %2246 = vmatmul.bf16.gmra.mxu0 %v849
      %v2247 = vpop.f32.mrf.mxu0
      %v2248 = vadd.f32 %v2079, %v2247
      %v2249 = vpop.f32.mrf.mxu0
      %v2250 = vadd.f32 %v2081, %v2249
      %2251 = vmatmul.bf16.gmra.mxu0 %v852
      %v2252 = vpop.f32.mrf.mxu0
      %v2253 = vadd.f32 %v2084, %v2252
      %v2254 = vpop.f32.mrf.mxu0
      %v2255 = vadd.f32 %v2086, %v2254
      %2256 = vmatmul.bf16.gmra.mxu0 %v855
      %v2257 = vpop.f32.mrf.mxu0
      %v2258 = vadd.f32 %v2089, %v2257
      %v2259 = vpop.f32.mrf.mxu0
      %v2260 = vadd.f32 %v2091, %v2259
      %2261 = vmatmul.bf16.gmra.mxu0 %v858
      %v2262 = vpop.f32.mrf.mxu0
      %v2263 = vadd.f32 %v2094, %v2262
      %v2264 = vpop.f32.mrf.mxu0
      %v2265 = vadd.f32 %v2096, %v2264
      %2266 = vmatmul.bf16.gmra.mxu0 %v861
      %v2267 = vpop.f32.mrf.mxu0
      %v2268 = vadd.f32 %v2099, %v2267
      %v2269 = vpop.f32.mrf.mxu0
      %v2270 = vadd.f32 %v2101, %v2269
      %2271 = vmatmul.bf16.gmra.mxu0 %v864
      %v2272 = vpop.f32.mrf.mxu0
      %v2273 = vadd.f32 %v2104, %v2272
      %v2274 = vpop.f32.mrf.mxu0
      %v2275 = vadd.f32 %v2106, %v2274
      %2276 = vmatmul.bf16.gmra.mxu0 %v867
      %v2277 = vpop.f32.mrf.mxu0
      %v2278 = vadd.f32 %v2109, %v2277
      %v2279 = vpop.f32.mrf.mxu0
      %v2280 = vadd.f32 %v2111, %v2279
      %2281 = vmatmul.bf16.gmra.mxu0 %v870
      %v2282 = vpop.f32.mrf.mxu0
      %v2283 = vadd.f32 %v2114, %v2282
      %v2284 = vpop.f32.mrf.mxu0
      %v2285 = vadd.f32 %v2116, %v2284
      %2286 = vmatmul.bf16.gmra.mxu0 %v873
      %v2287 = vpop.f32.mrf.mxu0
      %v2288 = vadd.f32 %v2119, %v2287
      %v2289 = vpop.f32.mrf.mxu0
      %v2290 = vadd.f32 %v2121, %v2289
      %2291 = vmatmul.bf16.gmra.mxu0 %v876
      %v2292 = vpop.f32.mrf.mxu0
      %v2293 = vadd.f32 %v2124, %v2292
      %v2294 = vpop.f32.mrf.mxu0
      %v2295 = vadd.f32 %v2126, %v2294
      %2296 = vmatmul.bf16.gmra.mxu0 %v879
      %v2297 = vpop.f32.mrf.mxu0
      %v2298 = vadd.f32 %v2129, %v2297
      %v2299 = vpop.f32.mrf.mxu0
      %v2300 = vadd.f32 %v2131, %v2299
      %2301 = vdwg.mxu0
      %2302 = vmatpush.bf16.msra.mxu0 %v1358
      %2303 = vmatpush.bf16.msra.mxu0 %v1354
      %2304 = vmatpush.bf16.msra.mxu0 %v1350
      %2305 = vmatpush.bf16.msra.mxu0 %v1346
      %2306 = vmatpush.bf16.msra.mxu0 %v1342
      %2307 = vmatpush.bf16.msra.mxu0 %v1338
      %2308 = vmatpush.bf16.msra.mxu0 %v1334
      %2309 = vmatpush.bf16.msra.mxu0 %v1330
      %2310 = vmatmul.bf16.gmra.mxu0 %v787
      %v2311 = vpop.f32.mrf.mxu0
      %v2312 = vadd.f32 %v2143, %v2311
      %v2313 = vpop.f32.mrf.mxu0
      %v2314 = vadd.f32 %v2145, %v2313
      %2315 = vmatmul.bf16.gmra.mxu0 %v790
      %v2316 = vpop.f32.mrf.mxu0
      %v2317 = vadd.f32 %v2148, %v2316
      %v2318 = vpop.f32.mrf.mxu0
      %v2319 = vadd.f32 %v2150, %v2318
      %2320 = vmatmul.bf16.gmra.mxu0 %v793
      %v2321 = vpop.f32.mrf.mxu0
      %v2322 = vadd.f32 %v2153, %v2321
      %v2323 = vpop.f32.mrf.mxu0
      %v2324 = vadd.f32 %v2155, %v2323
      %2325 = vmatmul.bf16.gmra.mxu0 %v796
      %v2326 = vpop.f32.mrf.mxu0
      %v2327 = vadd.f32 %v2158, %v2326
      %v2328 = vpop.f32.mrf.mxu0
      %v2329 = vadd.f32 %v2160, %v2328
      %2330 = vmatmul.bf16.gmra.mxu0 %v799
      %v2331 = vpop.f32.mrf.mxu0
      %v2332 = vadd.f32 %v2163, %v2331
      %v2333 = vpop.f32.mrf.mxu0
      %v2334 = vadd.f32 %v2165, %v2333
      %2335 = vmatmul.bf16.gmra.mxu0 %v802
      %v2336 = vpop.f32.mrf.mxu0
      %v2337 = vadd.f32 %v2168, %v2336
      %v2338 = vpop.f32.mrf.mxu0
      %v2339 = vadd.f32 %v2170, %v2338
      %2340 = vmatmul.bf16.gmra.mxu0 %v805
      %v2341 = vpop.f32.mrf.mxu0
      %v2342 = vadd.f32 %v2173, %v2341
      %v2343 = vpop.f32.mrf.mxu0
      %v2344 = vadd.f32 %v2175, %v2343
      %2345 = vmatmul.bf16.gmra.mxu0 %v808
      %v2346 = vpop.f32.mrf.mxu0
      %v2347 = vadd.f32 %v2178, %v2346
      %v2348 = vpop.f32.mrf.mxu0
      %v2349 = vadd.f32 %v2180, %v2348
      %2350 = vmatmul.bf16.gmra.mxu0 %v811
      %v2351 = vpop.f32.mrf.mxu0
      %v2352 = vadd.f32 %v2183, %v2351
      %v2353 = vpop.f32.mrf.mxu0
      %v2354 = vadd.f32 %v2185, %v2353
      %2355 = vmatmul.bf16.gmra.mxu0 %v814
      %v2356 = vpop.f32.mrf.mxu0
      %v2357 = vadd.f32 %v2188, %v2356
      %v2358 = vpop.f32.mrf.mxu0
      %v2359 = vadd.f32 %v2190, %v2358
      %2360 = vmatmul.bf16.gmra.mxu0 %v817
      %v2361 = vpop.f32.mrf.mxu0
      %v2362 = vadd.f32 %v2193, %v2361
      %v2363 = vpop.f32.mrf.mxu0
      %v2364 = vadd.f32 %v2195, %v2363
      %2365 = vmatmul.bf16.gmra.mxu0 %v820
      %v2366 = vpop.f32.mrf.mxu0
      %v2367 = vadd.f32 %v2198, %v2366
      %v2368 = vpop.f32.mrf.mxu0
      %v2369 = vadd.f32 %v2200, %v2368
      %2370 = vmatmul.bf16.gmra.mxu0 %v823
      %v2371 = vpop.f32.mrf.mxu0
      %v2372 = vadd.f32 %v2203, %v2371
      %v2373 = vpop.f32.mrf.mxu0
      %v2374 = vadd.f32 %v2205, %v2373
      %2375 = vmatmul.bf16.gmra.mxu0 %v826
      %v2376 = vpop.f32.mrf.mxu0
      %v2377 = vadd.f32 %v2208, %v2376
      %v2378 = vpop.f32.mrf.mxu0
      %v2379 = vadd.f32 %v2210, %v2378
      %2380 = vmatmul.bf16.gmra.mxu0 %v829
      %v2381 = vpop.f32.mrf.mxu0
      %v2382 = vadd.f32 %v2213, %v2381
      %v2383 = vpop.f32.mrf.mxu0
      %v2384 = vadd.f32 %v2215, %v2383
      %2385 = vmatmul.bf16.gmra.mxu0 %v832
      %v2386 = vpop.f32.mrf.mxu0
      %v2387 = vadd.f32 %v2218, %v2386
      %v2388 = vpop.f32.mrf.mxu0
      %v2389 = vadd.f32 %v2220, %v2388
      %2390 = vmatmul.bf16.gmra.mxu0 %v835
      %v2391 = vpop.f32.mrf.mxu0
      %v2392 = vadd.f32 %v2223, %v2391
      %v2393 = vpop.f32.mrf.mxu0
      %v2394 = vadd.f32 %v2225, %v2393
      %2395 = vmatmul.bf16.gmra.mxu0 %v838
      %v2396 = vpop.f32.mrf.mxu0
      %v2397 = vadd.f32 %v2228, %v2396
      %v2398 = vpop.f32.mrf.mxu0
      %v2399 = vadd.f32 %v2230, %v2398
      %2400 = vmatmul.bf16.gmra.mxu0 %v841
      %v2401 = vpop.f32.mrf.mxu0
      %v2402 = vadd.f32 %v2233, %v2401
      %v2403 = vpop.f32.mrf.mxu0
      %v2404 = vadd.f32 %v2235, %v2403
      %2405 = vmatmul.bf16.gmra.mxu0 %v844
      %v2406 = vpop.f32.mrf.mxu0
      %v2407 = vadd.f32 %v2238, %v2406
      %v2408 = vpop.f32.mrf.mxu0
      %v2409 = vadd.f32 %v2240, %v2408
      %2410 = vmatmul.bf16.gmra.mxu0 %v847
      %v2411 = vpop.f32.mrf.mxu0
      %v2412 = vadd.f32 %v2243, %v2411
      %v2413 = vpop.f32.mrf.mxu0
      %v2414 = vadd.f32 %v2245, %v2413
      %2415 = vmatmul.bf16.gmra.mxu0 %v850
      %v2416 = vpop.f32.mrf.mxu0
      %v2417 = vadd.f32 %v2248, %v2416
      %v2418 = vpop.f32.mrf.mxu0
      %v2419 = vadd.f32 %v2250, %v2418
      %2420 = vmatmul.bf16.gmra.mxu0 %v853
      %v2421 = vpop.f32.mrf.mxu0
      %v2422 = vadd.f32 %v2253, %v2421
      %v2423 = vpop.f32.mrf.mxu0
      %v2424 = vadd.f32 %v2255, %v2423
      %2425 = vmatmul.bf16.gmra.mxu0 %v856
      %v2426 = vpop.f32.mrf.mxu0
      %v2427 = vadd.f32 %v2258, %v2426
      %v2428 = vpop.f32.mrf.mxu0
      %v2429 = vadd.f32 %v2260, %v2428
      %2430 = vmatmul.bf16.gmra.mxu0 %v859
      %v2431 = vpop.f32.mrf.mxu0
      %v2432 = vadd.f32 %v2263, %v2431
      %v2433 = vpop.f32.mrf.mxu0
      %v2434 = vadd.f32 %v2265, %v2433
      %2435 = vmatmul.bf16.gmra.mxu0 %v862
      %v2436 = vpop.f32.mrf.mxu0
      %v2437 = vadd.f32 %v2268, %v2436
      %v2438 = vpop.f32.mrf.mxu0
      %v2439 = vadd.f32 %v2270, %v2438
      %2440 = vmatmul.bf16.gmra.mxu0 %v865
      %v2441 = vpop.f32.mrf.mxu0
      %v2442 = vadd.f32 %v2273, %v2441
      %v2443 = vpop.f32.mrf.mxu0
      %v2444 = vadd.f32 %v2275, %v2443
      %2445 = vmatmul.bf16.gmra.mxu0 %v868
      %v2446 = vpop.f32.mrf.mxu0
      %v2447 = vadd.f32 %v2278, %v2446
      %v2448 = vpop.f32.mrf.mxu0
      %v2449 = vadd.f32 %v2280, %v2448
      %2450 = vmatmul.bf16.gmra.mxu0 %v871
      %v2451 = vpop.f32.mrf.mxu0
      %v2452 = vadd.f32 %v2283, %v2451
      %v2453 = vpop.f32.mrf.mxu0
      %v2454 = vadd.f32 %v2285, %v2453
      %2455 = vmatmul.bf16.gmra.mxu0 %v874
      %v2456 = vpop.f32.mrf.mxu0
      %v2457 = vadd.f32 %v2288, %v2456
      %v2458 = vpop.f32.mrf.mxu0
      %v2459 = vadd.f32 %v2290, %v2458
      %2460 = vmatmul.bf16.gmra.mxu0 %v877
      %v2461 = vpop.f32.mrf.mxu0
      %v2462 = vadd.f32 %v2293, %v2461
      %v2463 = vpop.f32.mrf.mxu0
      %v2464 = vadd.f32 %v2295, %v2463
      %2465 = vmatmul.bf16.gmra.mxu0 %v880
      %v2466 = vpop.f32.mrf.mxu0
      %v2467 = vadd.f32 %v2298, %v2466
      %v2468 = vpop.f32.mrf.mxu0
      %v2469 = vadd.f32 %v2300, %v2468
      %2470 = vdwg.mxu0
      %2471 = vmatpush.bf16.msra.mxu0 %v1295
      %2472 = vmatpush.bf16.msra.mxu0 %v1291
      %2473 = vmatpush.bf16.msra.mxu0 %v1287
      %2474 = vmatpush.bf16.msra.mxu0 %v1283
      %2475 = vmatpush.bf16.msra.mxu0 %v1279
      %2476 = vmatpush.bf16.msra.mxu0 %v1275
      %2477 = vmatpush.bf16.msra.mxu0 %v1271
      %2478 = vmatpush.bf16.msra.mxu0 %v1267
      %2479 = vmatmul.bf16.gmra.mxu0 %v785
      %v2480 = vpop.f32.mrf.mxu0
      %v2481 = vadd.f32 %v459, %v2480
      %v2482 = vpop.f32.mrf.mxu0
      %v2483 = vadd.f32 %v459, %v2482
      %2484 = vmatmul.bf16.gmra.mxu0 %v788
      %v2485 = vpop.f32.mrf.mxu0
      %v2486 = vadd.f32 %v459, %v2485
      %v2487 = vpop.f32.mrf.mxu0
      %v2488 = vadd.f32 %v459, %v2487
      %2489 = vmatmul.bf16.gmra.mxu0 %v791
      %v2490 = vpop.f32.mrf.mxu0
      %v2491 = vadd.f32 %v459, %v2490
      %v2492 = vpop.f32.mrf.mxu0
      %v2493 = vadd.f32 %v459, %v2492
      %2494 = vmatmul.bf16.gmra.mxu0 %v794
      %v2495 = vpop.f32.mrf.mxu0
      %v2496 = vadd.f32 %v459, %v2495
      %v2497 = vpop.f32.mrf.mxu0
      %v2498 = vadd.f32 %v459, %v2497
      %2499 = vmatmul.bf16.gmra.mxu0 %v797
      %v2500 = vpop.f32.mrf.mxu0
      %v2501 = vadd.f32 %v459, %v2500
      %v2502 = vpop.f32.mrf.mxu0
      %v2503 = vadd.f32 %v459, %v2502
      %2504 = vmatmul.bf16.gmra.mxu0 %v800
      %v2505 = vpop.f32.mrf.mxu0
      %v2506 = vadd.f32 %v459, %v2505
      %v2507 = vpop.f32.mrf.mxu0
      %v2508 = vadd.f32 %v459, %v2507
      %2509 = vmatmul.bf16.gmra.mxu0 %v803
      %v2510 = vpop.f32.mrf.mxu0
      %v2511 = vadd.f32 %v459, %v2510
      %v2512 = vpop.f32.mrf.mxu0
      %v2513 = vadd.f32 %v459, %v2512
      %2514 = vmatmul.bf16.gmra.mxu0 %v806
      %v2515 = vpop.f32.mrf.mxu0
      %v2516 = vadd.f32 %v459, %v2515
      %v2517 = vpop.f32.mrf.mxu0
      %v2518 = vadd.f32 %v459, %v2517
      %2519 = vmatmul.bf16.gmra.mxu0 %v809
      %v2520 = vpop.f32.mrf.mxu0
      %v2521 = vadd.f32 %v459, %v2520
      %v2522 = vpop.f32.mrf.mxu0
      %v2523 = vadd.f32 %v459, %v2522
      %2524 = vmatmul.bf16.gmra.mxu0 %v812
      %v2525 = vpop.f32.mrf.mxu0
      %v2526 = vadd.f32 %v459, %v2525
      %v2527 = vpop.f32.mrf.mxu0
      %v2528 = vadd.f32 %v459, %v2527
      %2529 = vmatmul.bf16.gmra.mxu0 %v815
      %v2530 = vpop.f32.mrf.mxu0
      %v2531 = vadd.f32 %v459, %v2530
      %v2532 = vpop.f32.mrf.mxu0
      %v2533 = vadd.f32 %v459, %v2532
      %2534 = vmatmul.bf16.gmra.mxu0 %v818
      %v2535 = vpop.f32.mrf.mxu0
      %v2536 = vadd.f32 %v459, %v2535
      %v2537 = vpop.f32.mrf.mxu0
      %v2538 = vadd.f32 %v459, %v2537
      %2539 = vmatmul.bf16.gmra.mxu0 %v821
      %v2540 = vpop.f32.mrf.mxu0
      %v2541 = vadd.f32 %v459, %v2540
      %v2542 = vpop.f32.mrf.mxu0
      %v2543 = vadd.f32 %v459, %v2542
      %2544 = vmatmul.bf16.gmra.mxu0 %v824
      %v2545 = vpop.f32.mrf.mxu0
      %v2546 = vadd.f32 %v459, %v2545
      %v2547 = vpop.f32.mrf.mxu0
      %v2548 = vadd.f32 %v459, %v2547
      %2549 = vmatmul.bf16.gmra.mxu0 %v827
      %v2550 = vpop.f32.mrf.mxu0
      %v2551 = vadd.f32 %v459, %v2550
      %v2552 = vpop.f32.mrf.mxu0
      %v2553 = vadd.f32 %v459, %v2552
      %2554 = vmatmul.bf16.gmra.mxu0 %v830
      %v2555 = vpop.f32.mrf.mxu0
      %v2556 = vadd.f32 %v459, %v2555
      %v2557 = vpop.f32.mrf.mxu0
      %v2558 = vadd.f32 %v459, %v2557
      %2559 = vmatmul.bf16.gmra.mxu0 %v833
      %v2560 = vpop.f32.mrf.mxu0
      %v2561 = vadd.f32 %v459, %v2560
      %v2562 = vpop.f32.mrf.mxu0
      %v2563 = vadd.f32 %v459, %v2562
      %2564 = vmatmul.bf16.gmra.mxu0 %v836
      %v2565 = vpop.f32.mrf.mxu0
      %v2566 = vadd.f32 %v459, %v2565
      %v2567 = vpop.f32.mrf.mxu0
      %v2568 = vadd.f32 %v459, %v2567
      %2569 = vmatmul.bf16.gmra.mxu0 %v839
      %v2570 = vpop.f32.mrf.mxu0
      %v2571 = vadd.f32 %v459, %v2570
      %v2572 = vpop.f32.mrf.mxu0
      %v2573 = vadd.f32 %v459, %v2572
      %2574 = vmatmul.bf16.gmra.mxu0 %v842
      %v2575 = vpop.f32.mrf.mxu0
      %v2576 = vadd.f32 %v459, %v2575
      %v2577 = vpop.f32.mrf.mxu0
      %v2578 = vadd.f32 %v459, %v2577
      %2579 = vmatmul.bf16.gmra.mxu0 %v845
      %v2580 = vpop.f32.mrf.mxu0
      %v2581 = vadd.f32 %v459, %v2580
      %v2582 = vpop.f32.mrf.mxu0
      %v2583 = vadd.f32 %v459, %v2582
      %2584 = vmatmul.bf16.gmra.mxu0 %v848
      %v2585 = vpop.f32.mrf.mxu0
      %v2586 = vadd.f32 %v459, %v2585
      %v2587 = vpop.f32.mrf.mxu0
      %v2588 = vadd.f32 %v459, %v2587
      %2589 = vmatmul.bf16.gmra.mxu0 %v851
      %v2590 = vpop.f32.mrf.mxu0
      %v2591 = vadd.f32 %v459, %v2590
      %v2592 = vpop.f32.mrf.mxu0
      %v2593 = vadd.f32 %v459, %v2592
      %2594 = vmatmul.bf16.gmra.mxu0 %v854
      %v2595 = vpop.f32.mrf.mxu0
      %v2596 = vadd.f32 %v459, %v2595
      %v2597 = vpop.f32.mrf.mxu0
      %v2598 = vadd.f32 %v459, %v2597
      %2599 = vmatmul.bf16.gmra.mxu0 %v857
      %v2600 = vpop.f32.mrf.mxu0
      %v2601 = vadd.f32 %v459, %v2600
      %v2602 = vpop.f32.mrf.mxu0
      %v2603 = vadd.f32 %v459, %v2602
      %2604 = vmatmul.bf16.gmra.mxu0 %v860
      %v2605 = vpop.f32.mrf.mxu0
      %v2606 = vadd.f32 %v459, %v2605
      %v2607 = vpop.f32.mrf.mxu0
      %v2608 = vadd.f32 %v459, %v2607
      %2609 = vmatmul.bf16.gmra.mxu0 %v863
      %v2610 = vpop.f32.mrf.mxu0
      %v2611 = vadd.f32 %v459, %v2610
      %v2612 = vpop.f32.mrf.mxu0
      %v2613 = vadd.f32 %v459, %v2612
      %2614 = vmatmul.bf16.gmra.mxu0 %v866
      %v2615 = vpop.f32.mrf.mxu0
      %v2616 = vadd.f32 %v459, %v2615
      %v2617 = vpop.f32.mrf.mxu0
      %v2618 = vadd.f32 %v459, %v2617
      %2619 = vmatmul.bf16.gmra.mxu0 %v869
      %v2620 = vpop.f32.mrf.mxu0
      %v2621 = vadd.f32 %v459, %v2620
      %v2622 = vpop.f32.mrf.mxu0
      %v2623 = vadd.f32 %v459, %v2622
      %2624 = vmatmul.bf16.gmra.mxu0 %v872
      %v2625 = vpop.f32.mrf.mxu0
      %v2626 = vadd.f32 %v459, %v2625
      %v2627 = vpop.f32.mrf.mxu0
      %v2628 = vadd.f32 %v459, %v2627
      %2629 = vmatmul.bf16.gmra.mxu0 %v875
      %v2630 = vpop.f32.mrf.mxu0
      %v2631 = vadd.f32 %v459, %v2630
      %v2632 = vpop.f32.mrf.mxu0
      %v2633 = vadd.f32 %v459, %v2632
      %2634 = vmatmul.bf16.gmra.mxu0 %v878
      %v2635 = vpop.f32.mrf.mxu0
      %v2636 = vadd.f32 %v459, %v2635
      %v2637 = vpop.f32.mrf.mxu0
      %v2638 = vadd.f32 %v459, %v2637
      %2639 = vdwg.mxu0
      %2640 = vmatpush.bf16.msra.mxu0 %v1327
      %2641 = vmatpush.bf16.msra.mxu0 %v1323
      %2642 = vmatpush.bf16.msra.mxu0 %v1319
      %2643 = vmatpush.bf16.msra.mxu0 %v1315
      %2644 = vmatpush.bf16.msra.mxu0 %v1311
      %2645 = vmatpush.bf16.msra.mxu0 %v1307
      %2646 = vmatpush.bf16.msra.mxu0 %v1303
      %2647 = vmatpush.bf16.msra.mxu0 %v1299
      %2648 = vmatmul.bf16.gmra.mxu0 %v786
      %v2649 = vpop.f32.mrf.mxu0
      %v2650 = vadd.f32 %v2481, %v2649
      %v2651 = vpop.f32.mrf.mxu0
      %v2652 = vadd.f32 %v2483, %v2651
      %2653 = vmatmul.bf16.gmra.mxu0 %v789
      %v2654 = vpop.f32.mrf.mxu0
      %v2655 = vadd.f32 %v2486, %v2654
      %v2656 = vpop.f32.mrf.mxu0
      %v2657 = vadd.f32 %v2488, %v2656
      %2658 = vmatmul.bf16.gmra.mxu0 %v792
      %v2659 = vpop.f32.mrf.mxu0
      %v2660 = vadd.f32 %v2491, %v2659
      %v2661 = vpop.f32.mrf.mxu0
      %v2662 = vadd.f32 %v2493, %v2661
      %2663 = vmatmul.bf16.gmra.mxu0 %v795
      %v2664 = vpop.f32.mrf.mxu0
      %v2665 = vadd.f32 %v2496, %v2664
      %v2666 = vpop.f32.mrf.mxu0
      %v2667 = vadd.f32 %v2498, %v2666
      %2668 = vmatmul.bf16.gmra.mxu0 %v798
      %v2669 = vpop.f32.mrf.mxu0
      %v2670 = vadd.f32 %v2501, %v2669
      %v2671 = vpop.f32.mrf.mxu0
      %v2672 = vadd.f32 %v2503, %v2671
      %2673 = vmatmul.bf16.gmra.mxu0 %v801
      %v2674 = vpop.f32.mrf.mxu0
      %v2675 = vadd.f32 %v2506, %v2674
      %v2676 = vpop.f32.mrf.mxu0
      %v2677 = vadd.f32 %v2508, %v2676
      %2678 = vmatmul.bf16.gmra.mxu0 %v804
      %v2679 = vpop.f32.mrf.mxu0
      %v2680 = vadd.f32 %v2511, %v2679
      %v2681 = vpop.f32.mrf.mxu0
      %v2682 = vadd.f32 %v2513, %v2681
      %2683 = vmatmul.bf16.gmra.mxu0 %v807
      %v2684 = vpop.f32.mrf.mxu0
      %v2685 = vadd.f32 %v2516, %v2684
      %v2686 = vpop.f32.mrf.mxu0
      %v2687 = vadd.f32 %v2518, %v2686
      %2688 = vmatmul.bf16.gmra.mxu0 %v810
      %v2689 = vpop.f32.mrf.mxu0
      %v2690 = vadd.f32 %v2521, %v2689
      %v2691 = vpop.f32.mrf.mxu0
      %v2692 = vadd.f32 %v2523, %v2691
      %2693 = vmatmul.bf16.gmra.mxu0 %v813
      %v2694 = vpop.f32.mrf.mxu0
      %v2695 = vadd.f32 %v2526, %v2694
      %v2696 = vpop.f32.mrf.mxu0
      %v2697 = vadd.f32 %v2528, %v2696
      %2698 = vmatmul.bf16.gmra.mxu0 %v816
      %v2699 = vpop.f32.mrf.mxu0
      %v2700 = vadd.f32 %v2531, %v2699
      %v2701 = vpop.f32.mrf.mxu0
      %v2702 = vadd.f32 %v2533, %v2701
      %2703 = vmatmul.bf16.gmra.mxu0 %v819
      %v2704 = vpop.f32.mrf.mxu0
      %v2705 = vadd.f32 %v2536, %v2704
      %v2706 = vpop.f32.mrf.mxu0
      %v2707 = vadd.f32 %v2538, %v2706
      %2708 = vmatmul.bf16.gmra.mxu0 %v822
      %v2709 = vpop.f32.mrf.mxu0
      %v2710 = vadd.f32 %v2541, %v2709
      %v2711 = vpop.f32.mrf.mxu0
      %v2712 = vadd.f32 %v2543, %v2711
      %2713 = vmatmul.bf16.gmra.mxu0 %v825
      %v2714 = vpop.f32.mrf.mxu0
      %v2715 = vadd.f32 %v2546, %v2714
      %v2716 = vpop.f32.mrf.mxu0
      %v2717 = vadd.f32 %v2548, %v2716
      %2718 = vmatmul.bf16.gmra.mxu0 %v828
      %v2719 = vpop.f32.mrf.mxu0
      %v2720 = vadd.f32 %v2551, %v2719
      %v2721 = vpop.f32.mrf.mxu0
      %v2722 = vadd.f32 %v2553, %v2721
      %2723 = vmatmul.bf16.gmra.mxu0 %v831
      %v2724 = vpop.f32.mrf.mxu0
      %v2725 = vadd.f32 %v2556, %v2724
      %v2726 = vpop.f32.mrf.mxu0
      %v2727 = vadd.f32 %v2558, %v2726
      %2728 = vmatmul.bf16.gmra.mxu0 %v834
      %v2729 = vpop.f32.mrf.mxu0
      %v2730 = vadd.f32 %v2561, %v2729
      %v2731 = vpop.f32.mrf.mxu0
      %v2732 = vadd.f32 %v2563, %v2731
      %2733 = vmatmul.bf16.gmra.mxu0 %v837
      %v2734 = vpop.f32.mrf.mxu0
      %v2735 = vadd.f32 %v2566, %v2734
      %v2736 = vpop.f32.mrf.mxu0
      %v2737 = vadd.f32 %v2568, %v2736
      %2738 = vmatmul.bf16.gmra.mxu0 %v840
      %v2739 = vpop.f32.mrf.mxu0
      %v2740 = vadd.f32 %v2571, %v2739
      %v2741 = vpop.f32.mrf.mxu0
      %v2742 = vadd.f32 %v2573, %v2741
      %2743 = vmatmul.bf16.gmra.mxu0 %v843
      %v2744 = vpop.f32.mrf.mxu0
      %v2745 = vadd.f32 %v2576, %v2744
      %v2746 = vpop.f32.mrf.mxu0
      %v2747 = vadd.f32 %v2578, %v2746
      %2748 = vmatmul.bf16.gmra.mxu0 %v846
      %v2749 = vpop.f32.mrf.mxu0
      %v2750 = vadd.f32 %v2581, %v2749
      %v2751 = vpop.f32.mrf.mxu0
      %v2752 = vadd.f32 %v2583, %v2751
      %2753 = vmatmul.bf16.gmra.mxu0 %v849
      %v2754 = vpop.f32.mrf.mxu0
      %v2755 = vadd.f32 %v2586, %v2754
      %v2756 = vpop.f32.mrf.mxu0
      %v2757 = vadd.f32 %v2588, %v2756
      %2758 = vmatmul.bf16.gmra.mxu0 %v852
      %v2759 = vpop.f32.mrf.mxu0
      %v2760 = vadd.f32 %v2591, %v2759
      %v2761 = vpop.f32.mrf.mxu0
      %v2762 = vadd.f32 %v2593, %v2761
      %2763 = vmatmul.bf16.gmra.mxu0 %v855
      %v2764 = vpop.f32.mrf.mxu0
      %v2765 = vadd.f32 %v2596, %v2764
      %v2766 = vpop.f32.mrf.mxu0
      %v2767 = vadd.f32 %v2598, %v2766
      %2768 = vmatmul.bf16.gmra.mxu0 %v858
      %v2769 = vpop.f32.mrf.mxu0
      %v2770 = vadd.f32 %v2601, %v2769
      %v2771 = vpop.f32.mrf.mxu0
      %v2772 = vadd.f32 %v2603, %v2771
      %2773 = vmatmul.bf16.gmra.mxu0 %v861
      %v2774 = vpop.f32.mrf.mxu0
      %v2775 = vadd.f32 %v2606, %v2774
      %v2776 = vpop.f32.mrf.mxu0
      %v2777 = vadd.f32 %v2608, %v2776
      %2778 = vmatmul.bf16.gmra.mxu0 %v864
      %v2779 = vpop.f32.mrf.mxu0
      %v2780 = vadd.f32 %v2611, %v2779
      %v2781 = vpop.f32.mrf.mxu0
      %v2782 = vadd.f32 %v2613, %v2781
      %2783 = vmatmul.bf16.gmra.mxu0 %v867
      %v2784 = vpop.f32.mrf.mxu0
      %v2785 = vadd.f32 %v2616, %v2784
      %v2786 = vpop.f32.mrf.mxu0
      %v2787 = vadd.f32 %v2618, %v2786
      %2788 = vmatmul.bf16.gmra.mxu0 %v870
      %v2789 = vpop.f32.mrf.mxu0
      %v2790 = vadd.f32 %v2621, %v2789
      %v2791 = vpop.f32.mrf.mxu0
      %v2792 = vadd.f32 %v2623, %v2791
      %2793 = vmatmul.bf16.gmra.mxu0 %v873
      %v2794 = vpop.f32.mrf.mxu0
      %v2795 = vadd.f32 %v2626, %v2794
      %v2796 = vpop.f32.mrf.mxu0
      %v2797 = vadd.f32 %v2628, %v2796
      %2798 = vmatmul.bf16.gmra.mxu0 %v876
      %v2799 = vpop.f32.mrf.mxu0
      %v2800 = vadd.f32 %v2631, %v2799
      %v2801 = vpop.f32.mrf.mxu0
      %v2802 = vadd.f32 %v2633, %v2801
      %2803 = vmatmul.bf16.gmra.mxu0 %v879
      %v2804 = vpop.f32.mrf.mxu0
      %v2805 = vadd.f32 %v2636, %v2804
      %v2806 = vpop.f32.mrf.mxu0
      %v2807 = vadd.f32 %v2638, %v2806
      %2808 = vdwg.mxu0
      %2809 = vmatpush.bf16.msra.mxu0 %v1359
      %2810 = vmatpush.bf16.msra.mxu0 %v1355
      %2811 = vmatpush.bf16.msra.mxu0 %v1351
      %2812 = vmatpush.bf16.msra.mxu0 %v1347
      %2813 = vmatpush.bf16.msra.mxu0 %v1343
      %2814 = vmatpush.bf16.msra.mxu0 %v1339
      %2815 = vmatpush.bf16.msra.mxu0 %v1335
      %2816 = vmatpush.bf16.msra.mxu0 %v1331
      %2817 = vmatmul.bf16.gmra.mxu0 %v787
      %v2818 = vpop.f32.mrf.mxu0
      %v2819 = vadd.f32 %v2650, %v2818
      %v2820 = vpop.f32.mrf.mxu0
      %v2821 = vadd.f32 %v2652, %v2820
      %2822 = vmatmul.bf16.gmra.mxu0 %v790
      %v2823 = vpop.f32.mrf.mxu0
      %v2824 = vadd.f32 %v2655, %v2823
      %v2825 = vpop.f32.mrf.mxu0
      %v2826 = vadd.f32 %v2657, %v2825
      %2827 = vmatmul.bf16.gmra.mxu0 %v793
      %v2828 = vpop.f32.mrf.mxu0
      %v2829 = vadd.f32 %v2660, %v2828
      %v2830 = vpop.f32.mrf.mxu0
      %v2831 = vadd.f32 %v2662, %v2830
      %2832 = vmatmul.bf16.gmra.mxu0 %v796
      %v2833 = vpop.f32.mrf.mxu0
      %v2834 = vadd.f32 %v2665, %v2833
      %v2835 = vpop.f32.mrf.mxu0
      %v2836 = vadd.f32 %v2667, %v2835
      %2837 = vmatmul.bf16.gmra.mxu0 %v799
      %v2838 = vpop.f32.mrf.mxu0
      %v2839 = vadd.f32 %v2670, %v2838
      %v2840 = vpop.f32.mrf.mxu0
      %v2841 = vadd.f32 %v2672, %v2840
      %2842 = vmatmul.bf16.gmra.mxu0 %v802
      %v2843 = vpop.f32.mrf.mxu0
      %v2844 = vadd.f32 %v2675, %v2843
      %v2845 = vpop.f32.mrf.mxu0
      %v2846 = vadd.f32 %v2677, %v2845
      %2847 = vmatmul.bf16.gmra.mxu0 %v805
      %v2848 = vpop.f32.mrf.mxu0
      %v2849 = vadd.f32 %v2680, %v2848
      %v2850 = vpop.f32.mrf.mxu0
      %v2851 = vadd.f32 %v2682, %v2850
      %2852 = vmatmul.bf16.gmra.mxu0 %v808
      %v2853 = vpop.f32.mrf.mxu0
      %v2854 = vadd.f32 %v2685, %v2853
      %v2855 = vpop.f32.mrf.mxu0
      %v2856 = vadd.f32 %v2687, %v2855
      %2857 = vmatmul.bf16.gmra.mxu0 %v811
      %v2858 = vpop.f32.mrf.mxu0
      %v2859 = vadd.f32 %v2690, %v2858
      %v2860 = vpop.f32.mrf.mxu0
      %v2861 = vadd.f32 %v2692, %v2860
      %2862 = vmatmul.bf16.gmra.mxu0 %v814
      %v2863 = vpop.f32.mrf.mxu0
      %v2864 = vadd.f32 %v2695, %v2863
      %v2865 = vpop.f32.mrf.mxu0
      %v2866 = vadd.f32 %v2697, %v2865
      %2867 = vmatmul.bf16.gmra.mxu0 %v817
      %v2868 = vpop.f32.mrf.mxu0
      %v2869 = vadd.f32 %v2700, %v2868
      %v2870 = vpop.f32.mrf.mxu0
      %v2871 = vadd.f32 %v2702, %v2870
      %2872 = vmatmul.bf16.gmra.mxu0 %v820
      %v2873 = vpop.f32.mrf.mxu0
      %v2874 = vadd.f32 %v2705, %v2873
      %v2875 = vpop.f32.mrf.mxu0
      %v2876 = vadd.f32 %v2707, %v2875
      %2877 = vmatmul.bf16.gmra.mxu0 %v823
      %v2878 = vpop.f32.mrf.mxu0
      %v2879 = vadd.f32 %v2710, %v2878
      %v2880 = vpop.f32.mrf.mxu0
      %v2881 = vadd.f32 %v2712, %v2880
      %2882 = vmatmul.bf16.gmra.mxu0 %v826
      %v2883 = vpop.f32.mrf.mxu0
      %v2884 = vadd.f32 %v2715, %v2883
      %v2885 = vpop.f32.mrf.mxu0
      %v2886 = vadd.f32 %v2717, %v2885
      %2887 = vmatmul.bf16.gmra.mxu0 %v829
      %v2888 = vpop.f32.mrf.mxu0
      %v2889 = vadd.f32 %v2720, %v2888
      %v2890 = vpop.f32.mrf.mxu0
      %v2891 = vadd.f32 %v2722, %v2890
      %2892 = vmatmul.bf16.gmra.mxu0 %v832
      %v2893 = vpop.f32.mrf.mxu0
      %v2894 = vadd.f32 %v2725, %v2893
      %v2895 = vpop.f32.mrf.mxu0
      %v2896 = vadd.f32 %v2727, %v2895
      %2897 = vmatmul.bf16.gmra.mxu0 %v835
      %v2898 = vpop.f32.mrf.mxu0
      %v2899 = vadd.f32 %v2730, %v2898
      %v2900 = vpop.f32.mrf.mxu0
      %v2901 = vadd.f32 %v2732, %v2900
      %2902 = vmatmul.bf16.gmra.mxu0 %v838
      %v2903 = vpop.f32.mrf.mxu0
      %v2904 = vadd.f32 %v2735, %v2903
      %v2905 = vpop.f32.mrf.mxu0
      %v2906 = vadd.f32 %v2737, %v2905
      %2907 = vmatmul.bf16.gmra.mxu0 %v841
      %v2908 = vpop.f32.mrf.mxu0
      %v2909 = vadd.f32 %v2740, %v2908
      %v2910 = vpop.f32.mrf.mxu0
      %v2911 = vadd.f32 %v2742, %v2910
      %2912 = vmatmul.bf16.gmra.mxu0 %v844
      %v2913 = vpop.f32.mrf.mxu0
      %v2914 = vadd.f32 %v2745, %v2913
      %v2915 = vpop.f32.mrf.mxu0
      %v2916 = vadd.f32 %v2747, %v2915
      %2917 = vmatmul.bf16.gmra.mxu0 %v847
      %v2918 = vpop.f32.mrf.mxu0
      %v2919 = vadd.f32 %v2750, %v2918
      %v2920 = vpop.f32.mrf.mxu0
      %v2921 = vadd.f32 %v2752, %v2920
      %2922 = vmatmul.bf16.gmra.mxu0 %v850
      %v2923 = vpop.f32.mrf.mxu0
      %v2924 = vadd.f32 %v2755, %v2923
      %v2925 = vpop.f32.mrf.mxu0
      %v2926 = vadd.f32 %v2757, %v2925
      %2927 = vmatmul.bf16.gmra.mxu0 %v853
      %v2928 = vpop.f32.mrf.mxu0
      %v2929 = vadd.f32 %v2760, %v2928
      %v2930 = vpop.f32.mrf.mxu0
      %v2931 = vadd.f32 %v2762, %v2930
      %2932 = vmatmul.bf16.gmra.mxu0 %v856
      %v2933 = vpop.f32.mrf.mxu0
      %v2934 = vadd.f32 %v2765, %v2933
      %v2935 = vpop.f32.mrf.mxu0
      %v2936 = vadd.f32 %v2767, %v2935
      %2937 = vmatmul.bf16.gmra.mxu0 %v859
      %v2938 = vpop.f32.mrf.mxu0
      %v2939 = vadd.f32 %v2770, %v2938
      %v2940 = vpop.f32.mrf.mxu0
      %v2941 = vadd.f32 %v2772, %v2940
      %2942 = vmatmul.bf16.gmra.mxu0 %v862
      %v2943 = vpop.f32.mrf.mxu0
      %v2944 = vadd.f32 %v2775, %v2943
      %v2945 = vpop.f32.mrf.mxu0
      %v2946 = vadd.f32 %v2777, %v2945
      %2947 = vmatmul.bf16.gmra.mxu0 %v865
      %v2948 = vpop.f32.mrf.mxu0
      %v2949 = vadd.f32 %v2780, %v2948
      %v2950 = vpop.f32.mrf.mxu0
      %v2951 = vadd.f32 %v2782, %v2950
      %2952 = vmatmul.bf16.gmra.mxu0 %v868
      %v2953 = vpop.f32.mrf.mxu0
      %v2954 = vadd.f32 %v2785, %v2953
      %v2955 = vpop.f32.mrf.mxu0
      %v2956 = vadd.f32 %v2787, %v2955
      %2957 = vmatmul.bf16.gmra.mxu0 %v871
      %v2958 = vpop.f32.mrf.mxu0
      %v2959 = vadd.f32 %v2790, %v2958
      %v2960 = vpop.f32.mrf.mxu0
      %v2961 = vadd.f32 %v2792, %v2960
      %2962 = vmatmul.bf16.gmra.mxu0 %v874
      %v2963 = vpop.f32.mrf.mxu0
      %v2964 = vadd.f32 %v2795, %v2963
      %v2965 = vpop.f32.mrf.mxu0
      %v2966 = vadd.f32 %v2797, %v2965
      %2967 = vmatmul.bf16.gmra.mxu0 %v877
      %v2968 = vpop.f32.mrf.mxu0
      %v2969 = vadd.f32 %v2800, %v2968
      %v2970 = vpop.f32.mrf.mxu0
      %v2971 = vadd.f32 %v2802, %v2970
      %2972 = vmatmul.bf16.gmra.mxu0 %v880
      %v2973 = vpop.f32.mrf.mxu0
      %v2974 = vadd.f32 %v2805, %v2973
      %v2975 = vpop.f32.mrf.mxu0
      %v2976 = vadd.f32 %v2807, %v2975
      %2977 = vdwg.mxu0
      %2978 = vmatpush.bf16.msra.mxu0 %v1296
      %2979 = vmatpush.bf16.msra.mxu0 %v1292
      %2980 = vmatpush.bf16.msra.mxu0 %v1288
      %2981 = vmatpush.bf16.msra.mxu0 %v1284
      %2982 = vmatpush.bf16.msra.mxu0 %v1280
      %2983 = vmatpush.bf16.msra.mxu0 %v1276
      %2984 = vmatpush.bf16.msra.mxu0 %v1272
      %2985 = vmatpush.bf16.msra.mxu0 %v1268
      %2986 = vmatmul.bf16.gmra.mxu0 %v785
      %v2987 = vpop.f32.mrf.mxu0
      %v2988 = vadd.f32 %v460, %v2987
      %v2989 = vpop.f32.mrf.mxu0
      %v2990 = vadd.f32 %v460, %v2989
      %2991 = vmatmul.bf16.gmra.mxu0 %v788
      %v2992 = vpop.f32.mrf.mxu0
      %v2993 = vadd.f32 %v460, %v2992
      %v2994 = vpop.f32.mrf.mxu0
      %v2995 = vadd.f32 %v460, %v2994
      %2996 = vmatmul.bf16.gmra.mxu0 %v791
      %v2997 = vpop.f32.mrf.mxu0
      %v2998 = vadd.f32 %v460, %v2997
      %v2999 = vpop.f32.mrf.mxu0
      %v3000 = vadd.f32 %v460, %v2999
      %3001 = vmatmul.bf16.gmra.mxu0 %v794
      %v3002 = vpop.f32.mrf.mxu0
      %v3003 = vadd.f32 %v460, %v3002
      %v3004 = vpop.f32.mrf.mxu0
      %v3005 = vadd.f32 %v460, %v3004
      %3006 = vmatmul.bf16.gmra.mxu0 %v797
      %v3007 = vpop.f32.mrf.mxu0
      %v3008 = vadd.f32 %v460, %v3007
      %v3009 = vpop.f32.mrf.mxu0
      %v3010 = vadd.f32 %v460, %v3009
      %3011 = vmatmul.bf16.gmra.mxu0 %v800
      %v3012 = vpop.f32.mrf.mxu0
      %v3013 = vadd.f32 %v460, %v3012
      %v3014 = vpop.f32.mrf.mxu0
      %v3015 = vadd.f32 %v460, %v3014
      %3016 = vmatmul.bf16.gmra.mxu0 %v803
      %v3017 = vpop.f32.mrf.mxu0
      %v3018 = vadd.f32 %v460, %v3017
      %v3019 = vpop.f32.mrf.mxu0
      %v3020 = vadd.f32 %v460, %v3019
      %3021 = vmatmul.bf16.gmra.mxu0 %v806
      %v3022 = vpop.f32.mrf.mxu0
      %v3023 = vadd.f32 %v460, %v3022
      %v3024 = vpop.f32.mrf.mxu0
      %v3025 = vadd.f32 %v460, %v3024
      %3026 = vmatmul.bf16.gmra.mxu0 %v809
      %v3027 = vpop.f32.mrf.mxu0
      %v3028 = vadd.f32 %v460, %v3027
      %v3029 = vpop.f32.mrf.mxu0
      %v3030 = vadd.f32 %v460, %v3029
      %3031 = vmatmul.bf16.gmra.mxu0 %v812
      %v3032 = vpop.f32.mrf.mxu0
      %v3033 = vadd.f32 %v460, %v3032
      %v3034 = vpop.f32.mrf.mxu0
      %v3035 = vadd.f32 %v460, %v3034
      %3036 = vmatmul.bf16.gmra.mxu0 %v815
      %v3037 = vpop.f32.mrf.mxu0
      %v3038 = vadd.f32 %v460, %v3037
      %v3039 = vpop.f32.mrf.mxu0
      %v3040 = vadd.f32 %v460, %v3039
      %3041 = vmatmul.bf16.gmra.mxu0 %v818
      %v3042 = vpop.f32.mrf.mxu0
      %v3043 = vadd.f32 %v460, %v3042
      %v3044 = vpop.f32.mrf.mxu0
      %v3045 = vadd.f32 %v460, %v3044
      %3046 = vmatmul.bf16.gmra.mxu0 %v821
      %v3047 = vpop.f32.mrf.mxu0
      %v3048 = vadd.f32 %v460, %v3047
      %v3049 = vpop.f32.mrf.mxu0
      %v3050 = vadd.f32 %v460, %v3049
      %3051 = vmatmul.bf16.gmra.mxu0 %v824
      %v3052 = vpop.f32.mrf.mxu0
      %v3053 = vadd.f32 %v460, %v3052
      %v3054 = vpop.f32.mrf.mxu0
      %v3055 = vadd.f32 %v460, %v3054
      %3056 = vmatmul.bf16.gmra.mxu0 %v827
      %v3057 = vpop.f32.mrf.mxu0
      %v3058 = vadd.f32 %v460, %v3057
      %v3059 = vpop.f32.mrf.mxu0
      %v3060 = vadd.f32 %v460, %v3059
      %3061 = vmatmul.bf16.gmra.mxu0 %v830
      %v3062 = vpop.f32.mrf.mxu0
      %v3063 = vadd.f32 %v460, %v3062
      %v3064 = vpop.f32.mrf.mxu0
      %v3065 = vadd.f32 %v460, %v3064
      %3066 = vmatmul.bf16.gmra.mxu0 %v833
      %v3067 = vpop.f32.mrf.mxu0
      %v3068 = vadd.f32 %v460, %v3067
      %v3069 = vpop.f32.mrf.mxu0
      %v3070 = vadd.f32 %v460, %v3069
      %3071 = vmatmul.bf16.gmra.mxu0 %v836
      %v3072 = vpop.f32.mrf.mxu0
      %v3073 = vadd.f32 %v460, %v3072
      %v3074 = vpop.f32.mrf.mxu0
      %v3075 = vadd.f32 %v460, %v3074
      %3076 = vmatmul.bf16.gmra.mxu0 %v839
      %v3077 = vpop.f32.mrf.mxu0
      %v3078 = vadd.f32 %v460, %v3077
      %v3079 = vpop.f32.mrf.mxu0
      %v3080 = vadd.f32 %v460, %v3079
      %3081 = vmatmul.bf16.gmra.mxu0 %v842
      %v3082 = vpop.f32.mrf.mxu0
      %v3083 = vadd.f32 %v460, %v3082
      %v3084 = vpop.f32.mrf.mxu0
      %v3085 = vadd.f32 %v460, %v3084
      %3086 = vmatmul.bf16.gmra.mxu0 %v845
      %v3087 = vpop.f32.mrf.mxu0
      %v3088 = vadd.f32 %v460, %v3087
      %v3089 = vpop.f32.mrf.mxu0
      %v3090 = vadd.f32 %v460, %v3089
      %3091 = vmatmul.bf16.gmra.mxu0 %v848
      %v3092 = vpop.f32.mrf.mxu0
      %v3093 = vadd.f32 %v460, %v3092
      %v3094 = vpop.f32.mrf.mxu0
      %v3095 = vadd.f32 %v460, %v3094
      %3096 = vmatmul.bf16.gmra.mxu0 %v851
      %v3097 = vpop.f32.mrf.mxu0
      %v3098 = vadd.f32 %v460, %v3097
      %v3099 = vpop.f32.mrf.mxu0
      %v3100 = vadd.f32 %v460, %v3099
      %3101 = vmatmul.bf16.gmra.mxu0 %v854
      %v3102 = vpop.f32.mrf.mxu0
      %v3103 = vadd.f32 %v460, %v3102
      %v3104 = vpop.f32.mrf.mxu0
      %v3105 = vadd.f32 %v460, %v3104
      %3106 = vmatmul.bf16.gmra.mxu0 %v857
      %v3107 = vpop.f32.mrf.mxu0
      %v3108 = vadd.f32 %v460, %v3107
      %v3109 = vpop.f32.mrf.mxu0
      %v3110 = vadd.f32 %v460, %v3109
      %3111 = vmatmul.bf16.gmra.mxu0 %v860
      %v3112 = vpop.f32.mrf.mxu0
      %v3113 = vadd.f32 %v460, %v3112
      %v3114 = vpop.f32.mrf.mxu0
      %v3115 = vadd.f32 %v460, %v3114
      %3116 = vmatmul.bf16.gmra.mxu0 %v863
      %v3117 = vpop.f32.mrf.mxu0
      %v3118 = vadd.f32 %v460, %v3117
      %v3119 = vpop.f32.mrf.mxu0
      %v3120 = vadd.f32 %v460, %v3119
      %3121 = vmatmul.bf16.gmra.mxu0 %v866
      %v3122 = vpop.f32.mrf.mxu0
      %v3123 = vadd.f32 %v460, %v3122
      %v3124 = vpop.f32.mrf.mxu0
      %v3125 = vadd.f32 %v460, %v3124
      %3126 = vmatmul.bf16.gmra.mxu0 %v869
      %v3127 = vpop.f32.mrf.mxu0
      %v3128 = vadd.f32 %v460, %v3127
      %v3129 = vpop.f32.mrf.mxu0
      %v3130 = vadd.f32 %v460, %v3129
      %3131 = vmatmul.bf16.gmra.mxu0 %v872
      %v3132 = vpop.f32.mrf.mxu0
      %v3133 = vadd.f32 %v460, %v3132
      %v3134 = vpop.f32.mrf.mxu0
      %v3135 = vadd.f32 %v460, %v3134
      %3136 = vmatmul.bf16.gmra.mxu0 %v875
      %v3137 = vpop.f32.mrf.mxu0
      %v3138 = vadd.f32 %v460, %v3137
      %v3139 = vpop.f32.mrf.mxu0
      %v3140 = vadd.f32 %v460, %v3139
      %3141 = vmatmul.bf16.gmra.mxu0 %v878
      %v3142 = vpop.f32.mrf.mxu0
      %v3143 = vadd.f32 %v460, %v3142
      %v3144 = vpop.f32.mrf.mxu0
      %v3145 = vadd.f32 %v460, %v3144
      %3146 = vdwg.mxu0
      %3147 = vmatpush.bf16.msra.mxu0 %v1328
      %3148 = vmatpush.bf16.msra.mxu0 %v1324
      %3149 = vmatpush.bf16.msra.mxu0 %v1320
      %3150 = vmatpush.bf16.msra.mxu0 %v1316
      %3151 = vmatpush.bf16.msra.mxu0 %v1312
      %3152 = vmatpush.bf16.msra.mxu0 %v1308
      %3153 = vmatpush.bf16.msra.mxu0 %v1304
      %3154 = vmatpush.bf16.msra.mxu0 %v1300
      %3155 = vmatmul.bf16.gmra.mxu0 %v786
      %v3156 = vpop.f32.mrf.mxu0
      %v3157 = vadd.f32 %v2988, %v3156
      %v3158 = vpop.f32.mrf.mxu0
      %v3159 = vadd.f32 %v2990, %v3158
      %3160 = vmatmul.bf16.gmra.mxu0 %v789
      %v3161 = vpop.f32.mrf.mxu0
      %v3162 = vadd.f32 %v2993, %v3161
      %v3163 = vpop.f32.mrf.mxu0
      %v3164 = vadd.f32 %v2995, %v3163
      %3165 = vmatmul.bf16.gmra.mxu0 %v792
      %v3166 = vpop.f32.mrf.mxu0
      %v3167 = vadd.f32 %v2998, %v3166
      %v3168 = vpop.f32.mrf.mxu0
      %v3169 = vadd.f32 %v3000, %v3168
      %3170 = vmatmul.bf16.gmra.mxu0 %v795
      %v3171 = vpop.f32.mrf.mxu0
      %v3172 = vadd.f32 %v3003, %v3171
      %v3173 = vpop.f32.mrf.mxu0
      %v3174 = vadd.f32 %v3005, %v3173
      %3175 = vmatmul.bf16.gmra.mxu0 %v798
      %v3176 = vpop.f32.mrf.mxu0
      %v3177 = vadd.f32 %v3008, %v3176
      %v3178 = vpop.f32.mrf.mxu0
      %v3179 = vadd.f32 %v3010, %v3178
      %3180 = vmatmul.bf16.gmra.mxu0 %v801
      %v3181 = vpop.f32.mrf.mxu0
      %v3182 = vadd.f32 %v3013, %v3181
      %v3183 = vpop.f32.mrf.mxu0
      %v3184 = vadd.f32 %v3015, %v3183
      %3185 = vmatmul.bf16.gmra.mxu0 %v804
      %v3186 = vpop.f32.mrf.mxu0
      %v3187 = vadd.f32 %v3018, %v3186
      %v3188 = vpop.f32.mrf.mxu0
      %v3189 = vadd.f32 %v3020, %v3188
      %3190 = vmatmul.bf16.gmra.mxu0 %v807
      %v3191 = vpop.f32.mrf.mxu0
      %v3192 = vadd.f32 %v3023, %v3191
      %v3193 = vpop.f32.mrf.mxu0
      %v3194 = vadd.f32 %v3025, %v3193
      %3195 = vmatmul.bf16.gmra.mxu0 %v810
      %v3196 = vpop.f32.mrf.mxu0
      %v3197 = vadd.f32 %v3028, %v3196
      %v3198 = vpop.f32.mrf.mxu0
      %v3199 = vadd.f32 %v3030, %v3198
      %3200 = vmatmul.bf16.gmra.mxu0 %v813
      %v3201 = vpop.f32.mrf.mxu0
      %v3202 = vadd.f32 %v3033, %v3201
      %v3203 = vpop.f32.mrf.mxu0
      %v3204 = vadd.f32 %v3035, %v3203
      %3205 = vmatmul.bf16.gmra.mxu0 %v816
      %v3206 = vpop.f32.mrf.mxu0
      %v3207 = vadd.f32 %v3038, %v3206
      %v3208 = vpop.f32.mrf.mxu0
      %v3209 = vadd.f32 %v3040, %v3208
      %3210 = vmatmul.bf16.gmra.mxu0 %v819
      %v3211 = vpop.f32.mrf.mxu0
      %v3212 = vadd.f32 %v3043, %v3211
      %v3213 = vpop.f32.mrf.mxu0
      %v3214 = vadd.f32 %v3045, %v3213
      %3215 = vmatmul.bf16.gmra.mxu0 %v822
      %v3216 = vpop.f32.mrf.mxu0
      %v3217 = vadd.f32 %v3048, %v3216
      %v3218 = vpop.f32.mrf.mxu0
      %v3219 = vadd.f32 %v3050, %v3218
      %3220 = vmatmul.bf16.gmra.mxu0 %v825
      %v3221 = vpop.f32.mrf.mxu0
      %v3222 = vadd.f32 %v3053, %v3221
      %v3223 = vpop.f32.mrf.mxu0
      %v3224 = vadd.f32 %v3055, %v3223
      %3225 = vmatmul.bf16.gmra.mxu0 %v828
      %v3226 = vpop.f32.mrf.mxu0
      %v3227 = vadd.f32 %v3058, %v3226
      %v3228 = vpop.f32.mrf.mxu0
      %v3229 = vadd.f32 %v3060, %v3228
      %3230 = vmatmul.bf16.gmra.mxu0 %v831
      %v3231 = vpop.f32.mrf.mxu0
      %v3232 = vadd.f32 %v3063, %v3231
      %v3233 = vpop.f32.mrf.mxu0
      %v3234 = vadd.f32 %v3065, %v3233
      %3235 = vmatmul.bf16.gmra.mxu0 %v834
      %v3236 = vpop.f32.mrf.mxu0
      %v3237 = vadd.f32 %v3068, %v3236
      %v3238 = vpop.f32.mrf.mxu0
      %v3239 = vadd.f32 %v3070, %v3238
      %3240 = vmatmul.bf16.gmra.mxu0 %v837
      %v3241 = vpop.f32.mrf.mxu0
      %v3242 = vadd.f32 %v3073, %v3241
      %v3243 = vpop.f32.mrf.mxu0
      %v3244 = vadd.f32 %v3075, %v3243
      %3245 = vmatmul.bf16.gmra.mxu0 %v840
      %v3246 = vpop.f32.mrf.mxu0
      %v3247 = vadd.f32 %v3078, %v3246
      %v3248 = vpop.f32.mrf.mxu0
      %v3249 = vadd.f32 %v3080, %v3248
      %3250 = vmatmul.bf16.gmra.mxu0 %v843
      %v3251 = vpop.f32.mrf.mxu0
      %v3252 = vadd.f32 %v3083, %v3251
      %v3253 = vpop.f32.mrf.mxu0
      %v3254 = vadd.f32 %v3085, %v3253
      %3255 = vmatmul.bf16.gmra.mxu0 %v846
      %v3256 = vpop.f32.mrf.mxu0
      %v3257 = vadd.f32 %v3088, %v3256
      %v3258 = vpop.f32.mrf.mxu0
      %v3259 = vadd.f32 %v3090, %v3258
      %3260 = vmatmul.bf16.gmra.mxu0 %v849
      %v3261 = vpop.f32.mrf.mxu0
      %v3262 = vadd.f32 %v3093, %v3261
      %v3263 = vpop.f32.mrf.mxu0
      %v3264 = vadd.f32 %v3095, %v3263
      %3265 = vmatmul.bf16.gmra.mxu0 %v852
      %v3266 = vpop.f32.mrf.mxu0
      %v3267 = vadd.f32 %v3098, %v3266
      %v3268 = vpop.f32.mrf.mxu0
      %v3269 = vadd.f32 %v3100, %v3268
      %3270 = vmatmul.bf16.gmra.mxu0 %v855
      %v3271 = vpop.f32.mrf.mxu0
      %v3272 = vadd.f32 %v3103, %v3271
      %v3273 = vpop.f32.mrf.mxu0
      %v3274 = vadd.f32 %v3105, %v3273
      %3275 = vmatmul.bf16.gmra.mxu0 %v858
      %v3276 = vpop.f32.mrf.mxu0
      %v3277 = vadd.f32 %v3108, %v3276
      %v3278 = vpop.f32.mrf.mxu0
      %v3279 = vadd.f32 %v3110, %v3278
      %3280 = vmatmul.bf16.gmra.mxu0 %v861
      %v3281 = vpop.f32.mrf.mxu0
      %v3282 = vadd.f32 %v3113, %v3281
      %v3283 = vpop.f32.mrf.mxu0
      %v3284 = vadd.f32 %v3115, %v3283
      %3285 = vmatmul.bf16.gmra.mxu0 %v864
      %v3286 = vpop.f32.mrf.mxu0
      %v3287 = vadd.f32 %v3118, %v3286
      %v3288 = vpop.f32.mrf.mxu0
      %v3289 = vadd.f32 %v3120, %v3288
      %3290 = vmatmul.bf16.gmra.mxu0 %v867
      %v3291 = vpop.f32.mrf.mxu0
      %v3292 = vadd.f32 %v3123, %v3291
      %v3293 = vpop.f32.mrf.mxu0
      %v3294 = vadd.f32 %v3125, %v3293
      %3295 = vmatmul.bf16.gmra.mxu0 %v870
      %v3296 = vpop.f32.mrf.mxu0
      %v3297 = vadd.f32 %v3128, %v3296
      %v3298 = vpop.f32.mrf.mxu0
      %v3299 = vadd.f32 %v3130, %v3298
      %3300 = vmatmul.bf16.gmra.mxu0 %v873
      %v3301 = vpop.f32.mrf.mxu0
      %v3302 = vadd.f32 %v3133, %v3301
      %v3303 = vpop.f32.mrf.mxu0
      %v3304 = vadd.f32 %v3135, %v3303
      %3305 = vmatmul.bf16.gmra.mxu0 %v876
      %v3306 = vpop.f32.mrf.mxu0
      %v3307 = vadd.f32 %v3138, %v3306
      %v3308 = vpop.f32.mrf.mxu0
      %v3309 = vadd.f32 %v3140, %v3308
      %3310 = vmatmul.bf16.gmra.mxu0 %v879
      %v3311 = vpop.f32.mrf.mxu0
      %v3312 = vadd.f32 %v3143, %v3311
      %v3313 = vpop.f32.mrf.mxu0
      %v3314 = vadd.f32 %v3145, %v3313
      %3315 = vdwg.mxu0
      %3316 = vmatpush.bf16.msra.mxu0 %v1360
      %3317 = vmatpush.bf16.msra.mxu0 %v1356
      %3318 = vmatpush.bf16.msra.mxu0 %v1352
      %3319 = vmatpush.bf16.msra.mxu0 %v1348
      %3320 = vmatpush.bf16.msra.mxu0 %v1344
      %3321 = vmatpush.bf16.msra.mxu0 %v1340
      %3322 = vmatpush.bf16.msra.mxu0 %v1336
      %3323 = vmatpush.bf16.msra.mxu0 %v1332
      %3324 = vmatmul.bf16.gmra.mxu0 %v787
      %v3325 = vpop.f32.mrf.mxu0
      %v3326 = vadd.f32 %v3157, %v3325
      %v3327 = vpop.f32.mrf.mxu0
      %v3328 = vadd.f32 %v3159, %v3327
      %3329 = vmatmul.bf16.gmra.mxu0 %v790
      %v3330 = vpop.f32.mrf.mxu0
      %v3331 = vadd.f32 %v3162, %v3330
      %v3332 = vpop.f32.mrf.mxu0
      %v3333 = vadd.f32 %v3164, %v3332
      %3334 = vmatmul.bf16.gmra.mxu0 %v793
      %v3335 = vpop.f32.mrf.mxu0
      %v3336 = vadd.f32 %v3167, %v3335
      %v3337 = vpop.f32.mrf.mxu0
      %v3338 = vadd.f32 %v3169, %v3337
      %3339 = vmatmul.bf16.gmra.mxu0 %v796
      %v3340 = vpop.f32.mrf.mxu0
      %v3341 = vadd.f32 %v3172, %v3340
      %v3342 = vpop.f32.mrf.mxu0
      %v3343 = vadd.f32 %v3174, %v3342
      %3344 = vmatmul.bf16.gmra.mxu0 %v799
      %v3345 = vpop.f32.mrf.mxu0
      %v3346 = vadd.f32 %v3177, %v3345
      %v3347 = vpop.f32.mrf.mxu0
      %v3348 = vadd.f32 %v3179, %v3347
      %3349 = vmatmul.bf16.gmra.mxu0 %v802
      %v3350 = vpop.f32.mrf.mxu0
      %v3351 = vadd.f32 %v3182, %v3350
      %v3352 = vpop.f32.mrf.mxu0
      %v3353 = vadd.f32 %v3184, %v3352
      %3354 = vmatmul.bf16.gmra.mxu0 %v805
      %v3355 = vpop.f32.mrf.mxu0
      %v3356 = vadd.f32 %v3187, %v3355
      %v3357 = vpop.f32.mrf.mxu0
      %v3358 = vadd.f32 %v3189, %v3357
      %3359 = vmatmul.bf16.gmra.mxu0 %v808
      %v3360 = vpop.f32.mrf.mxu0
      %v3361 = vadd.f32 %v3192, %v3360
      %v3362 = vpop.f32.mrf.mxu0
      %v3363 = vadd.f32 %v3194, %v3362
      %3364 = vmatmul.bf16.gmra.mxu0 %v811
      %v3365 = vpop.f32.mrf.mxu0
      %v3366 = vadd.f32 %v3197, %v3365
      %v3367 = vpop.f32.mrf.mxu0
      %v3368 = vadd.f32 %v3199, %v3367
      %3369 = vmatmul.bf16.gmra.mxu0 %v814
      %v3370 = vpop.f32.mrf.mxu0
      %v3371 = vadd.f32 %v3202, %v3370
      %v3372 = vpop.f32.mrf.mxu0
      %v3373 = vadd.f32 %v3204, %v3372
      %3374 = vmatmul.bf16.gmra.mxu0 %v817
      %v3375 = vpop.f32.mrf.mxu0
      %v3376 = vadd.f32 %v3207, %v3375
      %v3377 = vpop.f32.mrf.mxu0
      %v3378 = vadd.f32 %v3209, %v3377
      %3379 = vmatmul.bf16.gmra.mxu0 %v820
      %v3380 = vpop.f32.mrf.mxu0
      %v3381 = vadd.f32 %v3212, %v3380
      %v3382 = vpop.f32.mrf.mxu0
      %v3383 = vadd.f32 %v3214, %v3382
      %3384 = vmatmul.bf16.gmra.mxu0 %v823
      %v3385 = vpop.f32.mrf.mxu0
      %v3386 = vadd.f32 %v3217, %v3385
      %v3387 = vpop.f32.mrf.mxu0
      %v3388 = vadd.f32 %v3219, %v3387
      %3389 = vmatmul.bf16.gmra.mxu0 %v826
      %v3390 = vpop.f32.mrf.mxu0
      %v3391 = vadd.f32 %v3222, %v3390
      %v3392 = vpop.f32.mrf.mxu0
      %v3393 = vadd.f32 %v3224, %v3392
      %3394 = vmatmul.bf16.gmra.mxu0 %v829
      %v3395 = vpop.f32.mrf.mxu0
      %v3396 = vadd.f32 %v3227, %v3395
      %v3397 = vpop.f32.mrf.mxu0
      %v3398 = vadd.f32 %v3229, %v3397
      %3399 = vmatmul.bf16.gmra.mxu0 %v832
      %v3400 = vpop.f32.mrf.mxu0
      %v3401 = vadd.f32 %v3232, %v3400
      %v3402 = vpop.f32.mrf.mxu0
      %v3403 = vadd.f32 %v3234, %v3402
      %3404 = vmatmul.bf16.gmra.mxu0 %v835
      %v3405 = vpop.f32.mrf.mxu0
      %v3406 = vadd.f32 %v3237, %v3405
      %v3407 = vpop.f32.mrf.mxu0
      %v3408 = vadd.f32 %v3239, %v3407
      %3409 = vmatmul.bf16.gmra.mxu0 %v838
      %v3410 = vpop.f32.mrf.mxu0
      %v3411 = vadd.f32 %v3242, %v3410
      %v3412 = vpop.f32.mrf.mxu0
      %v3413 = vadd.f32 %v3244, %v3412
      %3414 = vmatmul.bf16.gmra.mxu0 %v841
      %v3415 = vpop.f32.mrf.mxu0
      %v3416 = vadd.f32 %v3247, %v3415
      %v3417 = vpop.f32.mrf.mxu0
      %v3418 = vadd.f32 %v3249, %v3417
      %3419 = vmatmul.bf16.gmra.mxu0 %v844
      %v3420 = vpop.f32.mrf.mxu0
      %v3421 = vadd.f32 %v3252, %v3420
      %v3422 = vpop.f32.mrf.mxu0
      %v3423 = vadd.f32 %v3254, %v3422
      %3424 = vmatmul.bf16.gmra.mxu0 %v847
      %v3425 = vpop.f32.mrf.mxu0
      %v3426 = vadd.f32 %v3257, %v3425
      %v3427 = vpop.f32.mrf.mxu0
      %v3428 = vadd.f32 %v3259, %v3427
      %3429 = vmatmul.bf16.gmra.mxu0 %v850
      %v3430 = vpop.f32.mrf.mxu0
      %v3431 = vadd.f32 %v3262, %v3430
      %v3432 = vpop.f32.mrf.mxu0
      %v3433 = vadd.f32 %v3264, %v3432
      %3434 = vmatmul.bf16.gmra.mxu0 %v853
      %v3435 = vpop.f32.mrf.mxu0
      %v3436 = vadd.f32 %v3267, %v3435
      %v3437 = vpop.f32.mrf.mxu0
      %v3438 = vadd.f32 %v3269, %v3437
      %3439 = vmatmul.bf16.gmra.mxu0 %v856
      %v3440 = vpop.f32.mrf.mxu0
      %v3441 = vadd.f32 %v3272, %v3440
      %v3442 = vpop.f32.mrf.mxu0
      %v3443 = vadd.f32 %v3274, %v3442
      %3444 = vmatmul.bf16.gmra.mxu0 %v859
      %v3445 = vpop.f32.mrf.mxu0
      %v3446 = vadd.f32 %v3277, %v3445
      %v3447 = vpop.f32.mrf.mxu0
      %v3448 = vadd.f32 %v3279, %v3447
      %3449 = vmatmul.bf16.gmra.mxu0 %v862
      %v3450 = vpop.f32.mrf.mxu0
      %v3451 = vadd.f32 %v3282, %v3450
      %v3452 = vpop.f32.mrf.mxu0
      %v3453 = vadd.f32 %v3284, %v3452
      %3454 = vmatmul.bf16.gmra.mxu0 %v865
      %v3455 = vpop.f32.mrf.mxu0
      %v3456 = vadd.f32 %v3287, %v3455
      %v3457 = vpop.f32.mrf.mxu0
      %v3458 = vadd.f32 %v3289, %v3457
      %3459 = vmatmul.bf16.gmra.mxu0 %v868
      %v3460 = vpop.f32.mrf.mxu0
      %v3461 = vadd.f32 %v3292, %v3460
      %v3462 = vpop.f32.mrf.mxu0
      %v3463 = vadd.f32 %v3294, %v3462
      %3464 = vmatmul.bf16.gmra.mxu0 %v871
      %v3465 = vpop.f32.mrf.mxu0
      %v3466 = vadd.f32 %v3297, %v3465
      %v3467 = vpop.f32.mrf.mxu0
      %v3468 = vadd.f32 %v3299, %v3467
      %3469 = vmatmul.bf16.gmra.mxu0 %v874
      %v3470 = vpop.f32.mrf.mxu0
      %v3471 = vadd.f32 %v3302, %v3470
      %v3472 = vpop.f32.mrf.mxu0
      %v3473 = vadd.f32 %v3304, %v3472
      %3474 = vmatmul.bf16.gmra.mxu0 %v877
      %v3475 = vpop.f32.mrf.mxu0
      %v3476 = vadd.f32 %v3307, %v3475
      %v3477 = vpop.f32.mrf.mxu0
      %v3478 = vadd.f32 %v3309, %v3477
      %3479 = vmatmul.bf16.gmra.mxu0 %v880
      %v3480 = vpop.f32.mrf.mxu0
      %v3481 = vadd.f32 %v3312, %v3480
      %v3482 = vpop.f32.mrf.mxu0
      %v3483 = vadd.f32 %v3314, %v3482
      %3484 = vdwg.mxu0
      %vm3485 = vcmp.gt.f32.partialorder %v1805, 0.0
      %vm3486 = vcmp.gt.f32.partialorder %v2312, 0.0
      %vm3487 = vcmp.gt.f32.partialorder %v2819, 0.0
      %vm3488 = vcmp.gt.f32.partialorder %v3326, 0.0
      %vm3489 = vcmp.gt.f32.partialorder %v1807, 0.0
      %vm3490 = vcmp.gt.f32.partialorder %v2314, 0.0
      %vm3491 = vcmp.gt.f32.partialorder %v2821, 0.0
      %vm3492 = vcmp.gt.f32.partialorder %v3328, 0.0
      %vm3493 = vcmp.gt.f32.partialorder %v1810, 0.0
      %vm3494 = vcmp.gt.f32.partialorder %v2317, 0.0
      %vm3495 = vcmp.gt.f32.partialorder %v2824, 0.0
      %vm3496 = vcmp.gt.f32.partialorder %v3331, 0.0
      %vm3497 = vcmp.gt.f32.partialorder %v1812, 0.0
      %vm3498 = vcmp.gt.f32.partialorder %v2319, 0.0
      %vm3499 = vcmp.gt.f32.partialorder %v2826, 0.0
      %vm3500 = vcmp.gt.f32.partialorder %v3333, 0.0
      %vm3501 = vcmp.gt.f32.partialorder %v1815, 0.0
      %vm3502 = vcmp.gt.f32.partialorder %v2322, 0.0
      %vm3503 = vcmp.gt.f32.partialorder %v2829, 0.0
      %vm3504 = vcmp.gt.f32.partialorder %v3336, 0.0
      %vm3505 = vcmp.gt.f32.partialorder %v1817, 0.0
      %vm3506 = vcmp.gt.f32.partialorder %v2324, 0.0
      %vm3507 = vcmp.gt.f32.partialorder %v2831, 0.0
      %vm3508 = vcmp.gt.f32.partialorder %v3338, 0.0
      %vm3509 = vcmp.gt.f32.partialorder %v1820, 0.0
      %vm3510 = vcmp.gt.f32.partialorder %v2327, 0.0
      %vm3511 = vcmp.gt.f32.partialorder %v2834, 0.0
      %vm3512 = vcmp.gt.f32.partialorder %v3341, 0.0
      %vm3513 = vcmp.gt.f32.partialorder %v1822, 0.0
      %vm3514 = vcmp.gt.f32.partialorder %v2329, 0.0
      %vm3515 = vcmp.gt.f32.partialorder %v2836, 0.0
      %vm3516 = vcmp.gt.f32.partialorder %v3343, 0.0
      %vm3517 = vcmp.gt.f32.partialorder %v1825, 0.0
      %vm3518 = vcmp.gt.f32.partialorder %v2332, 0.0
      %vm3519 = vcmp.gt.f32.partialorder %v2839, 0.0
      %vm3520 = vcmp.gt.f32.partialorder %v3346, 0.0
      %vm3521 = vcmp.gt.f32.partialorder %v1827, 0.0
      %vm3522 = vcmp.gt.f32.partialorder %v2334, 0.0
      %vm3523 = vcmp.gt.f32.partialorder %v2841, 0.0
      %vm3524 = vcmp.gt.f32.partialorder %v3348, 0.0
      %vm3525 = vcmp.gt.f32.partialorder %v1830, 0.0
      %vm3526 = vcmp.gt.f32.partialorder %v2337, 0.0
      %vm3527 = vcmp.gt.f32.partialorder %v2844, 0.0
      %vm3528 = vcmp.gt.f32.partialorder %v3351, 0.0
      %vm3529 = vcmp.gt.f32.partialorder %v1832, 0.0
      %vm3530 = vcmp.gt.f32.partialorder %v2339, 0.0
      %vm3531 = vcmp.gt.f32.partialorder %v2846, 0.0
      %vm3532 = vcmp.gt.f32.partialorder %v3353, 0.0
      %vm3533 = vcmp.gt.f32.partialorder %v1835, 0.0
      %vm3534 = vcmp.gt.f32.partialorder %v2342, 0.0
      %vm3535 = vcmp.gt.f32.partialorder %v2849, 0.0
      %vm3536 = vcmp.gt.f32.partialorder %v3356, 0.0
      %vm3537 = vcmp.gt.f32.partialorder %v1837, 0.0
      %vm3538 = vcmp.gt.f32.partialorder %v2344, 0.0
      %vm3539 = vcmp.gt.f32.partialorder %v2851, 0.0
      %vm3540 = vcmp.gt.f32.partialorder %v3358, 0.0
      %vm3541 = vcmp.gt.f32.partialorder %v1840, 0.0
      %vm3542 = vcmp.gt.f32.partialorder %v2347, 0.0
      %vm3543 = vcmp.gt.f32.partialorder %v2854, 0.0
      %vm3544 = vcmp.gt.f32.partialorder %v3361, 0.0
      %vm3545 = vcmp.gt.f32.partialorder %v1842, 0.0
      %vm3546 = vcmp.gt.f32.partialorder %v2349, 0.0
      %vm3547 = vcmp.gt.f32.partialorder %v2856, 0.0
      %vm3548 = vcmp.gt.f32.partialorder %v3363, 0.0
      %vm3549 = vcmp.gt.f32.partialorder %v1845, 0.0
      %vm3550 = vcmp.gt.f32.partialorder %v2352, 0.0
      %vm3551 = vcmp.gt.f32.partialorder %v2859, 0.0
      %vm3552 = vcmp.gt.f32.partialorder %v3366, 0.0
      %vm3553 = vcmp.gt.f32.partialorder %v1847, 0.0
      %vm3554 = vcmp.gt.f32.partialorder %v2354, 0.0
      %vm3555 = vcmp.gt.f32.partialorder %v2861, 0.0
      %vm3556 = vcmp.gt.f32.partialorder %v3368, 0.0
      %vm3557 = vcmp.gt.f32.partialorder %v1850, 0.0
      %vm3558 = vcmp.gt.f32.partialorder %v2357, 0.0
      %vm3559 = vcmp.gt.f32.partialorder %v2864, 0.0
      %vm3560 = vcmp.gt.f32.partialorder %v3371, 0.0
      %vm3561 = vcmp.gt.f32.partialorder %v1852, 0.0
      %vm3562 = vcmp.gt.f32.partialorder %v2359, 0.0
      %vm3563 = vcmp.gt.f32.partialorder %v2866, 0.0
      %vm3564 = vcmp.gt.f32.partialorder %v3373, 0.0
      %vm3565 = vcmp.gt.f32.partialorder %v1855, 0.0
      %vm3566 = vcmp.gt.f32.partialorder %v2362, 0.0
      %vm3567 = vcmp.gt.f32.partialorder %v2869, 0.0
      %vm3568 = vcmp.gt.f32.partialorder %v3376, 0.0
      %vm3569 = vcmp.gt.f32.partialorder %v1857, 0.0
      %vm3570 = vcmp.gt.f32.partialorder %v2364, 0.0
      %vm3571 = vcmp.gt.f32.partialorder %v2871, 0.0
      %vm3572 = vcmp.gt.f32.partialorder %v3378, 0.0
      %vm3573 = vcmp.gt.f32.partialorder %v1860, 0.0
      %vm3574 = vcmp.gt.f32.partialorder %v2367, 0.0
      %vm3575 = vcmp.gt.f32.partialorder %v2874, 0.0
      %vm3576 = vcmp.gt.f32.partialorder %v3381, 0.0
      %vm3577 = vcmp.gt.f32.partialorder %v1862, 0.0
      %vm3578 = vcmp.gt.f32.partialorder %v2369, 0.0
      %vm3579 = vcmp.gt.f32.partialorder %v2876, 0.0
      %vm3580 = vcmp.gt.f32.partialorder %v3383, 0.0
      %vm3581 = vcmp.gt.f32.partialorder %v1865, 0.0
      %vm3582 = vcmp.gt.f32.partialorder %v2372, 0.0
      %vm3583 = vcmp.gt.f32.partialorder %v2879, 0.0
      %vm3584 = vcmp.gt.f32.partialorder %v3386, 0.0
      %vm3585 = vcmp.gt.f32.partialorder %v1867, 0.0
      %vm3586 = vcmp.gt.f32.partialorder %v2374, 0.0
      %vm3587 = vcmp.gt.f32.partialorder %v2881, 0.0
      %vm3588 = vcmp.gt.f32.partialorder %v3388, 0.0
      %vm3589 = vcmp.gt.f32.partialorder %v1870, 0.0
      %vm3590 = vcmp.gt.f32.partialorder %v2377, 0.0
      %vm3591 = vcmp.gt.f32.partialorder %v2884, 0.0
      %vm3592 = vcmp.gt.f32.partialorder %v3391, 0.0
      %vm3593 = vcmp.gt.f32.partialorder %v1872, 0.0
      %vm3594 = vcmp.gt.f32.partialorder %v2379, 0.0
      %vm3595 = vcmp.gt.f32.partialorder %v2886, 0.0
      %vm3596 = vcmp.gt.f32.partialorder %v3393, 0.0
      %vm3597 = vcmp.gt.f32.partialorder %v1875, 0.0
      %vm3598 = vcmp.gt.f32.partialorder %v2382, 0.0
      %vm3599 = vcmp.gt.f32.partialorder %v2889, 0.0
      %vm3600 = vcmp.gt.f32.partialorder %v3396, 0.0
      %vm3601 = vcmp.gt.f32.partialorder %v1877, 0.0
      %vm3602 = vcmp.gt.f32.partialorder %v2384, 0.0
      %vm3603 = vcmp.gt.f32.partialorder %v2891, 0.0
      %vm3604 = vcmp.gt.f32.partialorder %v3398, 0.0
      %vm3605 = vcmp.gt.f32.partialorder %v1880, 0.0
      %vm3606 = vcmp.gt.f32.partialorder %v2387, 0.0
      %vm3607 = vcmp.gt.f32.partialorder %v2894, 0.0
      %vm3608 = vcmp.gt.f32.partialorder %v3401, 0.0
      %vm3609 = vcmp.gt.f32.partialorder %v1882, 0.0
      %vm3610 = vcmp.gt.f32.partialorder %v2389, 0.0
      %vm3611 = vcmp.gt.f32.partialorder %v2896, 0.0
      %vm3612 = vcmp.gt.f32.partialorder %v3403, 0.0
      %vm3613 = vcmp.gt.f32.partialorder %v1885, 0.0
      %vm3614 = vcmp.gt.f32.partialorder %v2392, 0.0
      %vm3615 = vcmp.gt.f32.partialorder %v2899, 0.0
      %vm3616 = vcmp.gt.f32.partialorder %v3406, 0.0
      %vm3617 = vcmp.gt.f32.partialorder %v1887, 0.0
      %vm3618 = vcmp.gt.f32.partialorder %v2394, 0.0
      %vm3619 = vcmp.gt.f32.partialorder %v2901, 0.0
      %vm3620 = vcmp.gt.f32.partialorder %v3408, 0.0
      %vm3621 = vcmp.gt.f32.partialorder %v1890, 0.0
      %vm3622 = vcmp.gt.f32.partialorder %v2397, 0.0
      %vm3623 = vcmp.gt.f32.partialorder %v2904, 0.0
      %vm3624 = vcmp.gt.f32.partialorder %v3411, 0.0
      %vm3625 = vcmp.gt.f32.partialorder %v1892, 0.0
      %vm3626 = vcmp.gt.f32.partialorder %v2399, 0.0
      %vm3627 = vcmp.gt.f32.partialorder %v2906, 0.0
      %vm3628 = vcmp.gt.f32.partialorder %v3413, 0.0
      %vm3629 = vcmp.gt.f32.partialorder %v1895, 0.0
      %vm3630 = vcmp.gt.f32.partialorder %v2402, 0.0
      %vm3631 = vcmp.gt.f32.partialorder %v2909, 0.0
      %vm3632 = vcmp.gt.f32.partialorder %v3416, 0.0
      %vm3633 = vcmp.gt.f32.partialorder %v1897, 0.0
      %vm3634 = vcmp.gt.f32.partialorder %v2404, 0.0
      %vm3635 = vcmp.gt.f32.partialorder %v2911, 0.0
      %vm3636 = vcmp.gt.f32.partialorder %v3418, 0.0
      %vm3637 = vcmp.gt.f32.partialorder %v1900, 0.0
      %vm3638 = vcmp.gt.f32.partialorder %v2407, 0.0
      %vm3639 = vcmp.gt.f32.partialorder %v2914, 0.0
      %vm3640 = vcmp.gt.f32.partialorder %v3421, 0.0
      %vm3641 = vcmp.gt.f32.partialorder %v1902, 0.0
      %vm3642 = vcmp.gt.f32.partialorder %v2409, 0.0
      %vm3643 = vcmp.gt.f32.partialorder %v2916, 0.0
      %vm3644 = vcmp.gt.f32.partialorder %v3423, 0.0
      %vm3645 = vcmp.gt.f32.partialorder %v1905, 0.0
      %vm3646 = vcmp.gt.f32.partialorder %v2412, 0.0
      %vm3647 = vcmp.gt.f32.partialorder %v2919, 0.0
      %vm3648 = vcmp.gt.f32.partialorder %v3426, 0.0
      %vm3649 = vcmp.gt.f32.partialorder %v1907, 0.0
      %vm3650 = vcmp.gt.f32.partialorder %v2414, 0.0
      %vm3651 = vcmp.gt.f32.partialorder %v2921, 0.0
      %vm3652 = vcmp.gt.f32.partialorder %v3428, 0.0
      %vm3653 = vcmp.gt.f32.partialorder %v1910, 0.0
      %vm3654 = vcmp.gt.f32.partialorder %v2417, 0.0
      %vm3655 = vcmp.gt.f32.partialorder %v2924, 0.0
      %vm3656 = vcmp.gt.f32.partialorder %v3431, 0.0
      %vm3657 = vcmp.gt.f32.partialorder %v1912, 0.0
      %vm3658 = vcmp.gt.f32.partialorder %v2419, 0.0
      %vm3659 = vcmp.gt.f32.partialorder %v2926, 0.0
      %vm3660 = vcmp.gt.f32.partialorder %v3433, 0.0
      %vm3661 = vcmp.gt.f32.partialorder %v1915, 0.0
      %vm3662 = vcmp.gt.f32.partialorder %v2422, 0.0
      %vm3663 = vcmp.gt.f32.partialorder %v2929, 0.0
      %vm3664 = vcmp.gt.f32.partialorder %v3436, 0.0
      %vm3665 = vcmp.gt.f32.partialorder %v1917, 0.0
      %vm3666 = vcmp.gt.f32.partialorder %v2424, 0.0
      %vm3667 = vcmp.gt.f32.partialorder %v2931, 0.0
      %vm3668 = vcmp.gt.f32.partialorder %v3438, 0.0
      %vm3669 = vcmp.gt.f32.partialorder %v1920, 0.0
      %vm3670 = vcmp.gt.f32.partialorder %v2427, 0.0
      %vm3671 = vcmp.gt.f32.partialorder %v2934, 0.0
      %vm3672 = vcmp.gt.f32.partialorder %v3441, 0.0
      %vm3673 = vcmp.gt.f32.partialorder %v1922, 0.0
      %vm3674 = vcmp.gt.f32.partialorder %v2429, 0.0
      %vm3675 = vcmp.gt.f32.partialorder %v2936, 0.0
      %vm3676 = vcmp.gt.f32.partialorder %v3443, 0.0
      %vm3677 = vcmp.gt.f32.partialorder %v1925, 0.0
      %vm3678 = vcmp.gt.f32.partialorder %v2432, 0.0
      %vm3679 = vcmp.gt.f32.partialorder %v2939, 0.0
      %vm3680 = vcmp.gt.f32.partialorder %v3446, 0.0
      %vm3681 = vcmp.gt.f32.partialorder %v1927, 0.0
      %vm3682 = vcmp.gt.f32.partialorder %v2434, 0.0
      %vm3683 = vcmp.gt.f32.partialorder %v2941, 0.0
      %vm3684 = vcmp.gt.f32.partialorder %v3448, 0.0
      %vm3685 = vcmp.gt.f32.partialorder %v1930, 0.0
      %vm3686 = vcmp.gt.f32.partialorder %v2437, 0.0
      %vm3687 = vcmp.gt.f32.partialorder %v2944, 0.0
      %vm3688 = vcmp.gt.f32.partialorder %v3451, 0.0
      %vm3689 = vcmp.gt.f32.partialorder %v1932, 0.0
      %vm3690 = vcmp.gt.f32.partialorder %v2439, 0.0
      %vm3691 = vcmp.gt.f32.partialorder %v2946, 0.0
      %vm3692 = vcmp.gt.f32.partialorder %v3453, 0.0
      %vm3693 = vcmp.gt.f32.partialorder %v1935, 0.0
      %vm3694 = vcmp.gt.f32.partialorder %v2442, 0.0
      %vm3695 = vcmp.gt.f32.partialorder %v2949, 0.0
      %vm3696 = vcmp.gt.f32.partialorder %v3456, 0.0
      %vm3697 = vcmp.gt.f32.partialorder %v1937, 0.0
      %vm3698 = vcmp.gt.f32.partialorder %v2444, 0.0
      %vm3699 = vcmp.gt.f32.partialorder %v2951, 0.0
      %vm3700 = vcmp.gt.f32.partialorder %v3458, 0.0
      %vm3701 = vcmp.gt.f32.partialorder %v1940, 0.0
      %vm3702 = vcmp.gt.f32.partialorder %v2447, 0.0
      %vm3703 = vcmp.gt.f32.partialorder %v2954, 0.0
      %vm3704 = vcmp.gt.f32.partialorder %v3461, 0.0
      %vm3705 = vcmp.gt.f32.partialorder %v1942, 0.0
      %vm3706 = vcmp.gt.f32.partialorder %v2449, 0.0
      %vm3707 = vcmp.gt.f32.partialorder %v2956, 0.0
      %vm3708 = vcmp.gt.f32.partialorder %v3463, 0.0
      %vm3709 = vcmp.gt.f32.partialorder %v1945, 0.0
      %vm3710 = vcmp.gt.f32.partialorder %v2452, 0.0
      %vm3711 = vcmp.gt.f32.partialorder %v2959, 0.0
      %vm3712 = vcmp.gt.f32.partialorder %v3466, 0.0
      %vm3713 = vcmp.gt.f32.partialorder %v1947, 0.0
      %vm3714 = vcmp.gt.f32.partialorder %v2454, 0.0
      %vm3715 = vcmp.gt.f32.partialorder %v2961, 0.0
      %vm3716 = vcmp.gt.f32.partialorder %v3468, 0.0
      %vm3717 = vcmp.gt.f32.partialorder %v1950, 0.0
      %vm3718 = vcmp.gt.f32.partialorder %v2457, 0.0
      %vm3719 = vcmp.gt.f32.partialorder %v2964, 0.0
      %vm3720 = vcmp.gt.f32.partialorder %v3471, 0.0
      %vm3721 = vcmp.gt.f32.partialorder %v1952, 0.0
      %vm3722 = vcmp.gt.f32.partialorder %v2459, 0.0
      %vm3723 = vcmp.gt.f32.partialorder %v2966, 0.0
      %vm3724 = vcmp.gt.f32.partialorder %v3473, 0.0
      %vm3725 = vcmp.gt.f32.partialorder %v1955, 0.0
      %vm3726 = vcmp.gt.f32.partialorder %v2462, 0.0
      %vm3727 = vcmp.gt.f32.partialorder %v2969, 0.0
      %vm3728 = vcmp.gt.f32.partialorder %v3476, 0.0
      %vm3729 = vcmp.gt.f32.partialorder %v1957, 0.0
      %vm3730 = vcmp.gt.f32.partialorder %v2464, 0.0
      %vm3731 = vcmp.gt.f32.partialorder %v2971, 0.0
      %vm3732 = vcmp.gt.f32.partialorder %v3478, 0.0
      %vm3733 = vcmp.gt.f32.partialorder %v1960, 0.0
      %vm3734 = vcmp.gt.f32.partialorder %v2467, 0.0
      %vm3735 = vcmp.gt.f32.partialorder %v2974, 0.0
      %vm3736 = vcmp.gt.f32.partialorder %v3481, 0.0
      %vm3737 = vcmp.gt.f32.partialorder %v1962, 0.0
      %vm3738 = vcmp.gt.f32.partialorder %v2469, 0.0
      %vm3739 = vcmp.gt.f32.partialorder %v2976, 0.0
      %vm3740 = vcmp.gt.f32.partialorder %v3483, 0.0
      %v3741 = vmul.f32 %v1805, 0.1
      %v3742 = vmul.f32 %v2312, 0.1
      %v3743 = vmul.f32 %v2819, 0.1
      %v3744 = vmul.f32 %v3326, 0.1
      %v3745 = vmul.f32 %v1807, 0.1
      %v3746 = vmul.f32 %v2314, 0.1
      %v3747 = vmul.f32 %v2821, 0.1
      %v3748 = vmul.f32 %v3328, 0.1
      %v3749 = vmul.f32 %v1810, 0.1
      %v3750 = vmul.f32 %v2317, 0.1
      %v3751 = vmul.f32 %v2824, 0.1
      %v3752 = vmul.f32 %v3331, 0.1
      %v3753 = vmul.f32 %v1812, 0.1
      %v3754 = vmul.f32 %v2319, 0.1
      %v3755 = vmul.f32 %v2826, 0.1
      %v3756 = vmul.f32 %v3333, 0.1
      %v3757 = vmul.f32 %v1815, 0.1
      %v3758 = vmul.f32 %v2322, 0.1
      %v3759 = vmul.f32 %v2829, 0.1
      %v3760 = vmul.f32 %v3336, 0.1
      %v3761 = vmul.f32 %v1817, 0.1
      %v3762 = vmul.f32 %v2324, 0.1
      %v3763 = vmul.f32 %v2831, 0.1
      %v3764 = vmul.f32 %v3338, 0.1
      %v3765 = vmul.f32 %v1820, 0.1
      %v3766 = vmul.f32 %v2327, 0.1
      %v3767 = vmul.f32 %v2834, 0.1
      %v3768 = vmul.f32 %v3341, 0.1
      %v3769 = vmul.f32 %v1822, 0.1
      %v3770 = vmul.f32 %v2329, 0.1
      %v3771 = vmul.f32 %v2836, 0.1
      %v3772 = vmul.f32 %v3343, 0.1
      %v3773 = vmul.f32 %v1825, 0.1
      %v3774 = vmul.f32 %v2332, 0.1
      %v3775 = vmul.f32 %v2839, 0.1
      %v3776 = vmul.f32 %v3346, 0.1
      %v3777 = vmul.f32 %v1827, 0.1
      %v3778 = vmul.f32 %v2334, 0.1
      %v3779 = vmul.f32 %v2841, 0.1
      %v3780 = vmul.f32 %v3348, 0.1
      %v3781 = vmul.f32 %v1830, 0.1
      %v3782 = vmul.f32 %v2337, 0.1
      %v3783 = vmul.f32 %v2844, 0.1
      %v3784 = vmul.f32 %v3351, 0.1
      %v3785 = vmul.f32 %v1832, 0.1
      %v3786 = vmul.f32 %v2339, 0.1
      %v3787 = vmul.f32 %v2846, 0.1
      %v3788 = vmul.f32 %v3353, 0.1
      %v3789 = vmul.f32 %v1835, 0.1
      %v3790 = vmul.f32 %v2342, 0.1
      %v3791 = vmul.f32 %v2849, 0.1
      %v3792 = vmul.f32 %v3356, 0.1
      %v3793 = vmul.f32 %v1837, 0.1
      %v3794 = vmul.f32 %v2344, 0.1
      %v3795 = vmul.f32 %v2851, 0.1
      %v3796 = vmul.f32 %v3358, 0.1
      %v3797 = vmul.f32 %v1840, 0.1
      %v3798 = vmul.f32 %v2347, 0.1
      %v3799 = vmul.f32 %v2854, 0.1
      %v3800 = vmul.f32 %v3361, 0.1
      %v3801 = vmul.f32 %v1842, 0.1
      %v3802 = vmul.f32 %v2349, 0.1
      %v3803 = vmul.f32 %v2856, 0.1
      %v3804 = vmul.f32 %v3363, 0.1
      %v3805 = vmul.f32 %v1845, 0.1
      %v3806 = vmul.f32 %v2352, 0.1
      %v3807 = vmul.f32 %v2859, 0.1
      %v3808 = vmul.f32 %v3366, 0.1
      %v3809 = vmul.f32 %v1847, 0.1
      %v3810 = vmul.f32 %v2354, 0.1
      %v3811 = vmul.f32 %v2861, 0.1
      %v3812 = vmul.f32 %v3368, 0.1
      %v3813 = vmul.f32 %v1850, 0.1
      %v3814 = vmul.f32 %v2357, 0.1
      %v3815 = vmul.f32 %v2864, 0.1
      %v3816 = vmul.f32 %v3371, 0.1
      %v3817 = vmul.f32 %v1852, 0.1
      %v3818 = vmul.f32 %v2359, 0.1
      %v3819 = vmul.f32 %v2866, 0.1
      %v3820 = vmul.f32 %v3373, 0.1
      %v3821 = vmul.f32 %v1855, 0.1
      %v3822 = vmul.f32 %v2362, 0.1
      %v3823 = vmul.f32 %v2869, 0.1
      %v3824 = vmul.f32 %v3376, 0.1
      %v3825 = vmul.f32 %v1857, 0.1
      %v3826 = vmul.f32 %v2364, 0.1
      %v3827 = vmul.f32 %v2871, 0.1
      %v3828 = vmul.f32 %v3378, 0.1
      %v3829 = vmul.f32 %v1860, 0.1
      %v3830 = vmul.f32 %v2367, 0.1
      %v3831 = vmul.f32 %v2874, 0.1
      %v3832 = vmul.f32 %v3381, 0.1
      %v3833 = vmul.f32 %v1862, 0.1
      %v3834 = vmul.f32 %v2369, 0.1
      %v3835 = vmul.f32 %v2876, 0.1
      %v3836 = vmul.f32 %v3383, 0.1
      %v3837 = vmul.f32 %v1865, 0.1
      %v3838 = vmul.f32 %v2372, 0.1
      %v3839 = vmul.f32 %v2879, 0.1
      %v3840 = vmul.f32 %v3386, 0.1
      %v3841 = vmul.f32 %v1867, 0.1
      %v3842 = vmul.f32 %v2374, 0.1
      %v3843 = vmul.f32 %v2881, 0.1
      %v3844 = vmul.f32 %v3388, 0.1
      %v3845 = vmul.f32 %v1870, 0.1
      %v3846 = vmul.f32 %v2377, 0.1
      %v3847 = vmul.f32 %v2884, 0.1
      %v3848 = vmul.f32 %v3391, 0.1
      %v3849 = vmul.f32 %v1872, 0.1
      %v3850 = vmul.f32 %v2379, 0.1
      %v3851 = vmul.f32 %v2886, 0.1
      %v3852 = vmul.f32 %v3393, 0.1
      %v3853 = vmul.f32 %v1875, 0.1
      %v3854 = vmul.f32 %v2382, 0.1
      %v3855 = vmul.f32 %v2889, 0.1
      %v3856 = vmul.f32 %v3396, 0.1
      %v3857 = vmul.f32 %v1877, 0.1
      %v3858 = vmul.f32 %v2384, 0.1
      %v3859 = vmul.f32 %v2891, 0.1
      %v3860 = vmul.f32 %v3398, 0.1
      %v3861 = vmul.f32 %v1880, 0.1
      %v3862 = vmul.f32 %v2387, 0.1
      %v3863 = vmul.f32 %v2894, 0.1
      %v3864 = vmul.f32 %v3401, 0.1
      %v3865 = vmul.f32 %v1882, 0.1
      %v3866 = vmul.f32 %v2389, 0.1
      %v3867 = vmul.f32 %v2896, 0.1
      %v3868 = vmul.f32 %v3403, 0.1
      %v3869 = vmul.f32 %v1885, 0.1
      %v3870 = vmul.f32 %v2392, 0.1
      %v3871 = vmul.f32 %v2899, 0.1
      %v3872 = vmul.f32 %v3406, 0.1
      %v3873 = vmul.f32 %v1887, 0.1
      %v3874 = vmul.f32 %v2394, 0.1
      %v3875 = vmul.f32 %v2901, 0.1
      %v3876 = vmul.f32 %v3408, 0.1
      %v3877 = vmul.f32 %v1890, 0.1
      %v3878 = vmul.f32 %v2397, 0.1
      %v3879 = vmul.f32 %v2904, 0.1
      %v3880 = vmul.f32 %v3411, 0.1
      %v3881 = vmul.f32 %v1892, 0.1
      %v3882 = vmul.f32 %v2399, 0.1
      %v3883 = vmul.f32 %v2906, 0.1
      %v3884 = vmul.f32 %v3413, 0.1
      %v3885 = vmul.f32 %v1895, 0.1
      %v3886 = vmul.f32 %v2402, 0.1
      %v3887 = vmul.f32 %v2909, 0.1
      %v3888 = vmul.f32 %v3416, 0.1
      %v3889 = vmul.f32 %v1897, 0.1
      %v3890 = vmul.f32 %v2404, 0.1
      %v3891 = vmul.f32 %v2911, 0.1
      %v3892 = vmul.f32 %v3418, 0.1
      %v3893 = vmul.f32 %v1900, 0.1
      %v3894 = vmul.f32 %v2407, 0.1
      %v3895 = vmul.f32 %v2914, 0.1
      %v3896 = vmul.f32 %v3421, 0.1
      %v3897 = vmul.f32 %v1902, 0.1
      %v3898 = vmul.f32 %v2409, 0.1
      %v3899 = vmul.f32 %v2916, 0.1
      %v3900 = vmul.f32 %v3423, 0.1
      %v3901 = vmul.f32 %v1905, 0.1
      %v3902 = vmul.f32 %v2412, 0.1
      %v3903 = vmul.f32 %v2919, 0.1
      %v3904 = vmul.f32 %v3426, 0.1
      %v3905 = vmul.f32 %v1907, 0.1
      %v3906 = vmul.f32 %v2414, 0.1
      %v3907 = vmul.f32 %v2921, 0.1
      %v3908 = vmul.f32 %v3428, 0.1
      %v3909 = vmul.f32 %v1910, 0.1
      %v3910 = vmul.f32 %v2417, 0.1
      %v3911 = vmul.f32 %v2924, 0.1
      %v3912 = vmul.f32 %v3431, 0.1
      %v3913 = vmul.f32 %v1912, 0.1
      %v3914 = vmul.f32 %v2419, 0.1
      %v3915 = vmul.f32 %v2926, 0.1
      %v3916 = vmul.f32 %v3433, 0.1
      %v3917 = vmul.f32 %v1915, 0.1
      %v3918 = vmul.f32 %v2422, 0.1
      %v3919 = vmul.f32 %v2929, 0.1
      %v3920 = vmul.f32 %v3436, 0.1
      %v3921 = vmul.f32 %v1917, 0.1
      %v3922 = vmul.f32 %v2424, 0.1
      %v3923 = vmul.f32 %v2931, 0.1
      %v3924 = vmul.f32 %v3438, 0.1
      %v3925 = vmul.f32 %v1920, 0.1
      %v3926 = vmul.f32 %v2427, 0.1
      %v3927 = vmul.f32 %v2934, 0.1
      %v3928 = vmul.f32 %v3441, 0.1
      %v3929 = vmul.f32 %v1922, 0.1
      %v3930 = vmul.f32 %v2429, 0.1
      %v3931 = vmul.f32 %v2936, 0.1
      %v3932 = vmul.f32 %v3443, 0.1
      %v3933 = vmul.f32 %v1925, 0.1
      %v3934 = vmul.f32 %v2432, 0.1
      %v3935 = vmul.f32 %v2939, 0.1
      %v3936 = vmul.f32 %v3446, 0.1
      %v3937 = vmul.f32 %v1927, 0.1
      %v3938 = vmul.f32 %v2434, 0.1
      %v3939 = vmul.f32 %v2941, 0.1
      %v3940 = vmul.f32 %v3448, 0.1
      %v3941 = vmul.f32 %v1930, 0.1
      %v3942 = vmul.f32 %v2437, 0.1
      %v3943 = vmul.f32 %v2944, 0.1
      %v3944 = vmul.f32 %v3451, 0.1
      %v3945 = vmul.f32 %v1932, 0.1
      %v3946 = vmul.f32 %v2439, 0.1
      %v3947 = vmul.f32 %v2946, 0.1
      %v3948 = vmul.f32 %v3453, 0.1
      %v3949 = vmul.f32 %v1935, 0.1
      %v3950 = vmul.f32 %v2442, 0.1
      %v3951 = vmul.f32 %v2949, 0.1
      %v3952 = vmul.f32 %v3456, 0.1
      %v3953 = vmul.f32 %v1937, 0.1
      %v3954 = vmul.f32 %v2444, 0.1
      %v3955 = vmul.f32 %v2951, 0.1
      %v3956 = vmul.f32 %v3458, 0.1
      %v3957 = vmul.f32 %v1940, 0.1
      %v3958 = vmul.f32 %v2447, 0.1
      %v3959 = vmul.f32 %v2954, 0.1
      %v3960 = vmul.f32 %v3461, 0.1
      %v3961 = vmul.f32 %v1942, 0.1
      %v3962 = vmul.f32 %v2449, 0.1
      %v3963 = vmul.f32 %v2956, 0.1
      %v3964 = vmul.f32 %v3463, 0.1
      %v3965 = vmul.f32 %v1945, 0.1
      %v3966 = vmul.f32 %v2452, 0.1
      %v3967 = vmul.f32 %v2959, 0.1
      %v3968 = vmul.f32 %v3466, 0.1
      %v3969 = vmul.f32 %v1947, 0.1
      %v3970 = vmul.f32 %v2454, 0.1
      %v3971 = vmul.f32 %v2961, 0.1
      %v3972 = vmul.f32 %v3468, 0.1
      %v3973 = vmul.f32 %v1950, 0.1
      %v3974 = vmul.f32 %v2457, 0.1
      %v3975 = vmul.f32 %v2964, 0.1
      %v3976 = vmul.f32 %v3471, 0.1
      %v3977 = vmul.f32 %v1952, 0.1
      %v3978 = vmul.f32 %v2459, 0.1
      %v3979 = vmul.f32 %v2966, 0.1
      %v3980 = vmul.f32 %v3473, 0.1
      %v3981 = vmul.f32 %v1955, 0.1
      %v3982 = vmul.f32 %v2462, 0.1
      %v3983 = vmul.f32 %v2969, 0.1
      %v3984 = vmul.f32 %v3476, 0.1
      %v3985 = vmul.f32 %v1957, 0.1
      %v3986 = vmul.f32 %v2464, 0.1
      %v3987 = vmul.f32 %v2971, 0.1
      %v3988 = vmul.f32 %v3478, 0.1
      %v3989 = vmul.f32 %v1960, 0.1
      %v3990 = vmul.f32 %v2467, 0.1
      %v3991 = vmul.f32 %v2974, 0.1
      %v3992 = vmul.f32 %v3481, 0.1
      %v3993 = vmul.f32 %v1962, 0.1
      %v3994 = vmul.f32 %v2469, 0.1
      %v3995 = vmul.f32 %v2976, 0.1
      %v3996 = vmul.f32 %v3483, 0.1
      %v3997 = vsel %vm3485, %v1805, %v3741
      %v3998 = vsel %vm3486, %v2312, %v3742
      %v3999 = vsel %vm3487, %v2819, %v3743
      %v4000 = vsel %vm3488, %v3326, %v3744
      %v4001 = vsel %vm3489, %v1807, %v3745
      %v4002 = vsel %vm3490, %v2314, %v3746
      %v4003 = vsel %vm3491, %v2821, %v3747
      %v4004 = vsel %vm3492, %v3328, %v3748
      %v4005 = vsel %vm3493, %v1810, %v3749
      %v4006 = vsel %vm3494, %v2317, %v3750
      %v4007 = vsel %vm3495, %v2824, %v3751
      %v4008 = vsel %vm3496, %v3331, %v3752
      %v4009 = vsel %vm3497, %v1812, %v3753
      %v4010 = vsel %vm3498, %v2319, %v3754
      %v4011 = vsel %vm3499, %v2826, %v3755
      %v4012 = vsel %vm3500, %v3333, %v3756
      %v4013 = vsel %vm3501, %v1815, %v3757
      %v4014 = vsel %vm3502, %v2322, %v3758
      %v4015 = vsel %vm3503, %v2829, %v3759
      %v4016 = vsel %vm3504, %v3336, %v3760
      %v4017 = vsel %vm3505, %v1817, %v3761
      %v4018 = vsel %vm3506, %v2324, %v3762
      %v4019 = vsel %vm3507, %v2831, %v3763
      %v4020 = vsel %vm3508, %v3338, %v3764
      %v4021 = vsel %vm3509, %v1820, %v3765
      %v4022 = vsel %vm3510, %v2327, %v3766
      %v4023 = vsel %vm3511, %v2834, %v3767
      %v4024 = vsel %vm3512, %v3341, %v3768
      %v4025 = vsel %vm3513, %v1822, %v3769
      %v4026 = vsel %vm3514, %v2329, %v3770
      %v4027 = vsel %vm3515, %v2836, %v3771
      %v4028 = vsel %vm3516, %v3343, %v3772
      %v4029 = vsel %vm3517, %v1825, %v3773
      %v4030 = vsel %vm3518, %v2332, %v3774
      %v4031 = vsel %vm3519, %v2839, %v3775
      %v4032 = vsel %vm3520, %v3346, %v3776
      %v4033 = vsel %vm3521, %v1827, %v3777
      %v4034 = vsel %vm3522, %v2334, %v3778
      %v4035 = vsel %vm3523, %v2841, %v3779
      %v4036 = vsel %vm3524, %v3348, %v3780
      %v4037 = vsel %vm3525, %v1830, %v3781
      %v4038 = vsel %vm3526, %v2337, %v3782
      %v4039 = vsel %vm3527, %v2844, %v3783
      %v4040 = vsel %vm3528, %v3351, %v3784
      %v4041 = vsel %vm3529, %v1832, %v3785
      %v4042 = vsel %vm3530, %v2339, %v3786
      %v4043 = vsel %vm3531, %v2846, %v3787
      %v4044 = vsel %vm3532, %v3353, %v3788
      %v4045 = vsel %vm3533, %v1835, %v3789
      %v4046 = vsel %vm3534, %v2342, %v3790
      %v4047 = vsel %vm3535, %v2849, %v3791
      %v4048 = vsel %vm3536, %v3356, %v3792
      %v4049 = vsel %vm3537, %v1837, %v3793
      %v4050 = vsel %vm3538, %v2344, %v3794
      %v4051 = vsel %vm3539, %v2851, %v3795
      %v4052 = vsel %vm3540, %v3358, %v3796
      %v4053 = vsel %vm3541, %v1840, %v3797
      %v4054 = vsel %vm3542, %v2347, %v3798
      %v4055 = vsel %vm3543, %v2854, %v3799
      %v4056 = vsel %vm3544, %v3361, %v3800
      %v4057 = vsel %vm3545, %v1842, %v3801
      %v4058 = vsel %vm3546, %v2349, %v3802
      %v4059 = vsel %vm3547, %v2856, %v3803
      %v4060 = vsel %vm3548, %v3363, %v3804
      %v4061 = vsel %vm3549, %v1845, %v3805
      %v4062 = vsel %vm3550, %v2352, %v3806
      %v4063 = vsel %vm3551, %v2859, %v3807
      %v4064 = vsel %vm3552, %v3366, %v3808
      %v4065 = vsel %vm3553, %v1847, %v3809
      %v4066 = vsel %vm3554, %v2354, %v3810
      %v4067 = vsel %vm3555, %v2861, %v3811
      %v4068 = vsel %vm3556, %v3368, %v3812
      %v4069 = vsel %vm3557, %v1850, %v3813
      %v4070 = vsel %vm3558, %v2357, %v3814
      %v4071 = vsel %vm3559, %v2864, %v3815
      %v4072 = vsel %vm3560, %v3371, %v3816
      %v4073 = vsel %vm3561, %v1852, %v3817
      %v4074 = vsel %vm3562, %v2359, %v3818
      %v4075 = vsel %vm3563, %v2866, %v3819
      %v4076 = vsel %vm3564, %v3373, %v3820
      %v4077 = vsel %vm3565, %v1855, %v3821
      %v4078 = vsel %vm3566, %v2362, %v3822
      %v4079 = vsel %vm3567, %v2869, %v3823
      %v4080 = vsel %vm3568, %v3376, %v3824
      %v4081 = vsel %vm3569, %v1857, %v3825
      %v4082 = vsel %vm3570, %v2364, %v3826
      %v4083 = vsel %vm3571, %v2871, %v3827
      %v4084 = vsel %vm3572, %v3378, %v3828
      %v4085 = vsel %vm3573, %v1860, %v3829
      %v4086 = vsel %vm3574, %v2367, %v3830
      %v4087 = vsel %vm3575, %v2874, %v3831
      %v4088 = vsel %vm3576, %v3381, %v3832
      %v4089 = vsel %vm3577, %v1862, %v3833
      %v4090 = vsel %vm3578, %v2369, %v3834
      %v4091 = vsel %vm3579, %v2876, %v3835
      %v4092 = vsel %vm3580, %v3383, %v3836
      %v4093 = vsel %vm3581, %v1865, %v3837
      %v4094 = vsel %vm3582, %v2372, %v3838
      %v4095 = vsel %vm3583, %v2879, %v3839
      %v4096 = vsel %vm3584, %v3386, %v3840
      %v4097 = vsel %vm3585, %v1867, %v3841
      %v4098 = vsel %vm3586, %v2374, %v3842
      %v4099 = vsel %vm3587, %v2881, %v3843
      %v4100 = vsel %vm3588, %v3388, %v3844
      %v4101 = vsel %vm3589, %v1870, %v3845
      %v4102 = vsel %vm3590, %v2377, %v3846
      %v4103 = vsel %vm3591, %v2884, %v3847
      %v4104 = vsel %vm3592, %v3391, %v3848
      %v4105 = vsel %vm3593, %v1872, %v3849
      %v4106 = vsel %vm3594, %v2379, %v3850
      %v4107 = vsel %vm3595, %v2886, %v3851
      %v4108 = vsel %vm3596, %v3393, %v3852
      %v4109 = vsel %vm3597, %v1875, %v3853
      %v4110 = vsel %vm3598, %v2382, %v3854
      %v4111 = vsel %vm3599, %v2889, %v3855
      %v4112 = vsel %vm3600, %v3396, %v3856
      %v4113 = vsel %vm3601, %v1877, %v3857
      %v4114 = vsel %vm3602, %v2384, %v3858
      %v4115 = vsel %vm3603, %v2891, %v3859
      %v4116 = vsel %vm3604, %v3398, %v3860
      %v4117 = vsel %vm3605, %v1880, %v3861
      %v4118 = vsel %vm3606, %v2387, %v3862
      %v4119 = vsel %vm3607, %v2894, %v3863
      %v4120 = vsel %vm3608, %v3401, %v3864
      %v4121 = vsel %vm3609, %v1882, %v3865
      %v4122 = vsel %vm3610, %v2389, %v3866
      %v4123 = vsel %vm3611, %v2896, %v3867
      %v4124 = vsel %vm3612, %v3403, %v3868
      %v4125 = vsel %vm3613, %v1885, %v3869
      %v4126 = vsel %vm3614, %v2392, %v3870
      %v4127 = vsel %vm3615, %v2899, %v3871
      %v4128 = vsel %vm3616, %v3406, %v3872
      %v4129 = vsel %vm3617, %v1887, %v3873
      %v4130 = vsel %vm3618, %v2394, %v3874
      %v4131 = vsel %vm3619, %v2901, %v3875
      %v4132 = vsel %vm3620, %v3408, %v3876
      %v4133 = vsel %vm3621, %v1890, %v3877
      %v4134 = vsel %vm3622, %v2397, %v3878
      %v4135 = vsel %vm3623, %v2904, %v3879
      %v4136 = vsel %vm3624, %v3411, %v3880
      %v4137 = vsel %vm3625, %v1892, %v3881
      %v4138 = vsel %vm3626, %v2399, %v3882
      %v4139 = vsel %vm3627, %v2906, %v3883
      %v4140 = vsel %vm3628, %v3413, %v3884
      %v4141 = vsel %vm3629, %v1895, %v3885
      %v4142 = vsel %vm3630, %v2402, %v3886
      %v4143 = vsel %vm3631, %v2909, %v3887
      %v4144 = vsel %vm3632, %v3416, %v3888
      %v4145 = vsel %vm3633, %v1897, %v3889
      %v4146 = vsel %vm3634, %v2404, %v3890
      %v4147 = vsel %vm3635, %v2911, %v3891
      %v4148 = vsel %vm3636, %v3418, %v3892
      %v4149 = vsel %vm3637, %v1900, %v3893
      %v4150 = vsel %vm3638, %v2407, %v3894
      %v4151 = vsel %vm3639, %v2914, %v3895
      %v4152 = vsel %vm3640, %v3421, %v3896
      %v4153 = vsel %vm3641, %v1902, %v3897
      %v4154 = vsel %vm3642, %v2409, %v3898
      %v4155 = vsel %vm3643, %v2916, %v3899
      %v4156 = vsel %vm3644, %v3423, %v3900
      %v4157 = vsel %vm3645, %v1905, %v3901
      %v4158 = vsel %vm3646, %v2412, %v3902
      %v4159 = vsel %vm3647, %v2919, %v3903
      %v4160 = vsel %vm3648, %v3426, %v3904
      %v4161 = vsel %vm3649, %v1907, %v3905
      %v4162 = vsel %vm3650, %v2414, %v3906
      %v4163 = vsel %vm3651, %v2921, %v3907
      %v4164 = vsel %vm3652, %v3428, %v3908
      %v4165 = vsel %vm3653, %v1910, %v3909
      %v4166 = vsel %vm3654, %v2417, %v3910
      %v4167 = vsel %vm3655, %v2924, %v3911
      %v4168 = vsel %vm3656, %v3431, %v3912
      %v4169 = vsel %vm3657, %v1912, %v3913
      %v4170 = vsel %vm3658, %v2419, %v3914
      %v4171 = vsel %vm3659, %v2926, %v3915
      %v4172 = vsel %vm3660, %v3433, %v3916
      %v4173 = vsel %vm3661, %v1915, %v3917
      %v4174 = vsel %vm3662, %v2422, %v3918
      %v4175 = vsel %vm3663, %v2929, %v3919
      %v4176 = vsel %vm3664, %v3436, %v3920
      %v4177 = vsel %vm3665, %v1917, %v3921
      %v4178 = vsel %vm3666, %v2424, %v3922
      %v4179 = vsel %vm3667, %v2931, %v3923
      %v4180 = vsel %vm3668, %v3438, %v3924
      %v4181 = vsel %vm3669, %v1920, %v3925
      %v4182 = vsel %vm3670, %v2427, %v3926
      %v4183 = vsel %vm3671, %v2934, %v3927
      %v4184 = vsel %vm3672, %v3441, %v3928
      %v4185 = vsel %vm3673, %v1922, %v3929
      %v4186 = vsel %vm3674, %v2429, %v3930
      %v4187 = vsel %vm3675, %v2936, %v3931
      %v4188 = vsel %vm3676, %v3443, %v3932
      %v4189 = vsel %vm3677, %v1925, %v3933
      %v4190 = vsel %vm3678, %v2432, %v3934
      %v4191 = vsel %vm3679, %v2939, %v3935
      %v4192 = vsel %vm3680, %v3446, %v3936
      %v4193 = vsel %vm3681, %v1927, %v3937
      %v4194 = vsel %vm3682, %v2434, %v3938
      %v4195 = vsel %vm3683, %v2941, %v3939
      %v4196 = vsel %vm3684, %v3448, %v3940
      %v4197 = vsel %vm3685, %v1930, %v3941
      %v4198 = vsel %vm3686, %v2437, %v3942
      %v4199 = vsel %vm3687, %v2944, %v3943
      %v4200 = vsel %vm3688, %v3451, %v3944
      %v4201 = vsel %vm3689, %v1932, %v3945
      %v4202 = vsel %vm3690, %v2439, %v3946
      %v4203 = vsel %vm3691, %v2946, %v3947
      %v4204 = vsel %vm3692, %v3453, %v3948
      %v4205 = vsel %vm3693, %v1935, %v3949
      %v4206 = vsel %vm3694, %v2442, %v3950
      %v4207 = vsel %vm3695, %v2949, %v3951
      %v4208 = vsel %vm3696, %v3456, %v3952
      %v4209 = vsel %vm3697, %v1937, %v3953
      %v4210 = vsel %vm3698, %v2444, %v3954
      %v4211 = vsel %vm3699, %v2951, %v3955
      %v4212 = vsel %vm3700, %v3458, %v3956
      %v4213 = vsel %vm3701, %v1940, %v3957
      %v4214 = vsel %vm3702, %v2447, %v3958
      %v4215 = vsel %vm3703, %v2954, %v3959
      %v4216 = vsel %vm3704, %v3461, %v3960
      %v4217 = vsel %vm3705, %v1942, %v3961
      %v4218 = vsel %vm3706, %v2449, %v3962
      %v4219 = vsel %vm3707, %v2956, %v3963
      %v4220 = vsel %vm3708, %v3463, %v3964
      %v4221 = vsel %vm3709, %v1945, %v3965
      %v4222 = vsel %vm3710, %v2452, %v3966
      %v4223 = vsel %vm3711, %v2959, %v3967
      %v4224 = vsel %vm3712, %v3466, %v3968
      %v4225 = vsel %vm3713, %v1947, %v3969
      %v4226 = vsel %vm3714, %v2454, %v3970
      %v4227 = vsel %vm3715, %v2961, %v3971
      %v4228 = vsel %vm3716, %v3468, %v3972
      %v4229 = vsel %vm3717, %v1950, %v3973
      %v4230 = vsel %vm3718, %v2457, %v3974
      %v4231 = vsel %vm3719, %v2964, %v3975
      %v4232 = vsel %vm3720, %v3471, %v3976
      %v4233 = vsel %vm3721, %v1952, %v3977
      %v4234 = vsel %vm3722, %v2459, %v3978
      %v4235 = vsel %vm3723, %v2966, %v3979
      %v4236 = vsel %vm3724, %v3473, %v3980
      %v4237 = vsel %vm3725, %v1955, %v3981
      %v4238 = vsel %vm3726, %v2462, %v3982
      %v4239 = vsel %vm3727, %v2969, %v3983
      %v4240 = vsel %vm3728, %v3476, %v3984
      %v4241 = vsel %vm3729, %v1957, %v3985
      %v4242 = vsel %vm3730, %v2464, %v3986
      %v4243 = vsel %vm3731, %v2971, %v3987
      %v4244 = vsel %vm3732, %v3478, %v3988
      %v4245 = vsel %vm3733, %v1960, %v3989
      %v4246 = vsel %vm3734, %v2467, %v3990
      %v4247 = vsel %vm3735, %v2974, %v3991
      %v4248 = vsel %vm3736, %v3481, %v3992
      %v4249 = vsel %vm3737, %v1962, %v3993
      %v4250 = vsel %vm3738, %v2469, %v3994
      %v4251 = vsel %vm3739, %v2976, %v3995
      %v4252 = vsel %vm3740, %v3483, %v3996
      %v4253 = vpack.c.bf16 %v4001, %v3997
      %v4254 = vpack.c.bf16 %v4002, %v3998
      %v4255 = vpack.c.bf16 %v4003, %v3999
      %v4256 = vpack.c.bf16 %v4004, %v4000
      %v4257 = vpack.c.bf16 %v4009, %v4005
      %v4258 = vpack.c.bf16 %v4010, %v4006
      %v4259 = vpack.c.bf16 %v4011, %v4007
      %v4260 = vpack.c.bf16 %v4012, %v4008
      %v4261 = vpack.c.bf16 %v4017, %v4013
      %v4262 = vpack.c.bf16 %v4018, %v4014
      %v4263 = vpack.c.bf16 %v4019, %v4015
      %v4264 = vpack.c.bf16 %v4020, %v4016
      %v4265 = vpack.c.bf16 %v4025, %v4021
      %v4266 = vpack.c.bf16 %v4026, %v4022
      %v4267 = vpack.c.bf16 %v4027, %v4023
      %v4268 = vpack.c.bf16 %v4028, %v4024
      %v4269 = vpack.c.bf16 %v4033, %v4029
      %v4270 = vpack.c.bf16 %v4034, %v4030
      %v4271 = vpack.c.bf16 %v4035, %v4031
      %v4272 = vpack.c.bf16 %v4036, %v4032
      %v4273 = vpack.c.bf16 %v4041, %v4037
      %v4274 = vpack.c.bf16 %v4042, %v4038
      %v4275 = vpack.c.bf16 %v4043, %v4039
      %v4276 = vpack.c.bf16 %v4044, %v4040
      %v4277 = vpack.c.bf16 %v4049, %v4045
      %v4278 = vpack.c.bf16 %v4050, %v4046
      %v4279 = vpack.c.bf16 %v4051, %v4047
      %v4280 = vpack.c.bf16 %v4052, %v4048
      %v4281 = vpack.c.bf16 %v4057, %v4053
      %v4282 = vpack.c.bf16 %v4058, %v4054
      %v4283 = vpack.c.bf16 %v4059, %v4055
      %v4284 = vpack.c.bf16 %v4060, %v4056
      %v4285 = vpack.c.bf16 %v4065, %v4061
      %v4286 = vpack.c.bf16 %v4066, %v4062
      %v4287 = vpack.c.bf16 %v4067, %v4063
      %v4288 = vpack.c.bf16 %v4068, %v4064
      %v4289 = vpack.c.bf16 %v4073, %v4069
      %v4290 = vpack.c.bf16 %v4074, %v4070
      %v4291 = vpack.c.bf16 %v4075, %v4071
      %v4292 = vpack.c.bf16 %v4076, %v4072
      %v4293 = vpack.c.bf16 %v4081, %v4077
      %v4294 = vpack.c.bf16 %v4082, %v4078
      %v4295 = vpack.c.bf16 %v4083, %v4079
      %v4296 = vpack.c.bf16 %v4084, %v4080
      %v4297 = vpack.c.bf16 %v4089, %v4085
      %v4298 = vpack.c.bf16 %v4090, %v4086
      %v4299 = vpack.c.bf16 %v4091, %v4087
      %v4300 = vpack.c.bf16 %v4092, %v4088
      %v4301 = vpack.c.bf16 %v4097, %v4093
      %v4302 = vpack.c.bf16 %v4098, %v4094
      %v4303 = vpack.c.bf16 %v4099, %v4095
      %v4304 = vpack.c.bf16 %v4100, %v4096
      %v4305 = vpack.c.bf16 %v4105, %v4101
      %v4306 = vpack.c.bf16 %v4106, %v4102
      %v4307 = vpack.c.bf16 %v4107, %v4103
      %v4308 = vpack.c.bf16 %v4108, %v4104
      %v4309 = vpack.c.bf16 %v4113, %v4109
      %v4310 = vpack.c.bf16 %v4114, %v4110
      %v4311 = vpack.c.bf16 %v4115, %v4111
      %v4312 = vpack.c.bf16 %v4116, %v4112
      %v4313 = vpack.c.bf16 %v4121, %v4117
      %v4314 = vpack.c.bf16 %v4122, %v4118
      %v4315 = vpack.c.bf16 %v4123, %v4119
      %v4316 = vpack.c.bf16 %v4124, %v4120
      %v4317 = vpack.c.bf16 %v4129, %v4125
      %v4318 = vpack.c.bf16 %v4130, %v4126
      %v4319 = vpack.c.bf16 %v4131, %v4127
      %v4320 = vpack.c.bf16 %v4132, %v4128
      %v4321 = vpack.c.bf16 %v4137, %v4133
      %v4322 = vpack.c.bf16 %v4138, %v4134
      %v4323 = vpack.c.bf16 %v4139, %v4135
      %v4324 = vpack.c.bf16 %v4140, %v4136
      %v4325 = vpack.c.bf16 %v4145, %v4141
      %v4326 = vpack.c.bf16 %v4146, %v4142
      %v4327 = vpack.c.bf16 %v4147, %v4143
      %v4328 = vpack.c.bf16 %v4148, %v4144
      %v4329 = vpack.c.bf16 %v4153, %v4149
      %v4330 = vpack.c.bf16 %v4154, %v4150
      %v4331 = vpack.c.bf16 %v4155, %v4151
      %v4332 = vpack.c.bf16 %v4156, %v4152
      %v4333 = vpack.c.bf16 %v4161, %v4157
      %v4334 = vpack.c.bf16 %v4162, %v4158
      %v4335 = vpack.c.bf16 %v4163, %v4159
      %v4336 = vpack.c.bf16 %v4164, %v4160
      %v4337 = vpack.c.bf16 %v4169, %v4165
      %v4338 = vpack.c.bf16 %v4170, %v4166
      %v4339 = vpack.c.bf16 %v4171, %v4167
      %v4340 = vpack.c.bf16 %v4172, %v4168
      %v4341 = vpack.c.bf16 %v4177, %v4173
      %v4342 = vpack.c.bf16 %v4178, %v4174
      %v4343 = vpack.c.bf16 %v4179, %v4175
      %v4344 = vpack.c.bf16 %v4180, %v4176
      %v4345 = vpack.c.bf16 %v4185, %v4181
      %v4346 = vpack.c.bf16 %v4186, %v4182
      %v4347 = vpack.c.bf16 %v4187, %v4183
      %v4348 = vpack.c.bf16 %v4188, %v4184
      %v4349 = vpack.c.bf16 %v4193, %v4189
      %v4350 = vpack.c.bf16 %v4194, %v4190
      %v4351 = vpack.c.bf16 %v4195, %v4191
      %v4352 = vpack.c.bf16 %v4196, %v4192
      %v4353 = vpack.c.bf16 %v4201, %v4197
      %v4354 = vpack.c.bf16 %v4202, %v4198
      %v4355 = vpack.c.bf16 %v4203, %v4199
      %v4356 = vpack.c.bf16 %v4204, %v4200
      %v4357 = vpack.c.bf16 %v4209, %v4205
      %v4358 = vpack.c.bf16 %v4210, %v4206
      %v4359 = vpack.c.bf16 %v4211, %v4207
      %v4360 = vpack.c.bf16 %v4212, %v4208
      %v4361 = vpack.c.bf16 %v4217, %v4213
      %v4362 = vpack.c.bf16 %v4218, %v4214
      %v4363 = vpack.c.bf16 %v4219, %v4215
      %v4364 = vpack.c.bf16 %v4220, %v4216
      %v4365 = vpack.c.bf16 %v4225, %v4221
      %v4366 = vpack.c.bf16 %v4226, %v4222
      %v4367 = vpack.c.bf16 %v4227, %v4223
      %v4368 = vpack.c.bf16 %v4228, %v4224
      %v4369 = vpack.c.bf16 %v4233, %v4229
      %v4370 = vpack.c.bf16 %v4234, %v4230
      %v4371 = vpack.c.bf16 %v4235, %v4231
      %v4372 = vpack.c.bf16 %v4236, %v4232
      %v4373 = vpack.c.bf16 %v4241, %v4237
      %v4374 = vpack.c.bf16 %v4242, %v4238
      %v4375 = vpack.c.bf16 %v4243, %v4239
      %v4376 = vpack.c.bf16 %v4244, %v4240
      %v4377 = vpack.c.bf16 %v4249, %v4245
      %v4378 = vpack.c.bf16 %v4250, %v4246
      %v4379 = vpack.c.bf16 %v4251, %v4247
      %v4380 = vpack.c.bf16 %v4252, %v4248
      %v4381 = vld [vmem:[%s3] sm:$0xf]
      %v4382 = vld [vmem:[%s3 + $0x4] sm:$0xf]
      %v4383 = vld [vmem:[%s3 + $0x8] sm:$0xf]
      %v4384 = vld [vmem:[%s3 + $0xc] sm:$0xf]
      %v4385 = vld [vmem:[%s3 + $0x10] sm:$0xf]
      %v4386 = vld [vmem:[%s3 + $0x14] sm:$0xf]
      %v4387 = vld [vmem:[%s3 + $0x18] sm:$0xf]
      %v4388 = vld [vmem:[%s3 + $0x1c] sm:$0xf]
      %v4389 = vld [vmem:[%s3 + $0x20] sm:$0xf]
      %v4390 = vld [vmem:[%s3 + $0x24] sm:$0xf]
      %v4391 = vld [vmem:[%s3 + $0x28] sm:$0xf]
      %v4392 = vld [vmem:[%s3 + $0x2c] sm:$0xf]
      %v4393 = vld [vmem:[%s3 + $0x30] sm:$0xf]
      %v4394 = vld [vmem:[%s3 + $0x34] sm:$0xf]
      %v4395 = vld [vmem:[%s3 + $0x38] sm:$0xf]
      %v4396 = vld [vmem:[%s3 + $0x3c] sm:$0xf]
      %v4397 = vld [vmem:[%s3 + $0x40] sm:$0xf]
      %v4398 = vld [vmem:[%s3 + $0x44] sm:$0xf]
      %v4399 = vld [vmem:[%s3 + $0x48] sm:$0xf]
      %v4400 = vld [vmem:[%s3 + $0x4c] sm:$0xf]
      %v4401 = vld [vmem:[%s3 + $0x50] sm:$0xf]
      %v4402 = vld [vmem:[%s3 + $0x54] sm:$0xf]
      %v4403 = vld [vmem:[%s3 + $0x58] sm:$0xf]
      %v4404 = vld [vmem:[%s3 + $0x5c] sm:$0xf]
      %v4405 = vld [vmem:[%s3 + $0x60] sm:$0xf]
      %v4406 = vld [vmem:[%s3 + $0x64] sm:$0xf]
      %v4407 = vld [vmem:[%s3 + $0x68] sm:$0xf]
      %v4408 = vld [vmem:[%s3 + $0x6c] sm:$0xf]
      %v4409 = vld [vmem:[%s3 + $0x70] sm:$0xf]
      %v4410 = vld [vmem:[%s3 + $0x74] sm:$0xf]
      %v4411 = vld [vmem:[%s3 + $0x78] sm:$0xf]
      %v4412 = vld [vmem:[%s3 + $0x7c] sm:$0xf]
      %v4413 = vld [vmem:[%s3 + $0x80] sm:$0xf]
      %v4414 = vld [vmem:[%s3 + $0x84] sm:$0xf]
      %v4415 = vld [vmem:[%s3 + $0x88] sm:$0xf]
      %v4416 = vld [vmem:[%s3 + $0x8c] sm:$0xf]
      %v4417 = vld [vmem:[%s3 + $0x90] sm:$0xf]
      %v4418 = vld [vmem:[%s3 + $0x94] sm:$0xf]
      %v4419 = vld [vmem:[%s3 + $0x98] sm:$0xf]
      %v4420 = vld [vmem:[%s3 + $0x9c] sm:$0xf]
      %v4421 = vld [vmem:[%s3 + $0xa0] sm:$0xf]
      %v4422 = vld [vmem:[%s3 + $0xa4] sm:$0xf]
      %v4423 = vld [vmem:[%s3 + $0xa8] sm:$0xf]
      %v4424 = vld [vmem:[%s3 + $0xac] sm:$0xf]
      %v4425 = vld [vmem:[%s3 + $0xb0] sm:$0xf]
      %v4426 = vld [vmem:[%s3 + $0xb4] sm:$0xf]
      %v4427 = vld [vmem:[%s3 + $0xb8] sm:$0xf]
      %v4428 = vld [vmem:[%s3 + $0xbc] sm:$0xf]
      %v4429 = vld [vmem:[%s3 + $0xc0] sm:$0xf]
      %v4430 = vld [vmem:[%s3 + $0xc4] sm:$0xf]
      %v4431 = vld [vmem:[%s3 + $0xc8] sm:$0xf]
      %v4432 = vld [vmem:[%s3 + $0xcc] sm:$0xf]
      %v4433 = vld [vmem:[%s3 + $0xd0] sm:$0xf]
      %v4434 = vld [vmem:[%s3 + $0xd4] sm:$0xf]
      %v4435 = vld [vmem:[%s3 + $0xd8] sm:$0xf]
      %v4436 = vld [vmem:[%s3 + $0xdc] sm:$0xf]
      %v4437 = vld [vmem:[%s3 + $0xe0] sm:$0xf]
      %v4438 = vld [vmem:[%s3 + $0xe4] sm:$0xf]
      %v4439 = vld [vmem:[%s3 + $0xe8] sm:$0xf]
      %v4440 = vld [vmem:[%s3 + $0xec] sm:$0xf]
      %v4441 = vld [vmem:[%s3 + $0xf0] sm:$0xf]
      %v4442 = vld [vmem:[%s3 + $0xf4] sm:$0xf]
      %v4443 = vld [vmem:[%s3 + $0xf8] sm:$0xf]
      %v4444 = vld [vmem:[%s3 + $0xfc] sm:$0xf]
      %v4445 = vld [vmem:[%s4] sm:$0x1]
      %v4447 = vperm.slane %v4445, 0
      %v4513 = vunpack.c.l.b16 %v4381
      %v4514 = vunpack.c.l.b16 %v4382
      %v4515 = vunpack.c.l.b16 %v4383
      %v4516 = vunpack.c.l.b16 %v4384
      %v4517 = vunpack.c.l.b16 %v4385
      %v4518 = vunpack.c.l.b16 %v4386
      %v4519 = vunpack.c.l.b16 %v4387
      %v4520 = vunpack.c.l.b16 %v4388
      %v4521 = vunpack.c.l.b16 %v4389
      %v4522 = vunpack.c.l.b16 %v4390
      %v4523 = vunpack.c.l.b16 %v4391
      %v4524 = vunpack.c.l.b16 %v4392
      %v4525 = vunpack.c.l.b16 %v4393
      %v4526 = vunpack.c.l.b16 %v4394
      %v4527 = vunpack.c.l.b16 %v4395
      %v4528 = vunpack.c.l.b16 %v4396
      %v4529 = vunpack.c.l.b16 %v4397
      %v4530 = vunpack.c.l.b16 %v4398
      %v4531 = vunpack.c.l.b16 %v4399
      %v4532 = vunpack.c.l.b16 %v4400
      %v4533 = vunpack.c.l.b16 %v4401
      %v4534 = vunpack.c.l.b16 %v4402
      %v4535 = vunpack.c.l.b16 %v4403
      %v4536 = vunpack.c.l.b16 %v4404
      %v4537 = vunpack.c.l.b16 %v4405
      %v4538 = vunpack.c.l.b16 %v4406
      %v4539 = vunpack.c.l.b16 %v4407
      %v4540 = vunpack.c.l.b16 %v4408
      %v4541 = vunpack.c.l.b16 %v4409
      %v4542 = vunpack.c.l.b16 %v4410
      %v4543 = vunpack.c.l.b16 %v4411
      %v4544 = vunpack.c.l.b16 %v4412
      %v4545 = vunpack.c.l.b16 %v4413
      %v4546 = vunpack.c.l.b16 %v4414
      %v4547 = vunpack.c.l.b16 %v4415
      %v4548 = vunpack.c.l.b16 %v4416
      %v4549 = vunpack.c.l.b16 %v4417
      %v4550 = vunpack.c.l.b16 %v4418
      %v4551 = vunpack.c.l.b16 %v4419
      %v4552 = vunpack.c.l.b16 %v4420
      %v4553 = vunpack.c.l.b16 %v4421
      %v4554 = vunpack.c.l.b16 %v4422
      %v4555 = vunpack.c.l.b16 %v4423
      %v4556 = vunpack.c.l.b16 %v4424
      %v4557 = vunpack.c.l.b16 %v4425
      %v4558 = vunpack.c.l.b16 %v4426
      %v4559 = vunpack.c.l.b16 %v4427
      %v4560 = vunpack.c.l.b16 %v4428
      %v4561 = vunpack.c.l.b16 %v4429
      %v4562 = vunpack.c.l.b16 %v4430
      %v4563 = vunpack.c.l.b16 %v4431
      %v4564 = vunpack.c.l.b16 %v4432
      %v4565 = vunpack.c.l.b16 %v4433
      %v4566 = vunpack.c.l.b16 %v4434
      %v4567 = vunpack.c.l.b16 %v4435
      %v4568 = vunpack.c.l.b16 %v4436
      %v4569 = vunpack.c.l.b16 %v4437
      %v4570 = vunpack.c.l.b16 %v4438
      %v4571 = vunpack.c.l.b16 %v4439
      %v4572 = vunpack.c.l.b16 %v4440
      %v4573 = vunpack.c.l.b16 %v4441
      %v4574 = vunpack.c.l.b16 %v4442
      %v4575 = vunpack.c.l.b16 %v4443
      %v4576 = vunpack.c.l.b16 %v4444
      %v4577 = vpack.c.b16 %v4514, %v4513
      %v4578 = vpack.c.b16 %v4516, %v4515
      %v4579 = vpack.c.b16 %v4518, %v4517
      %v4580 = vpack.c.b16 %v4520, %v4519
      %v4581 = vpack.c.b16 %v4522, %v4521
      %v4582 = vpack.c.b16 %v4524, %v4523
      %v4583 = vpack.c.b16 %v4526, %v4525
      %v4584 = vpack.c.b16 %v4528, %v4527
      %v4585 = vpack.c.b16 %v4530, %v4529
      %v4586 = vpack.c.b16 %v4532, %v4531
      %v4587 = vpack.c.b16 %v4534, %v4533
      %v4588 = vpack.c.b16 %v4536, %v4535
      %v4589 = vpack.c.b16 %v4538, %v4537
      %v4590 = vpack.c.b16 %v4540, %v4539
      %v4591 = vpack.c.b16 %v4542, %v4541
      %v4592 = vpack.c.b16 %v4544, %v4543
      %v4593 = vpack.c.b16 %v4546, %v4545
      %v4594 = vpack.c.b16 %v4548, %v4547
      %v4595 = vpack.c.b16 %v4550, %v4549
      %v4596 = vpack.c.b16 %v4552, %v4551
      %v4597 = vpack.c.b16 %v4554, %v4553
      %v4598 = vpack.c.b16 %v4556, %v4555
      %v4599 = vpack.c.b16 %v4558, %v4557
      %v4600 = vpack.c.b16 %v4560, %v4559
      %v4601 = vpack.c.b16 %v4562, %v4561
      %v4602 = vpack.c.b16 %v4564, %v4563
      %v4603 = vpack.c.b16 %v4566, %v4565
      %v4604 = vpack.c.b16 %v4568, %v4567
      %v4605 = vpack.c.b16 %v4570, %v4569
      %v4606 = vpack.c.b16 %v4572, %v4571
      %v4607 = vpack.c.b16 %v4574, %v4573
      %v4608 = vpack.c.b16 %v4576, %v4575
      %4641 = vmatpush.bf16.msra.mxu0 %v4584
      %4642 = vmatpush.bf16.msra.mxu0 %v4583
      %4643 = vmatpush.bf16.msra.mxu0 %v4582
      %4644 = vmatpush.bf16.msra.mxu0 %v4581
      %4645 = vmatpush.bf16.msra.mxu0 %v4580
      %4646 = vmatpush.bf16.msra.mxu0 %v4579
      %4647 = vmatpush.bf16.msra.mxu0 %v4578
      %4648 = vmatpush.bf16.msra.mxu0 %v4577
      %4649 = vmatmul.bf16.gmra.mxu0 %v4253
      %v4650 = vpop.f32.mrf.mxu0
      %v4651 = vadd.f32 %v4447, %v4650
      %v4652 = vpop.f32.mrf.mxu0
      %v4653 = vadd.f32 %v4447, %v4652
      %4654 = vmatmul.bf16.gmra.mxu0 %v4257
      %v4655 = vpop.f32.mrf.mxu0
      %v4656 = vadd.f32 %v4447, %v4655
      %v4657 = vpop.f32.mrf.mxu0
      %v4658 = vadd.f32 %v4447, %v4657
      %4659 = vmatmul.bf16.gmra.mxu0 %v4261
      %v4660 = vpop.f32.mrf.mxu0
      %v4661 = vadd.f32 %v4447, %v4660
      %v4662 = vpop.f32.mrf.mxu0
      %v4663 = vadd.f32 %v4447, %v4662
      %4664 = vmatmul.bf16.gmra.mxu0 %v4265
      %v4665 = vpop.f32.mrf.mxu0
      %v4666 = vadd.f32 %v4447, %v4665
      %v4667 = vpop.f32.mrf.mxu0
      %v4668 = vadd.f32 %v4447, %v4667
      %4669 = vmatmul.bf16.gmra.mxu0 %v4269
      %v4670 = vpop.f32.mrf.mxu0
      %v4671 = vadd.f32 %v4447, %v4670
      %v4672 = vpop.f32.mrf.mxu0
      %v4673 = vadd.f32 %v4447, %v4672
      %4674 = vmatmul.bf16.gmra.mxu0 %v4273
      %v4675 = vpop.f32.mrf.mxu0
      %v4676 = vadd.f32 %v4447, %v4675
      %v4677 = vpop.f32.mrf.mxu0
      %v4678 = vadd.f32 %v4447, %v4677
      %4679 = vmatmul.bf16.gmra.mxu0 %v4277
      %v4680 = vpop.f32.mrf.mxu0
      %v4681 = vadd.f32 %v4447, %v4680
      %v4682 = vpop.f32.mrf.mxu0
      %v4683 = vadd.f32 %v4447, %v4682
      %4684 = vmatmul.bf16.gmra.mxu0 %v4281
      %v4685 = vpop.f32.mrf.mxu0
      %v4686 = vadd.f32 %v4447, %v4685
      %v4687 = vpop.f32.mrf.mxu0
      %v4688 = vadd.f32 %v4447, %v4687
      %4689 = vmatmul.bf16.gmra.mxu0 %v4285
      %v4690 = vpop.f32.mrf.mxu0
      %v4691 = vadd.f32 %v4447, %v4690
      %v4692 = vpop.f32.mrf.mxu0
      %v4693 = vadd.f32 %v4447, %v4692
      %4694 = vmatmul.bf16.gmra.mxu0 %v4289
      %v4695 = vpop.f32.mrf.mxu0
      %v4696 = vadd.f32 %v4447, %v4695
      %v4697 = vpop.f32.mrf.mxu0
      %v4698 = vadd.f32 %v4447, %v4697
      %4699 = vmatmul.bf16.gmra.mxu0 %v4293
      %v4700 = vpop.f32.mrf.mxu0
      %v4701 = vadd.f32 %v4447, %v4700
      %v4702 = vpop.f32.mrf.mxu0
      %v4703 = vadd.f32 %v4447, %v4702
      %4704 = vmatmul.bf16.gmra.mxu0 %v4297
      %v4705 = vpop.f32.mrf.mxu0
      %v4706 = vadd.f32 %v4447, %v4705
      %v4707 = vpop.f32.mrf.mxu0
      %v4708 = vadd.f32 %v4447, %v4707
      %4709 = vmatmul.bf16.gmra.mxu0 %v4301
      %v4710 = vpop.f32.mrf.mxu0
      %v4711 = vadd.f32 %v4447, %v4710
      %v4712 = vpop.f32.mrf.mxu0
      %v4713 = vadd.f32 %v4447, %v4712
      %4714 = vmatmul.bf16.gmra.mxu0 %v4305
      %v4715 = vpop.f32.mrf.mxu0
      %v4716 = vadd.f32 %v4447, %v4715
      %v4717 = vpop.f32.mrf.mxu0
      %v4718 = vadd.f32 %v4447, %v4717
      %4719 = vmatmul.bf16.gmra.mxu0 %v4309
      %v4720 = vpop.f32.mrf.mxu0
      %v4721 = vadd.f32 %v4447, %v4720
      %v4722 = vpop.f32.mrf.mxu0
      %v4723 = vadd.f32 %v4447, %v4722
      %4724 = vmatmul.bf16.gmra.mxu0 %v4313
      %v4725 = vpop.f32.mrf.mxu0
      %v4726 = vadd.f32 %v4447, %v4725
      %v4727 = vpop.f32.mrf.mxu0
      %v4728 = vadd.f32 %v4447, %v4727
      %4729 = vmatmul.bf16.gmra.mxu0 %v4317
      %v4730 = vpop.f32.mrf.mxu0
      %v4731 = vadd.f32 %v4447, %v4730
      %v4732 = vpop.f32.mrf.mxu0
      %v4733 = vadd.f32 %v4447, %v4732
      %4734 = vmatmul.bf16.gmra.mxu0 %v4321
      %v4735 = vpop.f32.mrf.mxu0
      %v4736 = vadd.f32 %v4447, %v4735
      %v4737 = vpop.f32.mrf.mxu0
      %v4738 = vadd.f32 %v4447, %v4737
      %4739 = vmatmul.bf16.gmra.mxu0 %v4325
      %v4740 = vpop.f32.mrf.mxu0
      %v4741 = vadd.f32 %v4447, %v4740
      %v4742 = vpop.f32.mrf.mxu0
      %v4743 = vadd.f32 %v4447, %v4742
      %4744 = vmatmul.bf16.gmra.mxu0 %v4329
      %v4745 = vpop.f32.mrf.mxu0
      %v4746 = vadd.f32 %v4447, %v4745
      %v4747 = vpop.f32.mrf.mxu0
      %v4748 = vadd.f32 %v4447, %v4747
      %4749 = vmatmul.bf16.gmra.mxu0 %v4333
      %v4750 = vpop.f32.mrf.mxu0
      %v4751 = vadd.f32 %v4447, %v4750
      %v4752 = vpop.f32.mrf.mxu0
      %v4753 = vadd.f32 %v4447, %v4752
      %4754 = vmatmul.bf16.gmra.mxu0 %v4337
      %v4755 = vpop.f32.mrf.mxu0
      %v4756 = vadd.f32 %v4447, %v4755
      %v4757 = vpop.f32.mrf.mxu0
      %v4758 = vadd.f32 %v4447, %v4757
      %4759 = vmatmul.bf16.gmra.mxu0 %v4341
      %v4760 = vpop.f32.mrf.mxu0
      %v4761 = vadd.f32 %v4447, %v4760
      %v4762 = vpop.f32.mrf.mxu0
      %v4763 = vadd.f32 %v4447, %v4762
      %4764 = vmatmul.bf16.gmra.mxu0 %v4345
      %v4765 = vpop.f32.mrf.mxu0
      %v4766 = vadd.f32 %v4447, %v4765
      %v4767 = vpop.f32.mrf.mxu0
      %v4768 = vadd.f32 %v4447, %v4767
      %4769 = vmatmul.bf16.gmra.mxu0 %v4349
      %v4770 = vpop.f32.mrf.mxu0
      %v4771 = vadd.f32 %v4447, %v4770
      %v4772 = vpop.f32.mrf.mxu0
      %v4773 = vadd.f32 %v4447, %v4772
      %4774 = vmatmul.bf16.gmra.mxu0 %v4353
      %v4775 = vpop.f32.mrf.mxu0
      %v4776 = vadd.f32 %v4447, %v4775
      %v4777 = vpop.f32.mrf.mxu0
      %v4778 = vadd.f32 %v4447, %v4777
      %4779 = vmatmul.bf16.gmra.mxu0 %v4357
      %v4780 = vpop.f32.mrf.mxu0
      %v4781 = vadd.f32 %v4447, %v4780
      %v4782 = vpop.f32.mrf.mxu0
      %v4783 = vadd.f32 %v4447, %v4782
      %4784 = vmatmul.bf16.gmra.mxu0 %v4361
      %v4785 = vpop.f32.mrf.mxu0
      %v4786 = vadd.f32 %v4447, %v4785
      %v4787 = vpop.f32.mrf.mxu0
      %v4788 = vadd.f32 %v4447, %v4787
      %4789 = vmatmul.bf16.gmra.mxu0 %v4365
      %v4790 = vpop.f32.mrf.mxu0
      %v4791 = vadd.f32 %v4447, %v4790
      %v4792 = vpop.f32.mrf.mxu0
      %v4793 = vadd.f32 %v4447, %v4792
      %4794 = vmatmul.bf16.gmra.mxu0 %v4369
      %v4795 = vpop.f32.mrf.mxu0
      %v4796 = vadd.f32 %v4447, %v4795
      %v4797 = vpop.f32.mrf.mxu0
      %v4798 = vadd.f32 %v4447, %v4797
      %4799 = vmatmul.bf16.gmra.mxu0 %v4373
      %v4800 = vpop.f32.mrf.mxu0
      %v4801 = vadd.f32 %v4447, %v4800
      %v4802 = vpop.f32.mrf.mxu0
      %v4803 = vadd.f32 %v4447, %v4802
      %4804 = vmatmul.bf16.gmra.mxu0 %v4377
      %v4805 = vpop.f32.mrf.mxu0
      %v4806 = vadd.f32 %v4447, %v4805
      %v4807 = vpop.f32.mrf.mxu0
      %v4808 = vadd.f32 %v4447, %v4807
      %4809 = vdwg.mxu0
      %4810 = vmatpush.bf16.msra.mxu0 %v4592
      %4811 = vmatpush.bf16.msra.mxu0 %v4591
      %4812 = vmatpush.bf16.msra.mxu0 %v4590
      %4813 = vmatpush.bf16.msra.mxu0 %v4589
      %4814 = vmatpush.bf16.msra.mxu0 %v4588
      %4815 = vmatpush.bf16.msra.mxu0 %v4587
      %4816 = vmatpush.bf16.msra.mxu0 %v4586
      %4817 = vmatpush.bf16.msra.mxu0 %v4585
      %4818 = vmatmul.bf16.gmra.mxu0 %v4254
      %v4819 = vpop.f32.mrf.mxu0
      %v4820 = vadd.f32 %v4651, %v4819
      %v4821 = vpop.f32.mrf.mxu0
      %v4822 = vadd.f32 %v4653, %v4821
      %4823 = vmatmul.bf16.gmra.mxu0 %v4258
      %v4824 = vpop.f32.mrf.mxu0
      %v4825 = vadd.f32 %v4656, %v4824
      %v4826 = vpop.f32.mrf.mxu0
      %v4827 = vadd.f32 %v4658, %v4826
      %4828 = vmatmul.bf16.gmra.mxu0 %v4262
      %v4829 = vpop.f32.mrf.mxu0
      %v4830 = vadd.f32 %v4661, %v4829
      %v4831 = vpop.f32.mrf.mxu0
      %v4832 = vadd.f32 %v4663, %v4831
      %4833 = vmatmul.bf16.gmra.mxu0 %v4266
      %v4834 = vpop.f32.mrf.mxu0
      %v4835 = vadd.f32 %v4666, %v4834
      %v4836 = vpop.f32.mrf.mxu0
      %v4837 = vadd.f32 %v4668, %v4836
      %4838 = vmatmul.bf16.gmra.mxu0 %v4270
      %v4839 = vpop.f32.mrf.mxu0
      %v4840 = vadd.f32 %v4671, %v4839
      %v4841 = vpop.f32.mrf.mxu0
      %v4842 = vadd.f32 %v4673, %v4841
      %4843 = vmatmul.bf16.gmra.mxu0 %v4274
      %v4844 = vpop.f32.mrf.mxu0
      %v4845 = vadd.f32 %v4676, %v4844
      %v4846 = vpop.f32.mrf.mxu0
      %v4847 = vadd.f32 %v4678, %v4846
      %4848 = vmatmul.bf16.gmra.mxu0 %v4278
      %v4849 = vpop.f32.mrf.mxu0
      %v4850 = vadd.f32 %v4681, %v4849
      %v4851 = vpop.f32.mrf.mxu0
      %v4852 = vadd.f32 %v4683, %v4851
      %4853 = vmatmul.bf16.gmra.mxu0 %v4282
      %v4854 = vpop.f32.mrf.mxu0
      %v4855 = vadd.f32 %v4686, %v4854
      %v4856 = vpop.f32.mrf.mxu0
      %v4857 = vadd.f32 %v4688, %v4856
      %4858 = vmatmul.bf16.gmra.mxu0 %v4286
      %v4859 = vpop.f32.mrf.mxu0
      %v4860 = vadd.f32 %v4691, %v4859
      %v4861 = vpop.f32.mrf.mxu0
      %v4862 = vadd.f32 %v4693, %v4861
      %4863 = vmatmul.bf16.gmra.mxu0 %v4290
      %v4864 = vpop.f32.mrf.mxu0
      %v4865 = vadd.f32 %v4696, %v4864
      %v4866 = vpop.f32.mrf.mxu0
      %v4867 = vadd.f32 %v4698, %v4866
      %4868 = vmatmul.bf16.gmra.mxu0 %v4294
      %v4869 = vpop.f32.mrf.mxu0
      %v4870 = vadd.f32 %v4701, %v4869
      %v4871 = vpop.f32.mrf.mxu0
      %v4872 = vadd.f32 %v4703, %v4871
      %4873 = vmatmul.bf16.gmra.mxu0 %v4298
      %v4874 = vpop.f32.mrf.mxu0
      %v4875 = vadd.f32 %v4706, %v4874
      %v4876 = vpop.f32.mrf.mxu0
      %v4877 = vadd.f32 %v4708, %v4876
      %4878 = vmatmul.bf16.gmra.mxu0 %v4302
      %v4879 = vpop.f32.mrf.mxu0
      %v4880 = vadd.f32 %v4711, %v4879
      %v4881 = vpop.f32.mrf.mxu0
      %v4882 = vadd.f32 %v4713, %v4881
      %4883 = vmatmul.bf16.gmra.mxu0 %v4306
      %v4884 = vpop.f32.mrf.mxu0
      %v4885 = vadd.f32 %v4716, %v4884
      %v4886 = vpop.f32.mrf.mxu0
      %v4887 = vadd.f32 %v4718, %v4886
      %4888 = vmatmul.bf16.gmra.mxu0 %v4310
      %v4889 = vpop.f32.mrf.mxu0
      %v4890 = vadd.f32 %v4721, %v4889
      %v4891 = vpop.f32.mrf.mxu0
      %v4892 = vadd.f32 %v4723, %v4891
      %4893 = vmatmul.bf16.gmra.mxu0 %v4314
      %v4894 = vpop.f32.mrf.mxu0
      %v4895 = vadd.f32 %v4726, %v4894
      %v4896 = vpop.f32.mrf.mxu0
      %v4897 = vadd.f32 %v4728, %v4896
      %4898 = vmatmul.bf16.gmra.mxu0 %v4318
      %v4899 = vpop.f32.mrf.mxu0
      %v4900 = vadd.f32 %v4731, %v4899
      %v4901 = vpop.f32.mrf.mxu0
      %v4902 = vadd.f32 %v4733, %v4901
      %4903 = vmatmul.bf16.gmra.mxu0 %v4322
      %v4904 = vpop.f32.mrf.mxu0
      %v4905 = vadd.f32 %v4736, %v4904
      %v4906 = vpop.f32.mrf.mxu0
      %v4907 = vadd.f32 %v4738, %v4906
      %4908 = vmatmul.bf16.gmra.mxu0 %v4326
      %v4909 = vpop.f32.mrf.mxu0
      %v4910 = vadd.f32 %v4741, %v4909
      %v4911 = vpop.f32.mrf.mxu0
      %v4912 = vadd.f32 %v4743, %v4911
      %4913 = vmatmul.bf16.gmra.mxu0 %v4330
      %v4914 = vpop.f32.mrf.mxu0
      %v4915 = vadd.f32 %v4746, %v4914
      %v4916 = vpop.f32.mrf.mxu0
      %v4917 = vadd.f32 %v4748, %v4916
      %4918 = vmatmul.bf16.gmra.mxu0 %v4334
      %v4919 = vpop.f32.mrf.mxu0
      %v4920 = vadd.f32 %v4751, %v4919
      %v4921 = vpop.f32.mrf.mxu0
      %v4922 = vadd.f32 %v4753, %v4921
      %4923 = vmatmul.bf16.gmra.mxu0 %v4338
      %v4924 = vpop.f32.mrf.mxu0
      %v4925 = vadd.f32 %v4756, %v4924
      %v4926 = vpop.f32.mrf.mxu0
      %v4927 = vadd.f32 %v4758, %v4926
      %4928 = vmatmul.bf16.gmra.mxu0 %v4342
      %v4929 = vpop.f32.mrf.mxu0
      %v4930 = vadd.f32 %v4761, %v4929
      %v4931 = vpop.f32.mrf.mxu0
      %v4932 = vadd.f32 %v4763, %v4931
      %4933 = vmatmul.bf16.gmra.mxu0 %v4346
      %v4934 = vpop.f32.mrf.mxu0
      %v4935 = vadd.f32 %v4766, %v4934
      %v4936 = vpop.f32.mrf.mxu0
      %v4937 = vadd.f32 %v4768, %v4936
      %4938 = vmatmul.bf16.gmra.mxu0 %v4350
      %v4939 = vpop.f32.mrf.mxu0
      %v4940 = vadd.f32 %v4771, %v4939
      %v4941 = vpop.f32.mrf.mxu0
      %v4942 = vadd.f32 %v4773, %v4941
      %4943 = vmatmul.bf16.gmra.mxu0 %v4354
      %v4944 = vpop.f32.mrf.mxu0
      %v4945 = vadd.f32 %v4776, %v4944
      %v4946 = vpop.f32.mrf.mxu0
      %v4947 = vadd.f32 %v4778, %v4946
      %4948 = vmatmul.bf16.gmra.mxu0 %v4358
      %v4949 = vpop.f32.mrf.mxu0
      %v4950 = vadd.f32 %v4781, %v4949
      %v4951 = vpop.f32.mrf.mxu0
      %v4952 = vadd.f32 %v4783, %v4951
      %4953 = vmatmul.bf16.gmra.mxu0 %v4362
      %v4954 = vpop.f32.mrf.mxu0
      %v4955 = vadd.f32 %v4786, %v4954
      %v4956 = vpop.f32.mrf.mxu0
      %v4957 = vadd.f32 %v4788, %v4956
      %4958 = vmatmul.bf16.gmra.mxu0 %v4366
      %v4959 = vpop.f32.mrf.mxu0
      %v4960 = vadd.f32 %v4791, %v4959
      %v4961 = vpop.f32.mrf.mxu0
      %v4962 = vadd.f32 %v4793, %v4961
      %4963 = vmatmul.bf16.gmra.mxu0 %v4370
      %v4964 = vpop.f32.mrf.mxu0
      %v4965 = vadd.f32 %v4796, %v4964
      %v4966 = vpop.f32.mrf.mxu0
      %v4967 = vadd.f32 %v4798, %v4966
      %4968 = vmatmul.bf16.gmra.mxu0 %v4374
      %v4969 = vpop.f32.mrf.mxu0
      %v4970 = vadd.f32 %v4801, %v4969
      %v4971 = vpop.f32.mrf.mxu0
      %v4972 = vadd.f32 %v4803, %v4971
      %4973 = vmatmul.bf16.gmra.mxu0 %v4378
      %v4974 = vpop.f32.mrf.mxu0
      %v4975 = vadd.f32 %v4806, %v4974
      %v4976 = vpop.f32.mrf.mxu0
      %v4977 = vadd.f32 %v4808, %v4976
      %4978 = vdwg.mxu0
      %4979 = vmatpush.bf16.msra.mxu0 %v4600
      %4980 = vmatpush.bf16.msra.mxu0 %v4599
      %4981 = vmatpush.bf16.msra.mxu0 %v4598
      %4982 = vmatpush.bf16.msra.mxu0 %v4597
      %4983 = vmatpush.bf16.msra.mxu0 %v4596
      %4984 = vmatpush.bf16.msra.mxu0 %v4595
      %4985 = vmatpush.bf16.msra.mxu0 %v4594
      %4986 = vmatpush.bf16.msra.mxu0 %v4593
      %4987 = vmatmul.bf16.gmra.mxu0 %v4255
      %v4988 = vpop.f32.mrf.mxu0
      %v4989 = vadd.f32 %v4820, %v4988
      %v4990 = vpop.f32.mrf.mxu0
      %v4991 = vadd.f32 %v4822, %v4990
      %4992 = vmatmul.bf16.gmra.mxu0 %v4259
      %v4993 = vpop.f32.mrf.mxu0
      %v4994 = vadd.f32 %v4825, %v4993
      %v4995 = vpop.f32.mrf.mxu0
      %v4996 = vadd.f32 %v4827, %v4995
      %4997 = vmatmul.bf16.gmra.mxu0 %v4263
      %v4998 = vpop.f32.mrf.mxu0
      %v4999 = vadd.f32 %v4830, %v4998
      %v5000 = vpop.f32.mrf.mxu0
      %v5001 = vadd.f32 %v4832, %v5000
      %5002 = vmatmul.bf16.gmra.mxu0 %v4267
      %v5003 = vpop.f32.mrf.mxu0
      %v5004 = vadd.f32 %v4835, %v5003
      %v5005 = vpop.f32.mrf.mxu0
      %v5006 = vadd.f32 %v4837, %v5005
      %5007 = vmatmul.bf16.gmra.mxu0 %v4271
      %v5008 = vpop.f32.mrf.mxu0
      %v5009 = vadd.f32 %v4840, %v5008
      %v5010 = vpop.f32.mrf.mxu0
      %v5011 = vadd.f32 %v4842, %v5010
      %5012 = vmatmul.bf16.gmra.mxu0 %v4275
      %v5013 = vpop.f32.mrf.mxu0
      %v5014 = vadd.f32 %v4845, %v5013
      %v5015 = vpop.f32.mrf.mxu0
      %v5016 = vadd.f32 %v4847, %v5015
      %5017 = vmatmul.bf16.gmra.mxu0 %v4279
      %v5018 = vpop.f32.mrf.mxu0
      %v5019 = vadd.f32 %v4850, %v5018
      %v5020 = vpop.f32.mrf.mxu0
      %v5021 = vadd.f32 %v4852, %v5020
      %5022 = vmatmul.bf16.gmra.mxu0 %v4283
      %v5023 = vpop.f32.mrf.mxu0
      %v5024 = vadd.f32 %v4855, %v5023
      %v5025 = vpop.f32.mrf.mxu0
      %v5026 = vadd.f32 %v4857, %v5025
      %5027 = vmatmul.bf16.gmra.mxu0 %v4287
      %v5028 = vpop.f32.mrf.mxu0
      %v5029 = vadd.f32 %v4860, %v5028
      %v5030 = vpop.f32.mrf.mxu0
      %v5031 = vadd.f32 %v4862, %v5030
      %5032 = vmatmul.bf16.gmra.mxu0 %v4291
      %v5033 = vpop.f32.mrf.mxu0
      %v5034 = vadd.f32 %v4865, %v5033
      %v5035 = vpop.f32.mrf.mxu0
      %v5036 = vadd.f32 %v4867, %v5035
      %5037 = vmatmul.bf16.gmra.mxu0 %v4295
      %v5038 = vpop.f32.mrf.mxu0
      %v5039 = vadd.f32 %v4870, %v5038
      %v5040 = vpop.f32.mrf.mxu0
      %v5041 = vadd.f32 %v4872, %v5040
      %5042 = vmatmul.bf16.gmra.mxu0 %v4299
      %v5043 = vpop.f32.mrf.mxu0
      %v5044 = vadd.f32 %v4875, %v5043
      %v5045 = vpop.f32.mrf.mxu0
      %v5046 = vadd.f32 %v4877, %v5045
      %5047 = vmatmul.bf16.gmra.mxu0 %v4303
      %v5048 = vpop.f32.mrf.mxu0
      %v5049 = vadd.f32 %v4880, %v5048
      %v5050 = vpop.f32.mrf.mxu0
      %v5051 = vadd.f32 %v4882, %v5050
      %5052 = vmatmul.bf16.gmra.mxu0 %v4307
      %v5053 = vpop.f32.mrf.mxu0
      %v5054 = vadd.f32 %v4885, %v5053
      %v5055 = vpop.f32.mrf.mxu0
      %v5056 = vadd.f32 %v4887, %v5055
      %5057 = vmatmul.bf16.gmra.mxu0 %v4311
      %v5058 = vpop.f32.mrf.mxu0
      %v5059 = vadd.f32 %v4890, %v5058
      %v5060 = vpop.f32.mrf.mxu0
      %v5061 = vadd.f32 %v4892, %v5060
      %5062 = vmatmul.bf16.gmra.mxu0 %v4315
      %v5063 = vpop.f32.mrf.mxu0
      %v5064 = vadd.f32 %v4895, %v5063
      %v5065 = vpop.f32.mrf.mxu0
      %v5066 = vadd.f32 %v4897, %v5065
      %5067 = vmatmul.bf16.gmra.mxu0 %v4319
      %v5068 = vpop.f32.mrf.mxu0
      %v5069 = vadd.f32 %v4900, %v5068
      %v5070 = vpop.f32.mrf.mxu0
      %v5071 = vadd.f32 %v4902, %v5070
      %5072 = vmatmul.bf16.gmra.mxu0 %v4323
      %v5073 = vpop.f32.mrf.mxu0
      %v5074 = vadd.f32 %v4905, %v5073
      %v5075 = vpop.f32.mrf.mxu0
      %v5076 = vadd.f32 %v4907, %v5075
      %5077 = vmatmul.bf16.gmra.mxu0 %v4327
      %v5078 = vpop.f32.mrf.mxu0
      %v5079 = vadd.f32 %v4910, %v5078
      %v5080 = vpop.f32.mrf.mxu0
      %v5081 = vadd.f32 %v4912, %v5080
      %5082 = vmatmul.bf16.gmra.mxu0 %v4331
      %v5083 = vpop.f32.mrf.mxu0
      %v5084 = vadd.f32 %v4915, %v5083
      %v5085 = vpop.f32.mrf.mxu0
      %v5086 = vadd.f32 %v4917, %v5085
      %5087 = vmatmul.bf16.gmra.mxu0 %v4335
      %v5088 = vpop.f32.mrf.mxu0
      %v5089 = vadd.f32 %v4920, %v5088
      %v5090 = vpop.f32.mrf.mxu0
      %v5091 = vadd.f32 %v4922, %v5090
      %5092 = vmatmul.bf16.gmra.mxu0 %v4339
      %v5093 = vpop.f32.mrf.mxu0
      %v5094 = vadd.f32 %v4925, %v5093
      %v5095 = vpop.f32.mrf.mxu0
      %v5096 = vadd.f32 %v4927, %v5095
      %5097 = vmatmul.bf16.gmra.mxu0 %v4343
      %v5098 = vpop.f32.mrf.mxu0
      %v5099 = vadd.f32 %v4930, %v5098
      %v5100 = vpop.f32.mrf.mxu0
      %v5101 = vadd.f32 %v4932, %v5100
      %5102 = vmatmul.bf16.gmra.mxu0 %v4347
      %v5103 = vpop.f32.mrf.mxu0
      %v5104 = vadd.f32 %v4935, %v5103
      %v5105 = vpop.f32.mrf.mxu0
      %v5106 = vadd.f32 %v4937, %v5105
      %5107 = vmatmul.bf16.gmra.mxu0 %v4351
      %v5108 = vpop.f32.mrf.mxu0
      %v5109 = vadd.f32 %v4940, %v5108
      %v5110 = vpop.f32.mrf.mxu0
      %v5111 = vadd.f32 %v4942, %v5110
      %5112 = vmatmul.bf16.gmra.mxu0 %v4355
      %v5113 = vpop.f32.mrf.mxu0
      %v5114 = vadd.f32 %v4945, %v5113
      %v5115 = vpop.f32.mrf.mxu0
      %v5116 = vadd.f32 %v4947, %v5115
      %5117 = vmatmul.bf16.gmra.mxu0 %v4359
      %v5118 = vpop.f32.mrf.mxu0
      %v5119 = vadd.f32 %v4950, %v5118
      %v5120 = vpop.f32.mrf.mxu0
      %v5121 = vadd.f32 %v4952, %v5120
      %5122 = vmatmul.bf16.gmra.mxu0 %v4363
      %v5123 = vpop.f32.mrf.mxu0
      %v5124 = vadd.f32 %v4955, %v5123
      %v5125 = vpop.f32.mrf.mxu0
      %v5126 = vadd.f32 %v4957, %v5125
      %5127 = vmatmul.bf16.gmra.mxu0 %v4367
      %v5128 = vpop.f32.mrf.mxu0
      %v5129 = vadd.f32 %v4960, %v5128
      %v5130 = vpop.f32.mrf.mxu0
      %v5131 = vadd.f32 %v4962, %v5130
      %5132 = vmatmul.bf16.gmra.mxu0 %v4371
      %v5133 = vpop.f32.mrf.mxu0
      %v5134 = vadd.f32 %v4965, %v5133
      %v5135 = vpop.f32.mrf.mxu0
      %v5136 = vadd.f32 %v4967, %v5135
      %5137 = vmatmul.bf16.gmra.mxu0 %v4375
      %v5138 = vpop.f32.mrf.mxu0
      %v5139 = vadd.f32 %v4970, %v5138
      %v5140 = vpop.f32.mrf.mxu0
      %v5141 = vadd.f32 %v4972, %v5140
      %5142 = vmatmul.bf16.gmra.mxu0 %v4379
      %v5143 = vpop.f32.mrf.mxu0
      %v5144 = vadd.f32 %v4975, %v5143
      %v5145 = vpop.f32.mrf.mxu0
      %v5146 = vadd.f32 %v4977, %v5145
      %5147 = vdwg.mxu0
      %5148 = vmatpush.bf16.msra.mxu0 %v4608
      %5149 = vmatpush.bf16.msra.mxu0 %v4607
      %5150 = vmatpush.bf16.msra.mxu0 %v4606
      %5151 = vmatpush.bf16.msra.mxu0 %v4605
      %5152 = vmatpush.bf16.msra.mxu0 %v4604
      %5153 = vmatpush.bf16.msra.mxu0 %v4603
      %5154 = vmatpush.bf16.msra.mxu0 %v4602
      %5155 = vmatpush.bf16.msra.mxu0 %v4601
      %5156 = vmatmul.bf16.gmra.mxu0 %v4256
      %v5157 = vpop.f32.mrf.mxu0
      %v5158 = vadd.f32 %v4989, %v5157
      %v5159 = vpop.f32.mrf.mxu0
      %v5160 = vadd.f32 %v4991, %v5159
      %5161 = vmatmul.bf16.gmra.mxu0 %v4260
      %v5162 = vpop.f32.mrf.mxu0
      %v5163 = vadd.f32 %v4994, %v5162
      %v5164 = vpop.f32.mrf.mxu0
      %v5165 = vadd.f32 %v4996, %v5164
      %5166 = vmatmul.bf16.gmra.mxu0 %v4264
      %v5167 = vpop.f32.mrf.mxu0
      %v5168 = vadd.f32 %v4999, %v5167
      %v5169 = vpop.f32.mrf.mxu0
      %v5170 = vadd.f32 %v5001, %v5169
      %5171 = vmatmul.bf16.gmra.mxu0 %v4268
      %v5172 = vpop.f32.mrf.mxu0
      %v5173 = vadd.f32 %v5004, %v5172
      %v5174 = vpop.f32.mrf.mxu0
      %v5175 = vadd.f32 %v5006, %v5174
      %5176 = vmatmul.bf16.gmra.mxu0 %v4272
      %v5177 = vpop.f32.mrf.mxu0
      %v5178 = vadd.f32 %v5009, %v5177
      %v5179 = vpop.f32.mrf.mxu0
      %v5180 = vadd.f32 %v5011, %v5179
      %5181 = vmatmul.bf16.gmra.mxu0 %v4276
      %v5182 = vpop.f32.mrf.mxu0
      %v5183 = vadd.f32 %v5014, %v5182
      %v5184 = vpop.f32.mrf.mxu0
      %v5185 = vadd.f32 %v5016, %v5184
      %5186 = vmatmul.bf16.gmra.mxu0 %v4280
      %v5187 = vpop.f32.mrf.mxu0
      %v5188 = vadd.f32 %v5019, %v5187
      %v5189 = vpop.f32.mrf.mxu0
      %v5190 = vadd.f32 %v5021, %v5189
      %5191 = vmatmul.bf16.gmra.mxu0 %v4284
      %v5192 = vpop.f32.mrf.mxu0
      %v5193 = vadd.f32 %v5024, %v5192
      %v5194 = vpop.f32.mrf.mxu0
      %v5195 = vadd.f32 %v5026, %v5194
      %5196 = vmatmul.bf16.gmra.mxu0 %v4288
      %v5197 = vpop.f32.mrf.mxu0
      %v5198 = vadd.f32 %v5029, %v5197
      %v5199 = vpop.f32.mrf.mxu0
      %v5200 = vadd.f32 %v5031, %v5199
      %5201 = vmatmul.bf16.gmra.mxu0 %v4292
      %v5202 = vpop.f32.mrf.mxu0
      %v5203 = vadd.f32 %v5034, %v5202
      %v5204 = vpop.f32.mrf.mxu0
      %v5205 = vadd.f32 %v5036, %v5204
      %5206 = vmatmul.bf16.gmra.mxu0 %v4296
      %v5207 = vpop.f32.mrf.mxu0
      %v5208 = vadd.f32 %v5039, %v5207
      %v5209 = vpop.f32.mrf.mxu0
      %v5210 = vadd.f32 %v5041, %v5209
      %5211 = vmatmul.bf16.gmra.mxu0 %v4300
      %v5212 = vpop.f32.mrf.mxu0
      %v5213 = vadd.f32 %v5044, %v5212
      %v5214 = vpop.f32.mrf.mxu0
      %v5215 = vadd.f32 %v5046, %v5214
      %5216 = vmatmul.bf16.gmra.mxu0 %v4304
      %v5217 = vpop.f32.mrf.mxu0
      %v5218 = vadd.f32 %v5049, %v5217
      %v5219 = vpop.f32.mrf.mxu0
      %v5220 = vadd.f32 %v5051, %v5219
      %5221 = vmatmul.bf16.gmra.mxu0 %v4308
      %v5222 = vpop.f32.mrf.mxu0
      %v5223 = vadd.f32 %v5054, %v5222
      %v5224 = vpop.f32.mrf.mxu0
      %v5225 = vadd.f32 %v5056, %v5224
      %5226 = vmatmul.bf16.gmra.mxu0 %v4312
      %v5227 = vpop.f32.mrf.mxu0
      %v5228 = vadd.f32 %v5059, %v5227
      %v5229 = vpop.f32.mrf.mxu0
      %v5230 = vadd.f32 %v5061, %v5229
      %5231 = vmatmul.bf16.gmra.mxu0 %v4316
      %v5232 = vpop.f32.mrf.mxu0
      %v5233 = vadd.f32 %v5064, %v5232
      %v5234 = vpop.f32.mrf.mxu0
      %v5235 = vadd.f32 %v5066, %v5234
      %5236 = vmatmul.bf16.gmra.mxu0 %v4320
      %v5237 = vpop.f32.mrf.mxu0
      %v5238 = vadd.f32 %v5069, %v5237
      %v5239 = vpop.f32.mrf.mxu0
      %v5240 = vadd.f32 %v5071, %v5239
      %5241 = vmatmul.bf16.gmra.mxu0 %v4324
      %v5242 = vpop.f32.mrf.mxu0
      %v5243 = vadd.f32 %v5074, %v5242
      %v5244 = vpop.f32.mrf.mxu0
      %v5245 = vadd.f32 %v5076, %v5244
      %5246 = vmatmul.bf16.gmra.mxu0 %v4328
      %v5247 = vpop.f32.mrf.mxu0
      %v5248 = vadd.f32 %v5079, %v5247
      %v5249 = vpop.f32.mrf.mxu0
      %v5250 = vadd.f32 %v5081, %v5249
      %5251 = vmatmul.bf16.gmra.mxu0 %v4332
      %v5252 = vpop.f32.mrf.mxu0
      %v5253 = vadd.f32 %v5084, %v5252
      %v5254 = vpop.f32.mrf.mxu0
      %v5255 = vadd.f32 %v5086, %v5254
      %5256 = vmatmul.bf16.gmra.mxu0 %v4336
      %v5257 = vpop.f32.mrf.mxu0
      %v5258 = vadd.f32 %v5089, %v5257
      %v5259 = vpop.f32.mrf.mxu0
      %v5260 = vadd.f32 %v5091, %v5259
      %5261 = vmatmul.bf16.gmra.mxu0 %v4340
      %v5262 = vpop.f32.mrf.mxu0
      %v5263 = vadd.f32 %v5094, %v5262
      %v5264 = vpop.f32.mrf.mxu0
      %v5265 = vadd.f32 %v5096, %v5264
      %5266 = vmatmul.bf16.gmra.mxu0 %v4344
      %v5267 = vpop.f32.mrf.mxu0
      %v5268 = vadd.f32 %v5099, %v5267
      %v5269 = vpop.f32.mrf.mxu0
      %v5270 = vadd.f32 %v5101, %v5269
      %5271 = vmatmul.bf16.gmra.mxu0 %v4348
      %v5272 = vpop.f32.mrf.mxu0
      %v5273 = vadd.f32 %v5104, %v5272
      %v5274 = vpop.f32.mrf.mxu0
      %v5275 = vadd.f32 %v5106, %v5274
      %5276 = vmatmul.bf16.gmra.mxu0 %v4352
      %v5277 = vpop.f32.mrf.mxu0
      %v5278 = vadd.f32 %v5109, %v5277
      %v5279 = vpop.f32.mrf.mxu0
      %v5280 = vadd.f32 %v5111, %v5279
      %5281 = vmatmul.bf16.gmra.mxu0 %v4356
      %v5282 = vpop.f32.mrf.mxu0
      %v5283 = vadd.f32 %v5114, %v5282
      %v5284 = vpop.f32.mrf.mxu0
      %v5285 = vadd.f32 %v5116, %v5284
      %5286 = vmatmul.bf16.gmra.mxu0 %v4360
      %v5287 = vpop.f32.mrf.mxu0
      %v5288 = vadd.f32 %v5119, %v5287
      %v5289 = vpop.f32.mrf.mxu0
      %v5290 = vadd.f32 %v5121, %v5289
      %5291 = vmatmul.bf16.gmra.mxu0 %v4364
      %v5292 = vpop.f32.mrf.mxu0
      %v5293 = vadd.f32 %v5124, %v5292
      %v5294 = vpop.f32.mrf.mxu0
      %v5295 = vadd.f32 %v5126, %v5294
      %5296 = vmatmul.bf16.gmra.mxu0 %v4368
      %v5297 = vpop.f32.mrf.mxu0
      %v5298 = vadd.f32 %v5129, %v5297
      %v5299 = vpop.f32.mrf.mxu0
      %v5300 = vadd.f32 %v5131, %v5299
      %5301 = vmatmul.bf16.gmra.mxu0 %v4372
      %v5302 = vpop.f32.mrf.mxu0
      %v5303 = vadd.f32 %v5134, %v5302
      %v5304 = vpop.f32.mrf.mxu0
      %v5305 = vadd.f32 %v5136, %v5304
      %5306 = vmatmul.bf16.gmra.mxu0 %v4376
      %v5307 = vpop.f32.mrf.mxu0
      %v5308 = vadd.f32 %v5139, %v5307
      %v5309 = vpop.f32.mrf.mxu0
      %v5310 = vadd.f32 %v5141, %v5309
      %5311 = vmatmul.bf16.gmra.mxu0 %v4380
      %v5312 = vpop.f32.mrf.mxu0
      %v5313 = vadd.f32 %v5144, %v5312
      %v5314 = vpop.f32.mrf.mxu0
      %v5315 = vadd.f32 %v5146, %v5314
      %5316 = vdwg.mxu0
      %vm5317 = vcmp.gt.f32.partialorder %v5158, 0.0
      %vm5318 = vcmp.gt.f32.partialorder %v5160, 0.0
      %vm5319 = vcmp.gt.f32.partialorder %v5163, 0.0
      %vm5320 = vcmp.gt.f32.partialorder %v5165, 0.0
      %vm5321 = vcmp.gt.f32.partialorder %v5168, 0.0
      %vm5322 = vcmp.gt.f32.partialorder %v5170, 0.0
      %vm5323 = vcmp.gt.f32.partialorder %v5173, 0.0
      %vm5324 = vcmp.gt.f32.partialorder %v5175, 0.0
      %vm5325 = vcmp.gt.f32.partialorder %v5178, 0.0
      %vm5326 = vcmp.gt.f32.partialorder %v5180, 0.0
      %vm5327 = vcmp.gt.f32.partialorder %v5183, 0.0
      %vm5328 = vcmp.gt.f32.partialorder %v5185, 0.0
      %vm5329 = vcmp.gt.f32.partialorder %v5188, 0.0
      %vm5330 = vcmp.gt.f32.partialorder %v5190, 0.0
      %vm5331 = vcmp.gt.f32.partialorder %v5193, 0.0
      %vm5332 = vcmp.gt.f32.partialorder %v5195, 0.0
      %vm5333 = vcmp.gt.f32.partialorder %v5198, 0.0
      %vm5334 = vcmp.gt.f32.partialorder %v5200, 0.0
      %vm5335 = vcmp.gt.f32.partialorder %v5203, 0.0
      %vm5336 = vcmp.gt.f32.partialorder %v5205, 0.0
      %vm5337 = vcmp.gt.f32.partialorder %v5208, 0.0
      %vm5338 = vcmp.gt.f32.partialorder %v5210, 0.0
      %vm5339 = vcmp.gt.f32.partialorder %v5213, 0.0
      %vm5340 = vcmp.gt.f32.partialorder %v5215, 0.0
      %vm5341 = vcmp.gt.f32.partialorder %v5218, 0.0
      %vm5342 = vcmp.gt.f32.partialorder %v5220, 0.0
      %vm5343 = vcmp.gt.f32.partialorder %v5223, 0.0
      %vm5344 = vcmp.gt.f32.partialorder %v5225, 0.0
      %vm5345 = vcmp.gt.f32.partialorder %v5228, 0.0
      %vm5346 = vcmp.gt.f32.partialorder %v5230, 0.0
      %vm5347 = vcmp.gt.f32.partialorder %v5233, 0.0
      %vm5348 = vcmp.gt.f32.partialorder %v5235, 0.0
      %vm5349 = vcmp.gt.f32.partialorder %v5238, 0.0
      %vm5350 = vcmp.gt.f32.partialorder %v5240, 0.0
      %vm5351 = vcmp.gt.f32.partialorder %v5243, 0.0
      %vm5352 = vcmp.gt.f32.partialorder %v5245, 0.0
      %vm5353 = vcmp.gt.f32.partialorder %v5248, 0.0
      %vm5354 = vcmp.gt.f32.partialorder %v5250, 0.0
      %vm5355 = vcmp.gt.f32.partialorder %v5253, 0.0
      %vm5356 = vcmp.gt.f32.partialorder %v5255, 0.0
      %vm5357 = vcmp.gt.f32.partialorder %v5258, 0.0
      %vm5358 = vcmp.gt.f32.partialorder %v5260, 0.0
      %vm5359 = vcmp.gt.f32.partialorder %v5263, 0.0
      %vm5360 = vcmp.gt.f32.partialorder %v5265, 0.0
      %vm5361 = vcmp.gt.f32.partialorder %v5268, 0.0
      %vm5362 = vcmp.gt.f32.partialorder %v5270, 0.0
      %vm5363 = vcmp.gt.f32.partialorder %v5273, 0.0
      %vm5364 = vcmp.gt.f32.partialorder %v5275, 0.0
      %vm5365 = vcmp.gt.f32.partialorder %v5278, 0.0
      %vm5366 = vcmp.gt.f32.partialorder %v5280, 0.0
      %vm5367 = vcmp.gt.f32.partialorder %v5283, 0.0
      %vm5368 = vcmp.gt.f32.partialorder %v5285, 0.0
      %vm5369 = vcmp.gt.f32.partialorder %v5288, 0.0
      %vm5370 = vcmp.gt.f32.partialorder %v5290, 0.0
      %vm5371 = vcmp.gt.f32.partialorder %v5293, 0.0
      %vm5372 = vcmp.gt.f32.partialorder %v5295, 0.0
      %vm5373 = vcmp.gt.f32.partialorder %v5298, 0.0
      %vm5374 = vcmp.gt.f32.partialorder %v5300, 0.0
      %vm5375 = vcmp.gt.f32.partialorder %v5303, 0.0
      %vm5376 = vcmp.gt.f32.partialorder %v5305, 0.0
      %vm5377 = vcmp.gt.f32.partialorder %v5308, 0.0
      %vm5378 = vcmp.gt.f32.partialorder %v5310, 0.0
      %vm5379 = vcmp.gt.f32.partialorder %v5313, 0.0
      %vm5380 = vcmp.gt.f32.partialorder %v5315, 0.0
      %v5381 = vmul.f32 %v5158, 0.1
      %v5382 = vmul.f32 %v5160, 0.1
      %v5383 = vmul.f32 %v5163, 0.1
      %v5384 = vmul.f32 %v5165, 0.1
      %v5385 = vmul.f32 %v5168, 0.1
      %v5386 = vmul.f32 %v5170, 0.1
      %v5387 = vmul.f32 %v5173, 0.1
      %v5388 = vmul.f32 %v5175, 0.1
      %v5389 = vmul.f32 %v5178, 0.1
      %v5390 = vmul.f32 %v5180, 0.1
      %v5391 = vmul.f32 %v5183, 0.1
      %v5392 = vmul.f32 %v5185, 0.1
      %v5393 = vmul.f32 %v5188, 0.1
      %v5394 = vmul.f32 %v5190, 0.1
      %v5395 = vmul.f32 %v5193, 0.1
      %v5396 = vmul.f32 %v5195, 0.1
      %v5397 = vmul.f32 %v5198, 0.1
      %v5398 = vmul.f32 %v5200, 0.1
      %v5399 = vmul.f32 %v5203, 0.1
      %v5400 = vmul.f32 %v5205, 0.1
      %v5401 = vmul.f32 %v5208, 0.1
      %v5402 = vmul.f32 %v5210, 0.1
      %v5403 = vmul.f32 %v5213, 0.1
      %v5404 = vmul.f32 %v5215, 0.1
      %v5405 = vmul.f32 %v5218, 0.1
      %v5406 = vmul.f32 %v5220, 0.1
      %v5407 = vmul.f32 %v5223, 0.1
      %v5408 = vmul.f32 %v5225, 0.1
      %v5409 = vmul.f32 %v5228, 0.1
      %v5410 = vmul.f32 %v5230, 0.1
      %v5411 = vmul.f32 %v5233, 0.1
      %v5412 = vmul.f32 %v5235, 0.1
      %v5413 = vmul.f32 %v5238, 0.1
      %v5414 = vmul.f32 %v5240, 0.1
      %v5415 = vmul.f32 %v5243, 0.1
      %v5416 = vmul.f32 %v5245, 0.1
      %v5417 = vmul.f32 %v5248, 0.1
      %v5418 = vmul.f32 %v5250, 0.1
      %v5419 = vmul.f32 %v5253, 0.1
      %v5420 = vmul.f32 %v5255, 0.1
      %v5421 = vmul.f32 %v5258, 0.1
      %v5422 = vmul.f32 %v5260, 0.1
      %v5423 = vmul.f32 %v5263, 0.1
      %v5424 = vmul.f32 %v5265, 0.1
      %v5425 = vmul.f32 %v5268, 0.1
      %v5426 = vmul.f32 %v5270, 0.1
      %v5427 = vmul.f32 %v5273, 0.1
      %v5428 = vmul.f32 %v5275, 0.1
      %v5429 = vmul.f32 %v5278, 0.1
      %v5430 = vmul.f32 %v5280, 0.1
      %v5431 = vmul.f32 %v5283, 0.1
      %v5432 = vmul.f32 %v5285, 0.1
      %v5433 = vmul.f32 %v5288, 0.1
      %v5434 = vmul.f32 %v5290, 0.1
      %v5435 = vmul.f32 %v5293, 0.1
      %v5436 = vmul.f32 %v5295, 0.1
      %v5437 = vmul.f32 %v5298, 0.1
      %v5438 = vmul.f32 %v5300, 0.1
      %v5439 = vmul.f32 %v5303, 0.1
      %v5440 = vmul.f32 %v5305, 0.1
      %v5441 = vmul.f32 %v5308, 0.1
      %v5442 = vmul.f32 %v5310, 0.1
      %v5443 = vmul.f32 %v5313, 0.1
      %v5444 = vmul.f32 %v5315, 0.1
      %v5445 = vsel %vm5317, %v5158, %v5381
      %v5446 = vsel %vm5318, %v5160, %v5382
      %v5447 = vsel %vm5319, %v5163, %v5383
      %v5448 = vsel %vm5320, %v5165, %v5384
      %v5449 = vsel %vm5321, %v5168, %v5385
      %v5450 = vsel %vm5322, %v5170, %v5386
      %v5451 = vsel %vm5323, %v5173, %v5387
      %v5452 = vsel %vm5324, %v5175, %v5388
      %v5453 = vsel %vm5325, %v5178, %v5389
      %v5454 = vsel %vm5326, %v5180, %v5390
      %v5455 = vsel %vm5327, %v5183, %v5391
      %v5456 = vsel %vm5328, %v5185, %v5392
      %v5457 = vsel %vm5329, %v5188, %v5393
      %v5458 = vsel %vm5330, %v5190, %v5394
      %v5459 = vsel %vm5331, %v5193, %v5395
      %v5460 = vsel %vm5332, %v5195, %v5396
      %v5461 = vsel %vm5333, %v5198, %v5397
      %v5462 = vsel %vm5334, %v5200, %v5398
      %v5463 = vsel %vm5335, %v5203, %v5399
      %v5464 = vsel %vm5336, %v5205, %v5400
      %v5465 = vsel %vm5337, %v5208, %v5401
      %v5466 = vsel %vm5338, %v5210, %v5402
      %v5467 = vsel %vm5339, %v5213, %v5403
      %v5468 = vsel %vm5340, %v5215, %v5404
      %v5469 = vsel %vm5341, %v5218, %v5405
      %v5470 = vsel %vm5342, %v5220, %v5406
      %v5471 = vsel %vm5343, %v5223, %v5407
      %v5472 = vsel %vm5344, %v5225, %v5408
      %v5473 = vsel %vm5345, %v5228, %v5409
      %v5474 = vsel %vm5346, %v5230, %v5410
      %v5475 = vsel %vm5347, %v5233, %v5411
      %v5476 = vsel %vm5348, %v5235, %v5412
      %v5477 = vsel %vm5349, %v5238, %v5413
      %v5478 = vsel %vm5350, %v5240, %v5414
      %v5479 = vsel %vm5351, %v5243, %v5415
      %v5480 = vsel %vm5352, %v5245, %v5416
      %v5481 = vsel %vm5353, %v5248, %v5417
      %v5482 = vsel %vm5354, %v5250, %v5418
      %v5483 = vsel %vm5355, %v5253, %v5419
      %v5484 = vsel %vm5356, %v5255, %v5420
      %v5485 = vsel %vm5357, %v5258, %v5421
      %v5486 = vsel %vm5358, %v5260, %v5422
      %v5487 = vsel %vm5359, %v5263, %v5423
      %v5488 = vsel %vm5360, %v5265, %v5424
      %v5489 = vsel %vm5361, %v5268, %v5425
      %v5490 = vsel %vm5362, %v5270, %v5426
      %v5491 = vsel %vm5363, %v5273, %v5427
      %v5492 = vsel %vm5364, %v5275, %v5428
      %v5493 = vsel %vm5365, %v5278, %v5429
      %v5494 = vsel %vm5366, %v5280, %v5430
      %v5495 = vsel %vm5367, %v5283, %v5431
      %v5496 = vsel %vm5368, %v5285, %v5432
      %v5497 = vsel %vm5369, %v5288, %v5433
      %v5498 = vsel %vm5370, %v5290, %v5434
      %v5499 = vsel %vm5371, %v5293, %v5435
      %v5500 = vsel %vm5372, %v5295, %v5436
      %v5501 = vsel %vm5373, %v5298, %v5437
      %v5502 = vsel %vm5374, %v5300, %v5438
      %v5503 = vsel %vm5375, %v5303, %v5439
      %v5504 = vsel %vm5376, %v5305, %v5440
      %v5505 = vsel %vm5377, %v5308, %v5441
      %v5506 = vsel %vm5378, %v5310, %v5442
      %v5507 = vsel %vm5379, %v5313, %v5443
      %v5508 = vsel %vm5380, %v5315, %v5444
      %5509 = vst [vmem:[%s229] sm:$0xff] %v5445
      %5510 = vst [vmem:[%s229 + $0x8] sm:$0xff] %v5446
      %5511 = vst [vmem:[%s229 + $0x10] sm:$0xff] %v5447
      %5512 = vst [vmem:[%s229 + $0x18] sm:$0xff] %v5448
      %5513 = vst [vmem:[%s229 + $0x20] sm:$0xff] %v5449
      %5514 = vst [vmem:[%s229 + $0x28] sm:$0xff] %v5450
      %5515 = vst [vmem:[%s229 + $0x30] sm:$0xff] %v5451
      %5516 = vst [vmem:[%s229 + $0x38] sm:$0xff] %v5452
      %5517 = vst [vmem:[%s229 + $0x40] sm:$0xff] %v5453
      %5518 = vst [vmem:[%s229 + $0x48] sm:$0xff] %v5454
      %5519 = vst [vmem:[%s229 + $0x50] sm:$0xff] %v5455
      %5520 = vst [vmem:[%s229 + $0x58] sm:$0xff] %v5456
      %5521 = vst [vmem:[%s229 + $0x60] sm:$0xff] %v5457
      %5522 = vst [vmem:[%s229 + $0x68] sm:$0xff] %v5458
      %5523 = vst [vmem:[%s229 + $0x70] sm:$0xff] %v5459
      %5524 = vst [vmem:[%s229 + $0x78] sm:$0xff] %v5460
      %5525 = vst [vmem:[%s229 + $0x80] sm:$0xff] %v5461
      %5526 = vst [vmem:[%s229 + $0x88] sm:$0xff] %v5462
      %5527 = vst [vmem:[%s229 + $0x90] sm:$0xff] %v5463
      %5528 = vst [vmem:[%s229 + $0x98] sm:$0xff] %v5464
      %5529 = vst [vmem:[%s229 + $0xa0] sm:$0xff] %v5465
      %5530 = vst [vmem:[%s229 + $0xa8] sm:$0xff] %v5466
      %5531 = vst [vmem:[%s229 + $0xb0] sm:$0xff] %v5467
      %5532 = vst [vmem:[%s229 + $0xb8] sm:$0xff] %v5468
      %5533 = vst [vmem:[%s229 + $0xc0] sm:$0xff] %v5469
      %5534 = vst [vmem:[%s229 + $0xc8] sm:$0xff] %v5470
      %5535 = vst [vmem:[%s229 + $0xd0] sm:$0xff] %v5471
      %5536 = vst [vmem:[%s229 + $0xd8] sm:$0xff] %v5472
      %5537 = vst [vmem:[%s229 + $0xe0] sm:$0xff] %v5473
      %5538 = vst [vmem:[%s229 + $0xe8] sm:$0xff] %v5474
      %5539 = vst [vmem:[%s229 + $0xf0] sm:$0xff] %v5475
      %5540 = vst [vmem:[%s229 + $0xf8] sm:$0xff] %v5476
      %5541 = vst [vmem:[%s229 + $0x100] sm:$0xff] %v5477
      %5542 = vst [vmem:[%s229 + $0x108] sm:$0xff] %v5478
      %5543 = vst [vmem:[%s229 + $0x110] sm:$0xff] %v5479
      %5544 = vst [vmem:[%s229 + $0x118] sm:$0xff] %v5480
      %5545 = vst [vmem:[%s229 + $0x120] sm:$0xff] %v5481
      %5546 = vst [vmem:[%s229 + $0x128] sm:$0xff] %v5482
      %5547 = vst [vmem:[%s229 + $0x130] sm:$0xff] %v5483
      %5548 = vst [vmem:[%s229 + $0x138] sm:$0xff] %v5484
      %5549 = vst [vmem:[%s229 + $0x140] sm:$0xff] %v5485
      %5550 = vst [vmem:[%s229 + $0x148] sm:$0xff] %v5486
      %5551 = vst [vmem:[%s229 + $0x150] sm:$0xff] %v5487
      %5552 = vst [vmem:[%s229 + $0x158] sm:$0xff] %v5488
      %5553 = vst [vmem:[%s229 + $0x160] sm:$0xff] %v5489
      %5554 = vst [vmem:[%s229 + $0x168] sm:$0xff] %v5490
      %5555 = vst [vmem:[%s229 + $0x170] sm:$0xff] %v5491
      %5556 = vst [vmem:[%s229 + $0x178] sm:$0xff] %v5492
      %5557 = vst [vmem:[%s229 + $0x180] sm:$0xff] %v5493
      %5558 = vst [vmem:[%s229 + $0x188] sm:$0xff] %v5494
      %5559 = vst [vmem:[%s229 + $0x190] sm:$0xff] %v5495
      %5560 = vst [vmem:[%s229 + $0x198] sm:$0xff] %v5496
      %5561 = vst [vmem:[%s229 + $0x1a0] sm:$0xff] %v5497
      %5562 = vst [vmem:[%s229 + $0x1a8] sm:$0xff] %v5498
      %5563 = vst [vmem:[%s229 + $0x1b0] sm:$0xff] %v5499
      %5564 = vst [vmem:[%s229 + $0x1b8] sm:$0xff] %v5500
      %5565 = vst [vmem:[%s229 + $0x1c0] sm:$0xff] %v5501
      %5566 = vst [vmem:[%s229 + $0x1c8] sm:$0xff] %v5502
      %5567 = vst [vmem:[%s229 + $0x1d0] sm:$0xff] %v5503
      %5568 = vst [vmem:[%s229 + $0x1d8] sm:$0xff] %v5504
      %5569 = vst [vmem:[%s229 + $0x1e0] sm:$0xff] %v5505
      %5570 = vst [vmem:[%s229 + $0x1e8] sm:$0xff] %v5506
      %5571 = vst [vmem:[%s229 + $0x1f0] sm:$0xff] %v5507
      %5572 = vst [vmem:[%s229 + $0x1f8] sm:$0xff] %v5508
      %s5573 = smul.u32 64, %s16
      %p5574 = scmp.lt.s32.totalorder %s5573, 127
      %s5575 = scalar_select %p5574, %s5573, 127
      %s5576 = smul.addr %s5575, 8
      %s5577 = scalar_lea.vmem %s5, %s5576
      // Predicated region
      $region41: #{gnn_head_forward.1} parent=39 // pred_check
        %p5578 = pneg %p144
      $region42: #{gnn_head_forward.1} parent=39 // pred_check_branch
        %5580 = sbr.rel (%p5578) target = $region44
      $region43: #{gnn_head_forward.1} parent=39 // pred_region
        %s5581 = smul.u32 64, %s16
      $region44: #{gnn_head_forward.1} parent=39 // pred_fallthru
        _
    $region40: #{gnn_head_forward.1} parent=5 // pred_fallthru
      _
    %p5582 = scmp.le.s32.totalorder 2, %s11
    // Predicated region
    $region45: #{gnn_head_forward.1} parent=5 // pred_check
      %p5583 = pneg %p5582
    $region46: #{gnn_head_forward.1} parent=5 // pred_check_branch
      %5585 = sbr.rel (%p5583) target = $region48
    $region47: #{gnn_head_forward.1} parent=5 // pred_region
      %s5586 = ssub.s32 %s11, 2
      // Predicated region
      $region49: #{gnn_head_forward.1} parent=47 // pred_check
        %p5587 = pneg %p150
      $region50: #{gnn_head_forward.1} parent=47 // pred_check_branch
        %5589 = sbr.rel (%p5587) target = $region52
      $region51: #{gnn_head_forward.1} parent=47 // pred_region
        %s5590 = smul.u32 64, %s17
        %p5591 = scmp.lt.s32.totalorder %s5590, 127
        %s5592 = scalar_select %p5591, %s5590, 127
        %s5593 = smul.addr %s5592, 8
        %s5594 = scalar_lea.vmem %s5, %s5593
      $region52: #{gnn_head_forward.1} parent=47 // pred_fallthru
        _
    $region48: #{gnn_head_forward.1} parent=5 // pred_fallthru
      _
  $region6: #{gnn_head_forward.1} parent=0 // loop_footer
    %s15 = sadd.s32 1, %s11
  $region7: #{gnn_head_forward.1} parent=0 // loop_footer_branch
    %10 = sbr.rel target = $region3
  $region8: #{gnn_head_forward.1} parent=0 // loop_exit
    _

</llo_original>
